<compile_context>
chip_gen: v7x
topology: tpu7x:2x2x1
jax: 0.10.0
libtpu: 0.0.40
codegen_flags: <defaults>
</compile_context>

<pallas_src>
import functools

import jax
import jax.numpy as jnp
from jax import lax
from jax.experimental import pallas as pl
from jax.experimental.pallas import tpu as pltpu


# ----------------------------------------------------------------------------
# Fused Pallas kernel: lstm_0 -> lstm_1 -> fc (last timestep only)
# ----------------------------------------------------------------------------
def _fused_lstm_kernel(
    x_ref,       # (S, D)            f32 input sequence
    wih0_ref,    # (D, 4H0)          bf16, gate cols [i,f,o,g]
    wbig_ref,    # (H0+H1, 4H0+4H1)  bf16 fused recurrent weight [[whh0,wih1],[0,whh1]]
    b0_ref,      # (1, 4H0)          f32  (b_ih0 + b_hh0), gate-permuted
    b1_ref,      # (1, 4H1)          f32  (b_ih1 + b_hh1), gate-permuted
    wfc_ref,     # (H1, O)           f32
    bfc_ref,     # (1, O)            f32
    out_ref,     # (1, O)            f32  -> linear(h1[S-1])
    xproj_ref,   # (S, 4H0)          f32  VMEM scratch: batched layer-0 input projection
    *,
    hidden0,
    hidden1,
    seq_len,
):
    H0, H1, S = hidden0, hidden1, seq_len
    cdt = wbig_ref.dtype  # MXU operand dtype (bf16)

    # Layer-0 input projection for every timestep in one big MXU matmul.
    xproj_ref[...] = (
        jnp.dot(x_ref[...].astype(cdt), wih0_ref[...],
                preferred_element_type=jnp.float32)
        + b0_ref[...]
    )

    def cell(gates, c, H):
        # Gate columns are pre-permuted to [i, f, o, g]:
        # one sigmoid over the contiguous (1, 3H) slice, one tanh over the last (1, H).
        sg = jax.nn.sigmoid(gates[:, 0:3 * H])
        i = sg[:, 0 * H:1 * H]
        f = sg[:, 1 * H:2 * H]
        o = sg[:, 2 * H:3 * H]
        g = jnp.tanh(gates[:, 3 * H:4 * H])
        c_new = f * c + i * g
        h_new = o * jnp.tanh(c_new)
        return h_new, c_new

    # --- prologue: layer 0 @ t = 0 (h0 = c0 = 0, so the recurrent term vanishes) ---
    h0, c0 = cell(xproj_ref[pl.ds(0, 1), :], jnp.zeros((1, H0), jnp.float32), H0)
    h1 = jnp.zeros((1, H1), jnp.float32)
    c1 = jnp.zeros((1, H1), jnp.float32)

    # --- wavefront main loop: layer 0 runs step t while layer 1 runs step t-1 ---
    def body(t, carry):
        h0, c0, h1, c1 = carry
        # Single bf16 cast of the carried state; one wide K=256 recurrent matmul.
        v = jnp.concatenate([h0, h1], axis=1).astype(cdt)            # (1, H0+H1)
        r = jnp.dot(v, wbig_ref[...], preferred_element_type=jnp.float32)
        g0 = xproj_ref[pl.ds(t, 1), :] + r[:, 0:4 * H0]              # layer 0 @ t
        g1 = r[:, 4 * H0:] + b1_ref[...]                             # layer 1 @ t-1
        h1n, c1n = cell(g1, c1, H1)
        h0n, c0n = cell(g0, c0, H0)
        return (h0n, c0n, h1n, c1n)

    # TODO(synk): switch to a partial unroll (e.g. unroll=4) if S grows, to limit
    # vreg live ranges; full unroll is right for S=8.
    h0, c0, h1, c1 = lax.fori_loop(1, S, body, (h0, c0, h1, c1), unroll=True)

    # --- epilogue: layer 1 @ t = S-1, then the Linear on the final hidden state ---
    v = jnp.concatenate([h0, h1], axis=1).astype(cdt)
    g1 = (
        jnp.dot(v, wbig_ref[:, 4 * H0:], preferred_element_type=jnp.float32)
        + b1_ref[...]
    )
    h1, c1 = cell(g1, c1, H1)
    out_ref[...] = (
        jnp.dot(h1, wfc_ref[...], preferred_element_type=jnp.float32) + bfc_ref[...]
    )


# ----------------------------------------------------------------------------
# Wrappers
# ----------------------------------------------------------------------------
def lstm_fused(x, kparams):
    """Run the whole 2-layer LSTM + Linear forward in a single pallas_call.

    `kparams` are the pre-prepared (transposed / gate-permuted / bf16) weights
    from prepare_kernel_params — no per-call dtype conversions happen here.
    """
    S = x.shape[0]
    wih0, wbig, b0, b1, wfc, bfc = kparams
    H0 = b0.shape[1] // 4
    H1 = b1.shape[1] // 4
    O = wfc.shape[1]

    args = (x, wih0, wbig, b0, b1, wfc, bfc)
    kernel = functools.partial(
        _fused_lstm_kernel, hidden0=H0, hidden1=H1, seq_len=S
    )
    # All operands fit comfortably in VMEM at these sizes (< 1 MiB total), so
    # there is no grid; everything is resident for the whole recurrence.
    # TODO(synk): add a grid / emit_pipeline over S (generation-aware VMEM
    # budget: ~half the v6e block on v7x's 64 MiB) before scaling S or H.
    return pl.pallas_call(
        kernel,
        out_shape=jax.ShapeDtypeStruct((1, O), jnp.float32),
        in_specs=[pl.BlockSpec(a.shape, lambda: (0, 0)) for a in args],
        out_specs=pl.BlockSpec((1, O), lambda: (0, 0)),
        scratch_shapes=[pltpu.VMEM((S, 4 * H0), jnp.float32)],
    )(*args)


def lstm_forward(x, kparams):
    """Mirror of LSTM.forward: reshape to (S, 1, -1), run the layers, return x[-1]."""
    S = x.shape[0]
    h = x.reshape(S, -1)  # batch = 1 is squeezed out (see layout note at top)
    return lstm_fused(h, kparams)  # (1, out_dim) == linear(...)[-1]


# ----------------------------------------------------------------------------
# Parameters: raw torch-style init + one-time kernel-form preparation
# ----------------------------------------------------------------------------
def init_raw_params(key, in_dim, out_dim, dims):
    """torch.nn.LSTM / nn.Linear style uniform(+-1/sqrt(H)) init, torch layouts."""
    assert len(dims) == 2, "fused kernel implements the module's default 2-LSTM stack"
    lstm_params = []
    prev = in_dim
    for h in dims:
        key, k1, k2, k3, k4 = jax.random.split(key, 5)
        bound = 1.0 / float(h) ** 0.5
        w_ih = jax.random.uniform(k1, (4 * h, prev), jnp.float32, -bound, bound)
        w_hh = jax.random.uniform(k2, (4 * h, h), jnp.float32, -bound, bound)
        b_ih = jax.random.uniform(k3, (4 * h,), jnp.float32, -bound, bound)
        b_hh = jax.random.uniform(k4, (4 * h,), jnp.float32, -bound, bound)
        lstm_params.append((w_ih, w_hh, b_ih, b_hh))
        prev = h
    key, k1, k2 = jax.random.split(key, 3)
    bound = 1.0 / float(prev) ** 0.5
    w_fc = jax.random.uniform(k1, (out_dim, prev), jnp.float32, -bound, bound)
    b_fc = jax.random.uniform(k2, (out_dim,), jnp.float32, -bound, bound)
    return (lstm_params[0], lstm_params[1], (w_fc, b_fc))


def _permute_ifog_cols(m, H):
    """Permute gate-column blocks [i|f|g|o] -> [i|f|o|g] (done once, at init)."""
    return jnp.concatenate([m[:, 0:2 * H], m[:, 3 * H:4 * H], m[:, 2 * H:3 * H]], axis=1)


def prepare_kernel_params(raw_params):
    """One-time transform: transpose, gate-permute, fuse recurrent weights, cast bf16."""
    (w_ih0, w_hh0, b_ih0, b_hh0), (w_ih1, w_hh1, b_ih1, b_hh1), (w_fc, b_fc) = raw_params
    H0 = w_hh0.shape[1]
    H1 = w_hh1.shape[1]
    cdt = jnp.bfloat16

    wih0_t = _permute_ifog_cols(w_ih0.T, H0).astype(cdt)          # (D,  4H0)
    whh0_t = _permute_ifog_cols(w_hh0.T, H0)                      # (H0, 4H0)
    wih1_t = _permute_ifog_cols(w_ih1.T, H1)                      # (H0, 4H1)
    whh1_t = _permute_ifog_cols(w_hh1.T, H1)                      # (H1, 4H1)

    b0 = _permute_ifog_cols((b_ih0 + b_hh0).reshape(1, -1), H0)   # (1, 4H0) f32
    b1 = _permute_ifog_cols((b_ih1 + b_hh1).reshape(1, -1), H1)   # (1, 4H1) f32

    # Fused recurrent weight (K = H0+H1 = 256 form for v6e/v7x):
    #   [h0 | h1] @ [[whh0, wih1], [0, whh1]]  ->  [g0_rec | g1]
    # TODO(synk): on v5e (128x128 MXU) prefer the zero-free [whh0|wih1] (H0, 4H0+4H1)
    # fused weight plus a separate whh1 matmul to avoid wasted K-passes on the zero block.
    wbig = jnp.block([
        [whh0_t, wih1_t],
        [jnp.zeros((H1, 4 * H0), jnp.float32), whh1_t],
    ]).astype(cdt)                                                # (H0+H1, 4H0+4H1) bf16

    return (wih0_t, wbig, b0, b1, w_fc.T, b_fc.reshape(1, -1))


# ----------------------------------------------------------------------------
# Pure-JAX reference (torch.nn.LSTM semantics, f32, standard [i,f,g,o] order)
# ----------------------------------------------------------------------------
def lstm_reference(x, raw_params):
    def lstm_layer(seq, w_ih, w_hh, b_ih, b_hh):
        H = w_hh.shape[1]

        def step(carry, x_t):
            h, c = carry
            gates = x_t @ w_ih.T + h @ w_hh.T + b_ih + b_hh
            i, f, g, o = jnp.split(gates, 4)
            c = jax.nn.sigmoid(f) * c + jax.nn.sigmoid(i) * jnp.tanh(g)
            h = jax.nn.sigmoid(o) * jnp.tanh(c)
            return (h, c), h

        _, hs = lax.scan(step, (jnp.zeros(H), jnp.zeros(H)), seq)
        return hs

    p0, p1, (w_fc, b_fc) = raw_params
    h = lstm_layer(x, *p0)
    h = lstm_layer(h, *p1)
    return (h[-1] @ w_fc.T + b_fc).reshape(1, -1)


# ----------------------------------------------------------------------------
if __name__ == "__main__":
    SEQ = 8
    IN_DIM = 128
    DIMS = [128, 128]
    OUT_DIM = 16

    key = jax.random.PRNGKey(0)
    kx, kp = jax.random.split(key)
    x = jax.random.normal(kx, (SEQ, IN_DIM), jnp.float32)

    raw_params = init_raw_params(kp, IN_DIM, OUT_DIM, DIMS)
    kparams = jax.tree_util.tree_map(
        jax.block_until_ready, prepare_kernel_params(raw_params)
    )  # one-time weight prep (transpose / permute / fuse / bf16) outside the hot path

    fwd = jax.jit(lstm_forward)
    out = jax.block_until_ready(fwd(x, kparams))

    assert out.shape == (1, OUT_DIM), out.shape
    assert bool(jnp.all(jnp.isfinite(out)))

    ref = lstm_reference(x, raw_params)
    assert bool(jnp.allclose(out, ref, atol=6e-2, rtol=6e-2)), (out, ref)

    print("KERNEL_OK")
</pallas_src>

<mosaic_0001>
module attributes {stable_mosaic.version = 11 : i64} {
  func.func @_fused_lstm_kernel(%arg0: memref<8x128xf32, #tpu.memory_space<vmem>>, %arg1: memref<128x512xbf16, #tpu.memory_space<vmem>>, %arg2: memref<256x1024xbf16, #tpu.memory_space<vmem>>, %arg3: memref<1x512xf32, #tpu.memory_space<vmem>>, %arg4: memref<1x512xf32, #tpu.memory_space<vmem>>, %arg5: memref<128x16xf32, #tpu.memory_space<vmem>>, %arg6: memref<1x16xf32, #tpu.memory_space<vmem>>, %arg7: memref<1x16xf32, #tpu.memory_space<vmem>>, %arg8: memref<8x512xf32, #tpu.memory_space<vmem>>) attributes {dimension_semantics = [], scalar_prefetch = 0 : i64, scratch_operands = 1 : i64, tpu.core_type = #tpu.core_type<tc>} {
    %c0 = arith.constant 0 : index
    %c0_0 = arith.constant 0 : index
    %0 = vector.load %arg0[%c0, %c0_0] : memref<8x128xf32, #tpu.memory_space<vmem>>, vector<8x128xf32>
    %1 = arith.truncf %0 : vector<8x128xf32> to vector<8x128xbf16>
    %c0_1 = arith.constant 0 : index
    %c0_2 = arith.constant 0 : index
    %2 = vector.load %arg1[%c0_1, %c0_2] : memref<128x512xbf16, #tpu.memory_space<vmem>>, vector<128x512xbf16>
    %cst = arith.constant dense<0.000000e+00> : vector<8x512xf32>
    %3 = tpu.matmul %1, %2, %cst {dimension_numbers = #tpu.dot_dimension_numbers<[1], [0], [0], [1], [0, 0, 1, 1], [], []>} : vector<8x128xbf16>, vector<128x512xbf16>, vector<8x512xf32> -> vector<8x512xf32>
    %c0_3 = arith.constant 0 : index
    %c0_4 = arith.constant 0 : index
    %4 = vector.load %arg3[%c0_3, %c0_4] : memref<1x512xf32, #tpu.memory_space<vmem>>, vector<1x512xf32>
    %5 = vector.broadcast %4 : vector<1x512xf32> to vector<8x512xf32>
    %6 = arith.addf %3, %5 : vector<8x512xf32>
    %c0_5 = arith.constant 0 : index
    %c0_6 = arith.constant 0 : index
    %7 = vector.load %arg8[%c0_5, %c0_6] : memref<8x512xf32, #tpu.memory_space<vmem>>, vector<8x512xf32>
    tpu.vector_store %arg8[%c0_5, %c0_6], %6 {strides = array<i32>} : memref<8x512xf32, #tpu.memory_space<vmem>>, vector<8x512xf32>,
    %c0_7 = arith.constant 0 : index
    %c0_8 = arith.constant 0 : index
    %8 = vector.load %arg8[%c0_7, %c0_8] : memref<8x512xf32, #tpu.memory_space<vmem>>, vector<1x512xf32>
    %cst_9 = arith.constant 0.000000e+00 : f32
    %9 = vector.broadcast %cst_9 : f32 to vector<1x128xf32>
    %10 = vector.extract_strided_slice %8 {offsets = [0, 0], sizes = [1, 384], strides = [1, 1]} : vector<1x512xf32> to vector<1x384xf32>
    %11 = arith.negf %10 : vector<1x384xf32>
    %12 = math.exp %11 : vector<1x384xf32>
    %cst_10 = arith.constant 1.000000e+00 : f32
    %13 = vector.broadcast %cst_10 : f32 to vector<1x384xf32>
    %14 = arith.addf %13, %12 : vector<1x384xf32>
    %15 = arith.divf %13, %14 : vector<1x384xf32>
    %16 = vector.extract_strided_slice %15 {offsets = [0, 0], sizes = [1, 128], strides = [1, 1]} : vector<1x384xf32> to vector<1x128xf32>
    %17 = vector.extract_strided_slice %15 {offsets = [0, 128], sizes = [1, 128], strides = [1, 1]} : vector<1x384xf32> to vector<1x128xf32>
    %18 = vector.extract_strided_slice %15 {offsets = [0, 256], sizes = [1, 128], strides = [1, 1]} : vector<1x384xf32> to vector<1x128xf32>
    %19 = vector.extract_strided_slice %8 {offsets = [0, 384], sizes = [1, 128], strides = [1, 1]} : vector<1x512xf32> to vector<1x128xf32>
    %20 = math.tanh %19 : vector<1x128xf32>
    %21 = arith.mulf %17, %9 : vector<1x128xf32>
    %22 = arith.mulf %16, %20 : vector<1x128xf32>
    %23 = arith.addf %21, %22 : vector<1x128xf32>
    %24 = math.tanh %23 : vector<1x128xf32>
    %25 = arith.mulf %18, %24 : vector<1x128xf32>
    %cst_11 = arith.constant 0.000000e+00 : f32
    %26 = vector.broadcast %cst_11 : f32 to vector<1x128xf32>
    %cst_12 = arith.constant 0.000000e+00 : f32
    %27 = vector.broadcast %cst_12 : f32 to vector<1x128xf32>
    %c1_i32 = arith.constant 1 : i32
    %28 = tpu.concatenate %25, %26 in 1 : vector<1x128xf32>, vector<1x128xf32> -> vector<1x256xf32>
    %29 = arith.truncf %28 : vector<1x256xf32> to vector<1x256xbf16>
    %c0_13 = arith.constant 0 : index
    %c0_14 = arith.constant 0 : index
    %30 = vector.load %arg2[%c0_13, %c0_14] : memref<256x1024xbf16, #tpu.memory_space<vmem>>, vector<256x1024xbf16>
    %cst_15 = arith.constant dense<0.000000e+00> : vector<1x1024xf32>
    %31 = tpu.matmul %29, %30, %cst_15 {dimension_numbers = #tpu.dot_dimension_numbers<[1], [0], [0], [1], [0, 0, 1, 1], [], []>} : vector<1x256xbf16>, vector<256x1024xbf16>, vector<1x1024xf32> -> vector<1x1024xf32>
    %32 = arith.index_cast %c1_i32 : i32 to index
    %c0_16 = arith.constant 0 : index
    %33 = vector.load %arg8[%32, %c0_16] : memref<8x512xf32, #tpu.memory_space<vmem>>, vector<1x512xf32>
    %34 = vector.extract_strided_slice %31 {offsets = [0, 0], sizes = [1, 512], strides = [1, 1]} : vector<1x1024xf32> to vector<1x512xf32>
    %35 = arith.addf %33, %34 : vector<1x512xf32>
    %36 = vector.extract_strided_slice %31 {offsets = [0, 512], sizes = [1, 512], strides = [1, 1]} : vector<1x1024xf32> to vector<1x512xf32>
    %c0_17 = arith.constant 0 : index
    %c0_18 = arith.constant 0 : index
    %37 = vector.load %arg4[%c0_17, %c0_18] : memref<1x512xf32, #tpu.memory_space<vmem>>, vector<1x512xf32>
    %38 = arith.addf %36, %37 : vector<1x512xf32>
    %39 = vector.extract_strided_slice %38 {offsets = [0, 0], sizes = [1, 384], strides = [1, 1]} : vector<1x512xf32> to vector<1x384xf32>
    %40 = arith.negf %39 : vector<1x384xf32>
    %41 = math.exp %40 : vector<1x384xf32>
    %cst_19 = arith.constant 1.000000e+00 : f32
    %42 = vector.broadcast %cst_19 : f32 to vector<1x384xf32>
    %43 = arith.addf %42, %41 : vector<1x384xf32>
    %44 = arith.divf %42, %43 : vector<1x384xf32>
    %45 = vector.extract_strided_slice %44 {offsets = [0, 0], sizes = [1, 128], strides = [1, 1]} : vector<1x384xf32> to vector<1x128xf32>
    %46 = vector.extract_strided_slice %44 {offsets = [0, 128], sizes = [1, 128], strides = [1, 1]} : vector<1x384xf32> to vector<1x128xf32>
    %47 = vector.extract_strided_slice %44 {offsets = [0, 256], sizes = [1, 128], strides = [1, 1]} : vector<1x384xf32> to vector<1x128xf32>
    %48 = vector.extract_strided_slice %38 {offsets = [0, 384], sizes = [1, 128], strides = [1, 1]} : vector<1x512xf32> to vector<1x128xf32>
    %49 = math.tanh %48 : vector<1x128xf32>
    %50 = arith.mulf %46, %27 : vector<1x128xf32>
    %51 = arith.mulf %45, %49 : vector<1x128xf32>
    %52 = arith.addf %50, %51 : vector<1x128xf32>
    %53 = math.tanh %52 : vector<1x128xf32>
    %54 = arith.mulf %47, %53 : vector<1x128xf32>
    %55 = vector.extract_strided_slice %35 {offsets = [0, 0], sizes = [1, 384], strides = [1, 1]} : vector<1x512xf32> to vector<1x384xf32>
    %56 = arith.negf %55 : vector<1x384xf32>
    %57 = math.exp %56 : vector<1x384xf32>
    %cst_20 = arith.constant 1.000000e+00 : f32
    %58 = vector.broadcast %cst_20 : f32 to vector<1x384xf32>
    %59 = arith.addf %58, %57 : vector<1x384xf32>
    %60 = arith.divf %58, %59 : vector<1x384xf32>
    %61 = vector.extract_strided_slice %60 {offsets = [0, 0], sizes = [1, 128], strides = [1, 1]} : vector<1x384xf32> to vector<1x128xf32>
    %62 = vector.extract_strided_slice %60 {offsets = [0, 128], sizes = [1, 128], strides = [1, 1]} : vector<1x384xf32> to vector<1x128xf32>
    %63 = vector.extract_strided_slice %60 {offsets = [0, 256], sizes = [1, 128], strides = [1, 1]} : vector<1x384xf32> to vector<1x128xf32>
    %64 = vector.extract_strided_slice %35 {offsets = [0, 384], sizes = [1, 128], strides = [1, 1]} : vector<1x512xf32> to vector<1x128xf32>
    %65 = math.tanh %64 : vector<1x128xf32>
    %66 = arith.mulf %62, %23 : vector<1x128xf32>
    %67 = arith.mulf %61, %65 : vector<1x128xf32>
    %68 = arith.addf %66, %67 : vector<1x128xf32>
    %69 = math.tanh %68 : vector<1x128xf32>
    %70 = arith.mulf %63, %69 : vector<1x128xf32>
    %c2_i32 = arith.constant 2 : i32
    %71 = tpu.concatenate %70, %54 in 1 : vector<1x128xf32>, vector<1x128xf32> -> vector<1x256xf32>
    %72 = arith.truncf %71 : vector<1x256xf32> to vector<1x256xbf16>
    %c0_21 = arith.constant 0 : index
    %c0_22 = arith.constant 0 : index
    %73 = vector.load %arg2[%c0_21, %c0_22] : memref<256x1024xbf16, #tpu.memory_space<vmem>>, vector<256x1024xbf16>
    %cst_23 = arith.constant dense<0.000000e+00> : vector<1x1024xf32>
    %74 = tpu.matmul %72, %73, %cst_23 {dimension_numbers = #tpu.dot_dimension_numbers<[1], [0], [0], [1], [0, 0, 1, 1], [], []>} : vector<1x256xbf16>, vector<256x1024xbf16>, vector<1x1024xf32> -> vector<1x1024xf32>
    %75 = arith.index_cast %c2_i32 : i32 to index
    %c0_24 = arith.constant 0 : index
    %76 = vector.load %arg8[%75, %c0_24] : memref<8x512xf32, #tpu.memory_space<vmem>>, vector<1x512xf32>
    %77 = vector.extract_strided_slice %74 {offsets = [0, 0], sizes = [1, 512], strides = [1, 1]} : vector<1x1024xf32> to vector<1x512xf32>
    %78 = arith.addf %76, %77 : vector<1x512xf32>
    %79 = vector.extract_strided_slice %74 {offsets = [0, 512], sizes = [1, 512], strides = [1, 1]} : vector<1x1024xf32> to vector<1x512xf32>
    %c0_25 = arith.constant 0 : index
    %c0_26 = arith.constant 0 : index
    %80 = vector.load %arg4[%c0_25, %c0_26] : memref<1x512xf32, #tpu.memory_space<vmem>>, vector<1x512xf32>
    %81 = arith.addf %79, %80 : vector<1x512xf32>
    %82 = vector.extract_strided_slice %81 {offsets = [0, 0], sizes = [1, 384], strides = [1, 1]} : vector<1x512xf32> to vector<1x384xf32>
    %83 = arith.negf %82 : vector<1x384xf32>
    %84 = math.exp %83 : vector<1x384xf32>
    %cst_27 = arith.constant 1.000000e+00 : f32
    %85 = vector.broadcast %cst_27 : f32 to vector<1x384xf32>
    %86 = arith.addf %85, %84 : vector<1x384xf32>
    %87 = arith.divf %85, %86 : vector<1x384xf32>
    %88 = vector.extract_strided_slice %87 {offsets = [0, 0], sizes = [1, 128], strides = [1, 1]} : vector<1x384xf32> to vector<1x128xf32>
    %89 = vector.extract_strided_slice %87 {offsets = [0, 128], sizes = [1, 128], strides = [1, 1]} : vector<1x384xf32> to vector<1x128xf32>
    %90 = vector.extract_strided_slice %87 {offsets = [0, 256], sizes = [1, 128], strides = [1, 1]} : vector<1x384xf32> to vector<1x128xf32>
    %91 = vector.extract_strided_slice %81 {offsets = [0, 384], sizes = [1, 128], strides = [1, 1]} : vector<1x512xf32> to vector<1x128xf32>
    %92 = math.tanh %91 : vector<1x128xf32>
    %93 = arith.mulf %89, %52 : vector<1x128xf32>
    %94 = arith.mulf %88, %92 : vector<1x128xf32>
    %95 = arith.addf %93, %94 : vector<1x128xf32>
    %96 = math.tanh %95 : vector<1x128xf32>
    %97 = arith.mulf %90, %96 : vector<1x128xf32>
    %98 = vector.extract_strided_slice %78 {offsets = [0, 0], sizes = [1, 384], strides = [1, 1]} : vector<1x512xf32> to vector<1x384xf32>
    %99 = arith.negf %98 : vector<1x384xf32>
    %100 = math.exp %99 : vector<1x384xf32>
    %cst_28 = arith.constant 1.000000e+00 : f32
    %101 = vector.broadcast %cst_28 : f32 to vector<1x384xf32>
    %102 = arith.addf %101, %100 : vector<1x384xf32>
    %103 = arith.divf %101, %102 : vector<1x384xf32>
    %104 = vector.extract_strided_slice %103 {offsets = [0, 0], sizes = [1, 128], strides = [1, 1]} : vector<1x384xf32> to vector<1x128xf32>
    %105 = vector.extract_strided_slice %103 {offsets = [0, 128], sizes = [1, 128], strides = [1, 1]} : vector<1x384xf32> to vector<1x128xf32>
    %106 = vector.extract_strided_slice %103 {offsets = [0, 256], sizes = [1, 128], strides = [1, 1]} : vector<1x384xf32> to vector<1x128xf32>
    %107 = vector.extract_strided_slice %78 {offsets = [0, 384], sizes = [1, 128], strides = [1, 1]} : vector<1x512xf32> to vector<1x128xf32>
    %108 = math.tanh %107 : vector<1x128xf32>
    %109 = arith.mulf %105, %68 : vector<1x128xf32>
    %110 = arith.mulf %104, %108 : vector<1x128xf32>
    %111 = arith.addf %109, %110 : vector<1x128xf32>
    %112 = math.tanh %111 : vector<1x128xf32>
    %113 = arith.mulf %106, %112 : vector<1x128xf32>
    %c3_i32 = arith.constant 3 : i32
    %114 = tpu.concatenate %113, %97 in 1 : vector<1x128xf32>, vector<1x128xf32> -> vector<1x256xf32>
    %115 = arith.truncf %114 : vector<1x256xf32> to vector<1x256xbf16>
    %c0_29 = arith.constant 0 : index
    %c0_30 = arith.constant 0 : index
    %116 = vector.load %arg2[%c0_29, %c0_30] : memref<256x1024xbf16, #tpu.memory_space<vmem>>, vector<256x1024xbf16>
    %cst_31 = arith.constant dense<0.000000e+00> : vector<1x1024xf32>
    %117 = tpu.matmul %115, %116, %cst_31 {dimension_numbers = #tpu.dot_dimension_numbers<[1], [0], [0], [1], [0, 0, 1, 1], [], []>} : vector<1x256xbf16>, vector<256x1024xbf16>, vector<1x1024xf32> -> vector<1x1024xf32>
    %118 = arith.index_cast %c3_i32 : i32 to index
    %c0_32 = arith.constant 0 : index
    %119 = vector.load %arg8[%118, %c0_32] : memref<8x512xf32, #tpu.memory_space<vmem>>, vector<1x512xf32>
    %120 = vector.extract_strided_slice %117 {offsets = [0, 0], sizes = [1, 512], strides = [1, 1]} : vector<1x1024xf32> to vector<1x512xf32>
    %121 = arith.addf %119, %120 : vector<1x512xf32>
    %122 = vector.extract_strided_slice %117 {offsets = [0, 512], sizes = [1, 512], strides = [1, 1]} : vector<1x1024xf32> to vector<1x512xf32>
    %c0_33 = arith.constant 0 : index
    %c0_34 = arith.constant 0 : index
    %123 = vector.load %arg4[%c0_33, %c0_34] : memref<1x512xf32, #tpu.memory_space<vmem>>, vector<1x512xf32>
    %124 = arith.addf %122, %123 : vector<1x512xf32>
    %125 = vector.extract_strided_slice %124 {offsets = [0, 0], sizes = [1, 384], strides = [1, 1]} : vector<1x512xf32> to vector<1x384xf32>
    %126 = arith.negf %125 : vector<1x384xf32>
    %127 = math.exp %126 : vector<1x384xf32>
    %cst_35 = arith.constant 1.000000e+00 : f32
    %128 = vector.broadcast %cst_35 : f32 to vector<1x384xf32>
    %129 = arith.addf %128, %127 : vector<1x384xf32>
    %130 = arith.divf %128, %129 : vector<1x384xf32>
    %131 = vector.extract_strided_slice %130 {offsets = [0, 0], sizes = [1, 128], strides = [1, 1]} : vector<1x384xf32> to vector<1x128xf32>
    %132 = vector.extract_strided_slice %130 {offsets = [0, 128], sizes = [1, 128], strides = [1, 1]} : vector<1x384xf32> to vector<1x128xf32>
    %133 = vector.extract_strided_slice %130 {offsets = [0, 256], sizes = [1, 128], strides = [1, 1]} : vector<1x384xf32> to vector<1x128xf32>
    %134 = vector.extract_strided_slice %124 {offsets = [0, 384], sizes = [1, 128], strides = [1, 1]} : vector<1x512xf32> to vector<1x128xf32>
    %135 = math.tanh %134 : vector<1x128xf32>
    %136 = arith.mulf %132, %95 : vector<1x128xf32>
    %137 = arith.mulf %131, %135 : vector<1x128xf32>
    %138 = arith.addf %136, %137 : vector<1x128xf32>
    %139 = math.tanh %138 : vector<1x128xf32>
    %140 = arith.mulf %133, %139 : vector<1x128xf32>
    %141 = vector.extract_strided_slice %121 {offsets = [0, 0], sizes = [1, 384], strides = [1, 1]} : vector<1x512xf32> to vector<1x384xf32>
    %142 = arith.negf %141 : vector<1x384xf32>
    %143 = math.exp %142 : vector<1x384xf32>
    %cst_36 = arith.constant 1.000000e+00 : f32
    %144 = vector.broadcast %cst_36 : f32 to vector<1x384xf32>
    %145 = arith.addf %144, %143 : vector<1x384xf32>
    %146 = arith.divf %144, %145 : vector<1x384xf32>
    %147 = vector.extract_strided_slice %146 {offsets = [0, 0], sizes = [1, 128], strides = [1, 1]} : vector<1x384xf32> to vector<1x128xf32>
    %148 = vector.extract_strided_slice %146 {offsets = [0, 128], sizes = [1, 128], strides = [1, 1]} : vector<1x384xf32> to vector<1x128xf32>
    %149 = vector.extract_strided_slice %146 {offsets = [0, 256], sizes = [1, 128], strides = [1, 1]} : vector<1x384xf32> to vector<1x128xf32>
    %150 = vector.extract_strided_slice %121 {offsets = [0, 384], sizes = [1, 128], strides = [1, 1]} : vector<1x512xf32> to vector<1x128xf32>
    %151 = math.tanh %150 : vector<1x128xf32>
    %152 = arith.mulf %148, %111 : vector<1x128xf32>
    %153 = arith.mulf %147, %151 : vector<1x128xf32>
    %154 = arith.addf %152, %153 : vector<1x128xf32>
    %155 = math.tanh %154 : vector<1x128xf32>
    %156 = arith.mulf %149, %155 : vector<1x128xf32>
    %c4_i32 = arith.constant 4 : i32
    %157 = tpu.concatenate %156, %140 in 1 : vector<1x128xf32>, vector<1x128xf32> -> vector<1x256xf32>
    %158 = arith.truncf %157 : vector<1x256xf32> to vector<1x256xbf16>
    %c0_37 = arith.constant 0 : index
    %c0_38 = arith.constant 0 : index
    %159 = vector.load %arg2[%c0_37, %c0_38] : memref<256x1024xbf16, #tpu.memory_space<vmem>>, vector<256x1024xbf16>
    %cst_39 = arith.constant dense<0.000000e+00> : vector<1x1024xf32>
    %160 = tpu.matmul %158, %159, %cst_39 {dimension_numbers = #tpu.dot_dimension_numbers<[1], [0], [0], [1], [0, 0, 1, 1], [], []>} : vector<1x256xbf16>, vector<256x1024xbf16>, vector<1x1024xf32> -> vector<1x1024xf32>
    %161 = arith.index_cast %c4_i32 : i32 to index
    %c0_40 = arith.constant 0 : index
    %162 = vector.load %arg8[%161, %c0_40] : memref<8x512xf32, #tpu.memory_space<vmem>>, vector<1x512xf32>
    %163 = vector.extract_strided_slice %160 {offsets = [0, 0], sizes = [1, 512], strides = [1, 1]} : vector<1x1024xf32> to vector<1x512xf32>
    %164 = arith.addf %162, %163 : vector<1x512xf32>
    %165 = vector.extract_strided_slice %160 {offsets = [0, 512], sizes = [1, 512], strides = [1, 1]} : vector<1x1024xf32> to vector<1x512xf32>
    %c0_41 = arith.constant 0 : index
    %c0_42 = arith.constant 0 : index
    %166 = vector.load %arg4[%c0_41, %c0_42] : memref<1x512xf32, #tpu.memory_space<vmem>>, vector<1x512xf32>
    %167 = arith.addf %165, %166 : vector<1x512xf32>
    %168 = vector.extract_strided_slice %167 {offsets = [0, 0], sizes = [1, 384], strides = [1, 1]} : vector<1x512xf32> to vector<1x384xf32>
    %169 = arith.negf %168 : vector<1x384xf32>
    %170 = math.exp %169 : vector<1x384xf32>
    %cst_43 = arith.constant 1.000000e+00 : f32
    %171 = vector.broadcast %cst_43 : f32 to vector<1x384xf32>
    %172 = arith.addf %171, %170 : vector<1x384xf32>
    %173 = arith.divf %171, %172 : vector<1x384xf32>
    %174 = vector.extract_strided_slice %173 {offsets = [0, 0], sizes = [1, 128], strides = [1, 1]} : vector<1x384xf32> to vector<1x128xf32>
    %175 = vector.extract_strided_slice %173 {offsets = [0, 128], sizes = [1, 128], strides = [1, 1]} : vector<1x384xf32> to vector<1x128xf32>
    %176 = vector.extract_strided_slice %173 {offsets = [0, 256], sizes = [1, 128], strides = [1, 1]} : vector<1x384xf32> to vector<1x128xf32>
    %177 = vector.extract_strided_slice %167 {offsets = [0, 384], sizes = [1, 128], strides = [1, 1]} : vector<1x512xf32> to vector<1x128xf32>
    %178 = math.tanh %177 : vector<1x128xf32>
    %179 = arith.mulf %175, %138 : vector<1x128xf32>
    %180 = arith.mulf %174, %178 : vector<1x128xf32>
    %181 = arith.addf %179, %180 : vector<1x128xf32>
    %182 = math.tanh %181 : vector<1x128xf32>
    %183 = arith.mulf %176, %182 : vector<1x128xf32>
    %184 = vector.extract_strided_slice %164 {offsets = [0, 0], sizes = [1, 384], strides = [1, 1]} : vector<1x512xf32> to vector<1x384xf32>
    %185 = arith.negf %184 : vector<1x384xf32>
    %186 = math.exp %185 : vector<1x384xf32>
    %cst_44 = arith.constant 1.000000e+00 : f32
    %187 = vector.broadcast %cst_44 : f32 to vector<1x384xf32>
    %188 = arith.addf %187, %186 : vector<1x384xf32>
    %189 = arith.divf %187, %188 : vector<1x384xf32>
    %190 = vector.extract_strided_slice %189 {offsets = [0, 0], sizes = [1, 128], strides = [1, 1]} : vector<1x384xf32> to vector<1x128xf32>
    %191 = vector.extract_strided_slice %189 {offsets = [0, 128], sizes = [1, 128], strides = [1, 1]} : vector<1x384xf32> to vector<1x128xf32>
    %192 = vector.extract_strided_slice %189 {offsets = [0, 256], sizes = [1, 128], strides = [1, 1]} : vector<1x384xf32> to vector<1x128xf32>
    %193 = vector.extract_strided_slice %164 {offsets = [0, 384], sizes = [1, 128], strides = [1, 1]} : vector<1x512xf32> to vector<1x128xf32>
    %194 = math.tanh %193 : vector<1x128xf32>
    %195 = arith.mulf %191, %154 : vector<1x128xf32>
    %196 = arith.mulf %190, %194 : vector<1x128xf32>
    %197 = arith.addf %195, %196 : vector<1x128xf32>
    %198 = math.tanh %197 : vector<1x128xf32>
    %199 = arith.mulf %192, %198 : vector<1x128xf32>
    %c5_i32 = arith.constant 5 : i32
    %200 = tpu.concatenate %199, %183 in 1 : vector<1x128xf32>, vector<1x128xf32> -> vector<1x256xf32>
    %201 = arith.truncf %200 : vector<1x256xf32> to vector<1x256xbf16>
    %c0_45 = arith.constant 0 : index
    %c0_46 = arith.constant 0 : index
    %202 = vector.load %arg2[%c0_45, %c0_46] : memref<256x1024xbf16, #tpu.memory_space<vmem>>, vector<256x1024xbf16>
    %cst_47 = arith.constant dense<0.000000e+00> : vector<1x1024xf32>
    %203 = tpu.matmul %201, %202, %cst_47 {dimension_numbers = #tpu.dot_dimension_numbers<[1], [0], [0], [1], [0, 0, 1, 1], [], []>} : vector<1x256xbf16>, vector<256x1024xbf16>, vector<1x1024xf32> -> vector<1x1024xf32>
    %204 = arith.index_cast %c5_i32 : i32 to index
    %c0_48 = arith.constant 0 : index
    %205 = vector.load %arg8[%204, %c0_48] : memref<8x512xf32, #tpu.memory_space<vmem>>, vector<1x512xf32>
    %206 = vector.extract_strided_slice %203 {offsets = [0, 0], sizes = [1, 512], strides = [1, 1]} : vector<1x1024xf32> to vector<1x512xf32>
    %207 = arith.addf %205, %206 : vector<1x512xf32>
    %208 = vector.extract_strided_slice %203 {offsets = [0, 512], sizes = [1, 512], strides = [1, 1]} : vector<1x1024xf32> to vector<1x512xf32>
    %c0_49 = arith.constant 0 : index
    %c0_50 = arith.constant 0 : index
    %209 = vector.load %arg4[%c0_49, %c0_50] : memref<1x512xf32, #tpu.memory_space<vmem>>, vector<1x512xf32>
    %210 = arith.addf %208, %209 : vector<1x512xf32>
    %211 = vector.extract_strided_slice %210 {offsets = [0, 0], sizes = [1, 384], strides = [1, 1]} : vector<1x512xf32> to vector<1x384xf32>
    %212 = arith.negf %211 : vector<1x384xf32>
    %213 = math.exp %212 : vector<1x384xf32>
    %cst_51 = arith.constant 1.000000e+00 : f32
    %214 = vector.broadcast %cst_51 : f32 to vector<1x384xf32>
    %215 = arith.addf %214, %213 : vector<1x384xf32>
    %216 = arith.divf %214, %215 : vector<1x384xf32>
    %217 = vector.extract_strided_slice %216 {offsets = [0, 0], sizes = [1, 128], strides = [1, 1]} : vector<1x384xf32> to vector<1x128xf32>
    %218 = vector.extract_strided_slice %216 {offsets = [0, 128], sizes = [1, 128], strides = [1, 1]} : vector<1x384xf32> to vector<1x128xf32>
    %219 = vector.extract_strided_slice %216 {offsets = [0, 256], sizes = [1, 128], strides = [1, 1]} : vector<1x384xf32> to vector<1x128xf32>
    %220 = vector.extract_strided_slice %210 {offsets = [0, 384], sizes = [1, 128], strides = [1, 1]} : vector<1x512xf32> to vector<1x128xf32>
    %221 = math.tanh %220 : vector<1x128xf32>
    %222 = arith.mulf %218, %181 : vector<1x128xf32>
    %223 = arith.mulf %217, %221 : vector<1x128xf32>
    %224 = arith.addf %222, %223 : vector<1x128xf32>
    %225 = math.tanh %224 : vector<1x128xf32>
    %226 = arith.mulf %219, %225 : vector<1x128xf32>
    %227 = vector.extract_strided_slice %207 {offsets = [0, 0], sizes = [1, 384], strides = [1, 1]} : vector<1x512xf32> to vector<1x384xf32>
    %228 = arith.negf %227 : vector<1x384xf32>
    %229 = math.exp %228 : vector<1x384xf32>
    %cst_52 = arith.constant 1.000000e+00 : f32
    %230 = vector.broadcast %cst_52 : f32 to vector<1x384xf32>
    %231 = arith.addf %230, %229 : vector<1x384xf32>
    %232 = arith.divf %230, %231 : vector<1x384xf32>
    %233 = vector.extract_strided_slice %232 {offsets = [0, 0], sizes = [1, 128], strides = [1, 1]} : vector<1x384xf32> to vector<1x128xf32>
    %234 = vector.extract_strided_slice %232 {offsets = [0, 128], sizes = [1, 128], strides = [1, 1]} : vector<1x384xf32> to vector<1x128xf32>
    %235 = vector.extract_strided_slice %232 {offsets = [0, 256], sizes = [1, 128], strides = [1, 1]} : vector<1x384xf32> to vector<1x128xf32>
    %236 = vector.extract_strided_slice %207 {offsets = [0, 384], sizes = [1, 128], strides = [1, 1]} : vector<1x512xf32> to vector<1x128xf32>
    %237 = math.tanh %236 : vector<1x128xf32>
    %238 = arith.mulf %234, %197 : vector<1x128xf32>
    %239 = arith.mulf %233, %237 : vector<1x128xf32>
    %240 = arith.addf %238, %239 : vector<1x128xf32>
    %241 = math.tanh %240 : vector<1x128xf32>
    %242 = arith.mulf %235, %241 : vector<1x128xf32>
    %c6_i32 = arith.constant 6 : i32
    %243 = tpu.concatenate %242, %226 in 1 : vector<1x128xf32>, vector<1x128xf32> -> vector<1x256xf32>
    %244 = arith.truncf %243 : vector<1x256xf32> to vector<1x256xbf16>
    %c0_53 = arith.constant 0 : index
    %c0_54 = arith.constant 0 : index
    %245 = vector.load %arg2[%c0_53, %c0_54] : memref<256x1024xbf16, #tpu.memory_space<vmem>>, vector<256x1024xbf16>
    %cst_55 = arith.constant dense<0.000000e+00> : vector<1x1024xf32>
    %246 = tpu.matmul %244, %245, %cst_55 {dimension_numbers = #tpu.dot_dimension_numbers<[1], [0], [0], [1], [0, 0, 1, 1], [], []>} : vector<1x256xbf16>, vector<256x1024xbf16>, vector<1x1024xf32> -> vector<1x1024xf32>
    %247 = arith.index_cast %c6_i32 : i32 to index
    %c0_56 = arith.constant 0 : index
    %248 = vector.load %arg8[%247, %c0_56] : memref<8x512xf32, #tpu.memory_space<vmem>>, vector<1x512xf32>
    %249 = vector.extract_strided_slice %246 {offsets = [0, 0], sizes = [1, 512], strides = [1, 1]} : vector<1x1024xf32> to vector<1x512xf32>
    %250 = arith.addf %248, %249 : vector<1x512xf32>
    %251 = vector.extract_strided_slice %246 {offsets = [0, 512], sizes = [1, 512], strides = [1, 1]} : vector<1x1024xf32> to vector<1x512xf32>
    %c0_57 = arith.constant 0 : index
    %c0_58 = arith.constant 0 : index
    %252 = vector.load %arg4[%c0_57, %c0_58] : memref<1x512xf32, #tpu.memory_space<vmem>>, vector<1x512xf32>
    %253 = arith.addf %251, %252 : vector<1x512xf32>
    %254 = vector.extract_strided_slice %253 {offsets = [0, 0], sizes = [1, 384], strides = [1, 1]} : vector<1x512xf32> to vector<1x384xf32>
    %255 = arith.negf %254 : vector<1x384xf32>
    %256 = math.exp %255 : vector<1x384xf32>
    %cst_59 = arith.constant 1.000000e+00 : f32
    %257 = vector.broadcast %cst_59 : f32 to vector<1x384xf32>
    %258 = arith.addf %257, %256 : vector<1x384xf32>
    %259 = arith.divf %257, %258 : vector<1x384xf32>
    %260 = vector.extract_strided_slice %259 {offsets = [0, 0], sizes = [1, 128], strides = [1, 1]} : vector<1x384xf32> to vector<1x128xf32>
    %261 = vector.extract_strided_slice %259 {offsets = [0, 128], sizes = [1, 128], strides = [1, 1]} : vector<1x384xf32> to vector<1x128xf32>
    %262 = vector.extract_strided_slice %259 {offsets = [0, 256], sizes = [1, 128], strides = [1, 1]} : vector<1x384xf32> to vector<1x128xf32>
    %263 = vector.extract_strided_slice %253 {offsets = [0, 384], sizes = [1, 128], strides = [1, 1]} : vector<1x512xf32> to vector<1x128xf32>
    %264 = math.tanh %263 : vector<1x128xf32>
    %265 = arith.mulf %261, %224 : vector<1x128xf32>
    %266 = arith.mulf %260, %264 : vector<1x128xf32>
    %267 = arith.addf %265, %266 : vector<1x128xf32>
    %268 = math.tanh %267 : vector<1x128xf32>
    %269 = arith.mulf %262, %268 : vector<1x128xf32>
    %270 = vector.extract_strided_slice %250 {offsets = [0, 0], sizes = [1, 384], strides = [1, 1]} : vector<1x512xf32> to vector<1x384xf32>
    %271 = arith.negf %270 : vector<1x384xf32>
    %272 = math.exp %271 : vector<1x384xf32>
    %cst_60 = arith.constant 1.000000e+00 : f32
    %273 = vector.broadcast %cst_60 : f32 to vector<1x384xf32>
    %274 = arith.addf %273, %272 : vector<1x384xf32>
    %275 = arith.divf %273, %274 : vector<1x384xf32>
    %276 = vector.extract_strided_slice %275 {offsets = [0, 0], sizes = [1, 128], strides = [1, 1]} : vector<1x384xf32> to vector<1x128xf32>
    %277 = vector.extract_strided_slice %275 {offsets = [0, 128], sizes = [1, 128], strides = [1, 1]} : vector<1x384xf32> to vector<1x128xf32>
    %278 = vector.extract_strided_slice %275 {offsets = [0, 256], sizes = [1, 128], strides = [1, 1]} : vector<1x384xf32> to vector<1x128xf32>
    %279 = vector.extract_strided_slice %250 {offsets = [0, 384], sizes = [1, 128], strides = [1, 1]} : vector<1x512xf32> to vector<1x128xf32>
    %280 = math.tanh %279 : vector<1x128xf32>
    %281 = arith.mulf %277, %240 : vector<1x128xf32>
    %282 = arith.mulf %276, %280 : vector<1x128xf32>
    %283 = arith.addf %281, %282 : vector<1x128xf32>
    %284 = math.tanh %283 : vector<1x128xf32>
    %285 = arith.mulf %278, %284 : vector<1x128xf32>
    %c7_i32 = arith.constant 7 : i32
    %286 = tpu.concatenate %285, %269 in 1 : vector<1x128xf32>, vector<1x128xf32> -> vector<1x256xf32>
    %287 = arith.truncf %286 : vector<1x256xf32> to vector<1x256xbf16>
    %c0_61 = arith.constant 0 : index
    %c0_62 = arith.constant 0 : index
    %288 = vector.load %arg2[%c0_61, %c0_62] : memref<256x1024xbf16, #tpu.memory_space<vmem>>, vector<256x1024xbf16>
    %cst_63 = arith.constant dense<0.000000e+00> : vector<1x1024xf32>
    %289 = tpu.matmul %287, %288, %cst_63 {dimension_numbers = #tpu.dot_dimension_numbers<[1], [0], [0], [1], [0, 0, 1, 1], [], []>} : vector<1x256xbf16>, vector<256x1024xbf16>, vector<1x1024xf32> -> vector<1x1024xf32>
    %290 = arith.index_cast %c7_i32 : i32 to index
    %c0_64 = arith.constant 0 : index
    %291 = vector.load %arg8[%290, %c0_64] : memref<8x512xf32, #tpu.memory_space<vmem>>, vector<1x512xf32>
    %292 = vector.extract_strided_slice %289 {offsets = [0, 0], sizes = [1, 512], strides = [1, 1]} : vector<1x1024xf32> to vector<1x512xf32>
    %293 = arith.addf %291, %292 : vector<1x512xf32>
    %294 = vector.extract_strided_slice %289 {offsets = [0, 512], sizes = [1, 512], strides = [1, 1]} : vector<1x1024xf32> to vector<1x512xf32>
    %c0_65 = arith.constant 0 : index
    %c0_66 = arith.constant 0 : index
    %295 = vector.load %arg4[%c0_65, %c0_66] : memref<1x512xf32, #tpu.memory_space<vmem>>, vector<1x512xf32>
    %296 = arith.addf %294, %295 : vector<1x512xf32>
    %297 = vector.extract_strided_slice %296 {offsets = [0, 0], sizes = [1, 384], strides = [1, 1]} : vector<1x512xf32> to vector<1x384xf32>
    %298 = arith.negf %297 : vector<1x384xf32>
    %299 = math.exp %298 : vector<1x384xf32>
    %cst_67 = arith.constant 1.000000e+00 : f32
    %300 = vector.broadcast %cst_67 : f32 to vector<1x384xf32>
    %301 = arith.addf %300, %299 : vector<1x384xf32>
    %302 = arith.divf %300, %301 : vector<1x384xf32>
    %303 = vector.extract_strided_slice %302 {offsets = [0, 0], sizes = [1, 128], strides = [1, 1]} : vector<1x384xf32> to vector<1x128xf32>
    %304 = vector.extract_strided_slice %302 {offsets = [0, 128], sizes = [1, 128], strides = [1, 1]} : vector<1x384xf32> to vector<1x128xf32>
    %305 = vector.extract_strided_slice %302 {offsets = [0, 256], sizes = [1, 128], strides = [1, 1]} : vector<1x384xf32> to vector<1x128xf32>
    %306 = vector.extract_strided_slice %296 {offsets = [0, 384], sizes = [1, 128], strides = [1, 1]} : vector<1x512xf32> to vector<1x128xf32>
    %307 = math.tanh %306 : vector<1x128xf32>
    %308 = arith.mulf %304, %267 : vector<1x128xf32>
    %309 = arith.mulf %303, %307 : vector<1x128xf32>
    %310 = arith.addf %308, %309 : vector<1x128xf32>
    %311 = math.tanh %310 : vector<1x128xf32>
    %312 = arith.mulf %305, %311 : vector<1x128xf32>
    %313 = vector.extract_strided_slice %293 {offsets = [0, 0], sizes = [1, 384], strides = [1, 1]} : vector<1x512xf32> to vector<1x384xf32>
    %314 = arith.negf %313 : vector<1x384xf32>
    %315 = math.exp %314 : vector<1x384xf32>
    %cst_68 = arith.constant 1.000000e+00 : f32
    %316 = vector.broadcast %cst_68 : f32 to vector<1x384xf32>
    %317 = arith.addf %316, %315 : vector<1x384xf32>
    %318 = arith.divf %316, %317 : vector<1x384xf32>
    %319 = vector.extract_strided_slice %318 {offsets = [0, 0], sizes = [1, 128], strides = [1, 1]} : vector<1x384xf32> to vector<1x128xf32>
    %320 = vector.extract_strided_slice %318 {offsets = [0, 128], sizes = [1, 128], strides = [1, 1]} : vector<1x384xf32> to vector<1x128xf32>
    %321 = vector.extract_strided_slice %318 {offsets = [0, 256], sizes = [1, 128], strides = [1, 1]} : vector<1x384xf32> to vector<1x128xf32>
    %322 = vector.extract_strided_slice %293 {offsets = [0, 384], sizes = [1, 128], strides = [1, 1]} : vector<1x512xf32> to vector<1x128xf32>
    %323 = math.tanh %322 : vector<1x128xf32>
    %324 = arith.mulf %320, %283 : vector<1x128xf32>
    %325 = arith.mulf %319, %323 : vector<1x128xf32>
    %326 = arith.addf %324, %325 : vector<1x128xf32>
    %327 = math.tanh %326 : vector<1x128xf32>
    %328 = arith.mulf %321, %327 : vector<1x128xf32>
    %c7_i32_69 = arith.constant 7 : i32
    %329 = tpu.concatenate %328, %312 in 1 : vector<1x128xf32>, vector<1x128xf32> -> vector<1x256xf32>
    %330 = arith.truncf %329 : vector<1x256xf32> to vector<1x256xbf16>
    %c0_70 = arith.constant 0 : index
    %c512 = arith.constant 512 : index
    %331 = vector.load %arg2[%c0_70, %c512] : memref<256x1024xbf16, #tpu.memory_space<vmem>>, vector<256x512xbf16>
    %cst_71 = arith.constant dense<0.000000e+00> : vector<1x512xf32>
    %332 = tpu.matmul %330, %331, %cst_71 {dimension_numbers = #tpu.dot_dimension_numbers<[1], [0], [0], [1], [0, 0, 1, 1], [], []>} : vector<1x256xbf16>, vector<256x512xbf16>, vector<1x512xf32> -> vector<1x512xf32>
    %c0_72 = arith.constant 0 : index
    %c0_73 = arith.constant 0 : index
    %333 = vector.load %arg4[%c0_72, %c0_73] : memref<1x512xf32, #tpu.memory_space<vmem>>, vector<1x512xf32>
    %334 = arith.addf %332, %333 : vector<1x512xf32>
    %335 = vector.extract_strided_slice %334 {offsets = [0, 0], sizes = [1, 384], strides = [1, 1]} : vector<1x512xf32> to vector<1x384xf32>
    %336 = arith.negf %335 : vector<1x384xf32>
    %337 = math.exp %336 : vector<1x384xf32>
    %cst_74 = arith.constant 1.000000e+00 : f32
    %338 = vector.broadcast %cst_74 : f32 to vector<1x384xf32>
    %339 = arith.addf %338, %337 : vector<1x384xf32>
    %340 = arith.divf %338, %339 : vector<1x384xf32>
    %341 = vector.extract_strided_slice %340 {offsets = [0, 0], sizes = [1, 128], strides = [1, 1]} : vector<1x384xf32> to vector<1x128xf32>
    %342 = vector.extract_strided_slice %340 {offsets = [0, 128], sizes = [1, 128], strides = [1, 1]} : vector<1x384xf32> to vector<1x128xf32>
    %343 = vector.extract_strided_slice %340 {offsets = [0, 256], sizes = [1, 128], strides = [1, 1]} : vector<1x384xf32> to vector<1x128xf32>
    %344 = vector.extract_strided_slice %334 {offsets = [0, 384], sizes = [1, 128], strides = [1, 1]} : vector<1x512xf32> to vector<1x128xf32>
    %345 = math.tanh %344 : vector<1x128xf32>
    %346 = arith.mulf %342, %310 : vector<1x128xf32>
    %347 = arith.mulf %341, %345 : vector<1x128xf32>
    %348 = arith.addf %346, %347 : vector<1x128xf32>
    %349 = math.tanh %348 : vector<1x128xf32>
    %350 = arith.mulf %343, %349 : vector<1x128xf32>
    %c0_75 = arith.constant 0 : index
    %c0_76 = arith.constant 0 : index
    %351 = vector.load %arg5[%c0_75, %c0_76] : memref<128x16xf32, #tpu.memory_space<vmem>>, vector<128x16xf32>
    %cst_77 = arith.constant dense<0.000000e+00> : vector<1x16xf32>
    %352 = tpu.matmul %350, %351, %cst_77 {dimension_numbers = #tpu.dot_dimension_numbers<[1], [0], [0], [1], [0, 0, 1, 1], [], []>} : vector<1x128xf32>, vector<128x16xf32>, vector<1x16xf32> -> vector<1x16xf32>
    %c0_78 = arith.constant 0 : index
    %c0_79 = arith.constant 0 : index
    %353 = vector.load %arg6[%c0_78, %c0_79] : memref<1x16xf32, #tpu.memory_space<vmem>>, vector<1x16xf32>
    %354 = arith.addf %352, %353 : vector<1x16xf32>
    %c0_80 = arith.constant 0 : index
    %c0_81 = arith.constant 0 : index
    %355 = vector.load %arg7[%c0_80, %c0_81] : memref<1x16xf32, #tpu.memory_space<vmem>>, vector<1x16xf32>
    tpu.vector_store %arg7[%c0_80, %c0_81], %354 {strides = array<i32>} : memref<1x16xf32, #tpu.memory_space<vmem>>, vector<1x16xf32>,
    return
  }
}

</mosaic_0001>

<llo_original>
// kernel: lstm_forward.1
$region0: #{lstm_forward.1}
  #allocation0 [shape = 'u32[]', space=smem, size = 0x4, offset = 0x4, fixed_abs, tag = 'smem constant byte address 0x4 - core index']
  #allocation1 [shape = 'u32[144,128]{1,0:T(1,128)}', space=vmem, size = 0x12000, scoped, tag = 'internal scratch']
  #allocation2 [shape = 'f32[8,512]{1,0:T(8,128)}', space=vmem, size = 0x4000, scoped, tag = 'scratch operand']
  %s0 = inlined_call_operand.vmem [shape: f32[8,128], index: 0, kind: input, shape index: {}]
  %s1 = inlined_call_operand.hbm [shape: bf16[128,512], index: 1, kind: input, shape index: {}]
  %s2 = inlined_call_operand.hbm [shape: bf16[256,1024], index: 2, kind: input, shape index: {}]
  %s3 = inlined_call_operand.vmem [shape: f32[1,512], index: 3, kind: input, shape index: {}]
  %s4 = inlined_call_operand.vmem [shape: f32[1,512], index: 4, kind: input, shape index: {}]
  %s5 = inlined_call_operand.vmem [shape: f32[128,16], index: 5, kind: input, shape index: {}]
  %s6 = inlined_call_operand.vmem [shape: f32[1,16], index: 6, kind: input, shape index: {}]
  %s7 = inlined_call_operand.hbm [shape: f32[1,16], index: 7, kind: output, shape index: {}]
  %s8 = sld [smem:[#allocation0]]
  $region46: #{lstm_forward.1} parent=0
    _
  %s10 = ssub.s32 1, %s8
  %s11 = scalar_select 0, %s10, %s8
  $region1: #{lstm_forward.1} parent=0
    #allocation3 [shape = 'u8[131072]{0}', space=vmem, size = 0x20000, scoped, tag = 'input window, operand 1, single buffered']
    #allocation4 [shape = 's32[1]{0}', space=sflag, size = 0x4, scoped, tag = 'scoped memory for lstm_forward.1']
    #allocation5 [shape = 's32[1]{0}', space=sflag, size = 0x4, scoped, tag = 'scoped memory for lstm_forward.1']
    #allocation6 [shape = 'u8[524288]{0}', space=vmem, size = 0x80000, scoped, tag = 'input window, operand 2, single buffered']
    #allocation7 [shape = 's32[1]{0}', space=sflag, size = 0x4, scoped, tag = 'scoped memory for lstm_forward.1']
    #allocation8 [shape = 'u8[512]{0}', space=vmem, size = 0x400, scoped, tag = 'output window, operand 0, single buffered']
    %12 = vsyncpa [#allocation4], 0
    %13 = vsyncpa [#allocation7], 0
    %14 = vsyncpa [#allocation5], 0
    // Predicated region
    $region2: #{lstm_forward.1} parent=1 // pred_check
      _
    $region3: #{lstm_forward.1} parent=1 // pred_check_branch
      %16 = sbr.rel (0) target = $region5
    $region4: #{lstm_forward.1} parent=1 // pred_region
      _
    $region5: #{lstm_forward.1} parent=1 // pred_fallthru
      _
    // Predicated region
    $region6: #{lstm_forward.1} parent=1 // pred_check
      _
    $region7: #{lstm_forward.1} parent=1 // pred_check_branch
      %18 = sbr.rel (0) target = $region9
    $region8: #{lstm_forward.1} parent=1 // pred_region
      %s20 = ssub.s32 4096, 4096
      %21 = vsyncadd [#allocation4], %s20
      %s22 = sshll.u32 [#allocation3], 4
      %s23 = int_to_ptr.vmem [resolvable:$true] %s22
      %28 = dma.hbm_to_vmem [thread:$0]  %s1, 4096, %s23, [#allocation4], 256, 256, 16
    $region9: #{lstm_forward.1} parent=1 // pred_fallthru
      _
    // Predicated region
    $region10: #{lstm_forward.1} parent=1 // pred_check
      _
    $region11: #{lstm_forward.1} parent=1 // pred_check_branch
      %30 = sbr.rel (0) target = $region13
    $region12: #{lstm_forward.1} parent=1 // pred_region
      %s32 = ssub.s32 16384, 16384
      %33 = vsyncadd [#allocation7], %s32
      %s34 = sshll.u32 [#allocation6], 4
      %s35 = int_to_ptr.vmem [resolvable:$true] %s34
      %40 = dma.hbm_to_vmem [thread:$0]  %s2, 16384, %s35, [#allocation7], 512, 512, 32
    $region13: #{lstm_forward.1} parent=1 // pred_fallthru
      _
    // Predicated region
    $region14: #{lstm_forward.1} parent=1 // pred_check
      _
    $region15: #{lstm_forward.1} parent=1 // pred_check_branch
      %42 = sbr.rel (0) target = $region17
    $region16: #{lstm_forward.1} parent=1 // pred_region
      _
    $region17: #{lstm_forward.1} parent=1 // pred_fallthru
      _
    // Predicated region
    $region18: #{lstm_forward.1} parent=1 // pred_check
      _
    $region19: #{lstm_forward.1} parent=1 // pred_check_branch
      %44 = sbr.rel (0) target = $region21
    $region20: #{lstm_forward.1} parent=1 // pred_region
      _
    $region21: #{lstm_forward.1} parent=1 // pred_fallthru
      _
    // Predicated region
    $region22: #{lstm_forward.1} parent=1 // pred_check
      _
    $region23: #{lstm_forward.1} parent=1 // pred_check_branch
      %46 = sbr.rel (0) target = $region25
    $region24: #{lstm_forward.1} parent=1 // pred_region
      _
    $region25: #{lstm_forward.1} parent=1 // pred_fallthru
      _
    // Predicated region
    $region26: #{lstm_forward.1} parent=1 // pred_check
      _
    $region27: #{lstm_forward.1} parent=1 // pred_check_branch
      %48 = sbr.rel (0) target = $region29
    $region28: #{lstm_forward.1} parent=1 // pred_region
      _
    $region29: #{lstm_forward.1} parent=1 // pred_fallthru
      _
    // Predicated region
    $region30: #{lstm_forward.1} parent=1 // pred_check
      _
    $region31: #{lstm_forward.1} parent=1 // pred_check_branch
      %50 = sbr.rel (0) target = $region33
    $region32: #{lstm_forward.1} parent=1 // pred_region
      %51 = dma.done [#allocation4], 4096
    $region33: #{lstm_forward.1} parent=1 // pred_fallthru
      _
    // Predicated region
    $region34: #{lstm_forward.1} parent=1 // pred_check
      _
    $region35: #{lstm_forward.1} parent=1 // pred_check_branch
      %53 = sbr.rel (0) target = $region37
    $region36: #{lstm_forward.1} parent=1 // pred_region
      %54 = dma.done [#allocation7], 16384
    $region37: #{lstm_forward.1} parent=1 // pred_fallthru
      _
    %v56 = vld [vmem:[%s0] sm:$0xff]
    %v57 = vpack.c.bf16 %v56, %v56
    %v58 = vld [vmem:[#allocation3] sm:$0xff]
    %v59 = vld [vmem:[#allocation3 + $0x8] sm:$0xff]
    %v60 = vld [vmem:[#allocation3 + $0x10] sm:$0xff]
    %v61 = vld [vmem:[#allocation3 + $0x18] sm:$0xff]
    %v62 = vld [vmem:[#allocation3 + $0x20] sm:$0xff]
    %v63 = vld [vmem:[#allocation3 + $0x28] sm:$0xff]
    %v64 = vld [vmem:[#allocation3 + $0x30] sm:$0xff]
    %v65 = vld [vmem:[#allocation3 + $0x38] sm:$0xff]
    %v66 = vld [vmem:[#allocation3 + $0x40] sm:$0xff]
    %v67 = vld [vmem:[#allocation3 + $0x48] sm:$0xff]
    %v68 = vld [vmem:[#allocation3 + $0x50] sm:$0xff]
    %v69 = vld [vmem:[#allocation3 + $0x58] sm:$0xff]
    %v70 = vld [vmem:[#allocation3 + $0x60] sm:$0xff]
    %v71 = vld [vmem:[#allocation3 + $0x68] sm:$0xff]
    %v72 = vld [vmem:[#allocation3 + $0x70] sm:$0xff]
    %v73 = vld [vmem:[#allocation3 + $0x78] sm:$0xff]
    %v74 = vld [vmem:[#allocation3 + $0x80] sm:$0xff]
    %v75 = vld [vmem:[#allocation3 + $0x88] sm:$0xff]
    %v76 = vld [vmem:[#allocation3 + $0x90] sm:$0xff]
    %v77 = vld [vmem:[#allocation3 + $0x98] sm:$0xff]
    %v78 = vld [vmem:[#allocation3 + $0xa0] sm:$0xff]
    %v79 = vld [vmem:[#allocation3 + $0xa8] sm:$0xff]
    %v80 = vld [vmem:[#allocation3 + $0xb0] sm:$0xff]
    %v81 = vld [vmem:[#allocation3 + $0xb8] sm:$0xff]
    %v82 = vld [vmem:[#allocation3 + $0xc0] sm:$0xff]
    %v83 = vld [vmem:[#allocation3 + $0xc8] sm:$0xff]
    %v84 = vld [vmem:[#allocation3 + $0xd0] sm:$0xff]
    %v85 = vld [vmem:[#allocation3 + $0xd8] sm:$0xff]
    %v86 = vld [vmem:[#allocation3 + $0xe0] sm:$0xff]
    %v87 = vld [vmem:[#allocation3 + $0xe8] sm:$0xff]
    %v88 = vld [vmem:[#allocation3 + $0xf0] sm:$0xff]
    %v89 = vld [vmem:[#allocation3 + $0xf8] sm:$0xff]
    %v90 = vld [vmem:[%s3] sm:$0xf]
    %v92 = vlaneseq
    %v93 = vshrl.u32 %v92, 7
    %v94 = vsub.s32 0, %v93
    %v95 = vrot.slane %v90, %v94
    %v96 = vlaneseq
    %v97 = vshrl.u32 %v96, 7
    %v98 = vsub.s32 1, %v97
    %v99 = vrot.slane %v90, %v98
    %v100 = vlaneseq
    %v101 = vshrl.u32 %v100, 7
    %v102 = vsub.s32 2, %v101
    %v103 = vrot.slane %v90, %v102
    %v104 = vlaneseq
    %v105 = vshrl.u32 %v104, 7
    %v106 = vsub.s32 3, %v105
    %v107 = vrot.slane %v90, %v106
    %v144 = vunpack.c.l.b16 %v58
    %v145 = vunpack.c.h.b16 %v58
    %v146 = vunpack.c.l.b16 %v59
    %v147 = vunpack.c.h.b16 %v59
    %v148 = vunpack.c.l.b16 %v60
    %v149 = vunpack.c.h.b16 %v60
    %v150 = vunpack.c.l.b16 %v61
    %v151 = vunpack.c.h.b16 %v61
    %v152 = vunpack.c.l.b16 %v62
    %v153 = vunpack.c.h.b16 %v62
    %v154 = vunpack.c.l.b16 %v63
    %v155 = vunpack.c.h.b16 %v63
    %v156 = vunpack.c.l.b16 %v64
    %v157 = vunpack.c.h.b16 %v64
    %v158 = vunpack.c.l.b16 %v65
    %v159 = vunpack.c.h.b16 %v65
    %v160 = vunpack.c.l.b16 %v66
    %v161 = vunpack.c.h.b16 %v66
    %v162 = vunpack.c.l.b16 %v67
    %v163 = vunpack.c.h.b16 %v67
    %v164 = vunpack.c.l.b16 %v68
    %v165 = vunpack.c.h.b16 %v68
    %v166 = vunpack.c.l.b16 %v69
    %v167 = vunpack.c.h.b16 %v69
    %v168 = vunpack.c.l.b16 %v70
    %v169 = vunpack.c.h.b16 %v70
    %v170 = vunpack.c.l.b16 %v71
    %v171 = vunpack.c.h.b16 %v71
    %v172 = vunpack.c.l.b16 %v72
    %v173 = vunpack.c.h.b16 %v72
    %v174 = vunpack.c.l.b16 %v73
    %v175 = vunpack.c.h.b16 %v73
    %v176 = vunpack.c.l.b16 %v74
    %v177 = vunpack.c.h.b16 %v74
    %v178 = vunpack.c.l.b16 %v75
    %v179 = vunpack.c.h.b16 %v75
    %v180 = vunpack.c.l.b16 %v76
    %v181 = vunpack.c.h.b16 %v76
    %v182 = vunpack.c.l.b16 %v77
    %v183 = vunpack.c.h.b16 %v77
    %v184 = vunpack.c.l.b16 %v78
    %v185 = vunpack.c.h.b16 %v78
    %v186 = vunpack.c.l.b16 %v79
    %v187 = vunpack.c.h.b16 %v79
    %v188 = vunpack.c.l.b16 %v80
    %v189 = vunpack.c.h.b16 %v80
    %v190 = vunpack.c.l.b16 %v81
    %v191 = vunpack.c.h.b16 %v81
    %v192 = vunpack.c.l.b16 %v82
    %v193 = vunpack.c.h.b16 %v82
    %v194 = vunpack.c.l.b16 %v83
    %v195 = vunpack.c.h.b16 %v83
    %v196 = vunpack.c.l.b16 %v84
    %v197 = vunpack.c.h.b16 %v84
    %v198 = vunpack.c.l.b16 %v85
    %v199 = vunpack.c.h.b16 %v85
    %v200 = vunpack.c.l.b16 %v86
    %v201 = vunpack.c.h.b16 %v86
    %v202 = vunpack.c.l.b16 %v87
    %v203 = vunpack.c.h.b16 %v87
    %v204 = vunpack.c.l.b16 %v88
    %v205 = vunpack.c.h.b16 %v88
    %v206 = vunpack.c.l.b16 %v89
    %v207 = vunpack.c.h.b16 %v89
    %v208 = vpack.c.b16 %v148, %v144
    %v209 = vpack.c.b16 %v149, %v145
    %v210 = vpack.c.b16 %v150, %v146
    %v211 = vpack.c.b16 %v151, %v147
    %v212 = vpack.c.b16 %v156, %v152
    %v213 = vpack.c.b16 %v157, %v153
    %v214 = vpack.c.b16 %v158, %v154
    %v215 = vpack.c.b16 %v159, %v155
    %v216 = vpack.c.b16 %v164, %v160
    %v217 = vpack.c.b16 %v165, %v161
    %v218 = vpack.c.b16 %v166, %v162
    %v219 = vpack.c.b16 %v167, %v163
    %v220 = vpack.c.b16 %v172, %v168
    %v221 = vpack.c.b16 %v173, %v169
    %v222 = vpack.c.b16 %v174, %v170
    %v223 = vpack.c.b16 %v175, %v171
    %v224 = vpack.c.b16 %v180, %v176
    %v225 = vpack.c.b16 %v181, %v177
    %v226 = vpack.c.b16 %v182, %v178
    %v227 = vpack.c.b16 %v183, %v179
    %v228 = vpack.c.b16 %v188, %v184
    %v229 = vpack.c.b16 %v189, %v185
    %v230 = vpack.c.b16 %v190, %v186
    %v231 = vpack.c.b16 %v191, %v187
    %v232 = vpack.c.b16 %v196, %v192
    %v233 = vpack.c.b16 %v197, %v193
    %v234 = vpack.c.b16 %v198, %v194
    %v235 = vpack.c.b16 %v199, %v195
    %v236 = vpack.c.b16 %v204, %v200
    %v237 = vpack.c.b16 %v205, %v201
    %v238 = vpack.c.b16 %v206, %v202
    %v239 = vpack.c.b16 %v207, %v203
    %272 = vmatprep.subr.bf16.mxu0 %v209
    %273 = vmatpush1.bf16.msra.mxu0 %v208
    %274 = vmatprep.subr.bf16.mxu0 %v213
    %275 = vmatpush1.bf16.msra.mxu0 %v212
    %276 = vmatprep.subr.bf16.mxu0 %v217
    %277 = vmatpush1.bf16.msra.mxu0 %v216
    %278 = vmatprep.subr.bf16.mxu0 %v221
    %279 = vmatpush1.bf16.msra.mxu0 %v220
    %280 = vmatprep.subr.bf16.mxu0 %v225
    %281 = vmatpush1.bf16.msra.mxu0 %v224
    %282 = vmatprep.subr.bf16.mxu0 %v229
    %283 = vmatpush1.bf16.msra.mxu0 %v228
    %284 = vmatprep.subr.bf16.mxu0 %v233
    %285 = vmatpush1.bf16.msra.mxu0 %v232
    %286 = vmatprep.subr.bf16.mxu0 %v237
    %287 = vmatpush1.bf16.msra.mxu0 %v236
    %288 = vmatprep.subr.bf16.mxu0 0
    %289 = vmatpush1.bf16.msra.mxu0 0
    %290 = vmatprep.subr.bf16.mxu0 0
    %291 = vmatpush1.bf16.msra.mxu0 0
    %292 = vmatprep.subr.bf16.mxu0 0
    %293 = vmatpush1.bf16.msra.mxu0 0
    %294 = vmatprep.subr.bf16.mxu0 0
    %295 = vmatpush1.bf16.msra.mxu0 0
    %296 = vmatprep.subr.bf16.mxu0 0
    %297 = vmatpush1.bf16.msra.mxu0 0
    %298 = vmatprep.subr.bf16.mxu0 0
    %299 = vmatpush1.bf16.msra.mxu0 0
    %300 = vmatprep.subr.bf16.mxu0 0
    %301 = vmatpush1.bf16.msra.mxu0 0
    %302 = vmatprep.subr.bf16.mxu0 0
    %303 = vmatpush1.bf16.msra.mxu0 0
    %304 = vmatprep.mubr.bf16.mxu0 0
    %305 = vmatmul.mubr.bf16.gmra.mrb[0].mxu0 %v57
    %v306 = vpop.f32.mrb[0].mxu0
    %v307 = vadd.f32 %v95, %v306
    %v308 = vpop.f32.mrb[0].mxu0
    %v309 = vadd.f32 %v99, %v308
    %v310 = vpop.f32.mrb[0].mxu0
    %v311 = vpop.f32.mrb[0].mxu0
    %312 = vdwg.mxu0
    %313 = vmatprep.subr.bf16.mxu0 %v211
    %314 = vmatpush1.bf16.msra.mxu0 %v210
    %315 = vmatprep.subr.bf16.mxu0 %v215
    %316 = vmatpush1.bf16.msra.mxu0 %v214
    %317 = vmatprep.subr.bf16.mxu0 %v219
    %318 = vmatpush1.bf16.msra.mxu0 %v218
    %319 = vmatprep.subr.bf16.mxu0 %v223
    %320 = vmatpush1.bf16.msra.mxu0 %v222
    %321 = vmatprep.subr.bf16.mxu0 %v227
    %322 = vmatpush1.bf16.msra.mxu0 %v226
    %323 = vmatprep.subr.bf16.mxu0 %v231
    %324 = vmatpush1.bf16.msra.mxu0 %v230
    %325 = vmatprep.subr.bf16.mxu0 %v235
    %326 = vmatpush1.bf16.msra.mxu0 %v234
    %327 = vmatprep.subr.bf16.mxu0 %v239
    %328 = vmatpush1.bf16.msra.mxu0 %v238
    %329 = vmatprep.subr.bf16.mxu0 0
    %330 = vmatpush1.bf16.msra.mxu0 0
    %331 = vmatprep.subr.bf16.mxu0 0
    %332 = vmatpush1.bf16.msra.mxu0 0
    %333 = vmatprep.subr.bf16.mxu0 0
    %334 = vmatpush1.bf16.msra.mxu0 0
    %335 = vmatprep.subr.bf16.mxu0 0
    %336 = vmatpush1.bf16.msra.mxu0 0
    %337 = vmatprep.subr.bf16.mxu0 0
    %338 = vmatpush1.bf16.msra.mxu0 0
    %339 = vmatprep.subr.bf16.mxu0 0
    %340 = vmatpush1.bf16.msra.mxu0 0
    %341 = vmatprep.subr.bf16.mxu0 0
    %342 = vmatpush1.bf16.msra.mxu0 0
    %343 = vmatprep.subr.bf16.mxu0 0
    %344 = vmatpush1.bf16.msra.mxu0 0
    %345 = vmatprep.mubr.bf16.mxu0 0
    %346 = vmatmul.mubr.bf16.gmra.mrb[0].mxu0 %v57
    %v347 = vpop.f32.mrb[0].mxu0
    %v348 = vadd.f32 %v103, %v347
    %v349 = vpop.f32.mrb[0].mxu0
    %v350 = vadd.f32 %v107, %v349
    %v351 = vpop.f32.mrb[0].mxu0
    %v352 = vpop.f32.mrb[0].mxu0
    %353 = vdwg.mxu0
    %354 = vst [vmem:[#allocation2] sm:$0xff] %v307
    %355 = vst [vmem:[#allocation2 + $0x8] sm:$0xff] %v309
    %356 = vst [vmem:[#allocation2 + $0x10] sm:$0xff] %v348
    %357 = vst [vmem:[#allocation2 + $0x18] sm:$0xff] %v350
    %v358 = vld [vmem:[#allocation2] ss:$8 sm:$0xf]
    %v359 = vxor.u32 %v358, 2147483648
    %v360 = vmul.f32 %v359, 1.442695
    %v361 = vpow.pop %v360
    %v362 = vadd.f32 %v361, 1.0
    %v363 = vrcp.pop %v362
    %v364 = vmul.f32 1.0, %v363
    %v366 = vrot.slane %v358, 3
    %v368 = vtanh.pop %v366
    %v370 = vrot.slane %v364, 1
    %v372 = vmul.f32 %v370, 0.0
    %v373 = vmul.f32 %v364, %v368
    %v374 = vadd.f32 %v372, %v373
    %v375 = vtanh.pop %v374
    %v376 = vrot.slane %v364, 2
    %v378 = vmul.f32 %v376, %v375
    %v379 = vpack.c.bf16 %v378, %v378
    %v380 = vpack.c.bf16 0.0, 0.0
    %v381 = vld [vmem:[#allocation6] sm:$0xff]
    %v382 = vld [vmem:[#allocation6 + $0x8] sm:$0xff]
    %v383 = vld [vmem:[#allocation6 + $0x10] sm:$0xff]
    %v384 = vld [vmem:[#allocation6 + $0x18] sm:$0xff]
    %v385 = vld [vmem:[#allocation6 + $0x20] sm:$0xff]
    %v386 = vld [vmem:[#allocation6 + $0x28] sm:$0xff]
    %v387 = vld [vmem:[#allocation6 + $0x30] sm:$0xff]
    %v388 = vld [vmem:[#allocation6 + $0x38] sm:$0xff]
    %v389 = vld [vmem:[#allocation6 + $0x40] sm:$0xff]
    %v390 = vld [vmem:[#allocation6 + $0x48] sm:$0xff]
    %v391 = vld [vmem:[#allocation6 + $0x50] sm:$0xff]
    %v392 = vld [vmem:[#allocation6 + $0x58] sm:$0xff]
    %v393 = vld [vmem:[#allocation6 + $0x60] sm:$0xff]
    %v394 = vld [vmem:[#allocation6 + $0x68] sm:$0xff]
    %v395 = vld [vmem:[#allocation6 + $0x70] sm:$0xff]
    %v396 = vld [vmem:[#allocation6 + $0x78] sm:$0xff]
    %v397 = vld [vmem:[#allocation6 + $0x80] sm:$0xff]
    %v398 = vld [vmem:[#allocation6 + $0x88] sm:$0xff]
    %v399 = vld [vmem:[#allocation6 + $0x90] sm:$0xff]
    %v400 = vld [vmem:[#allocation6 + $0x98] sm:$0xff]
    %v401 = vld [vmem:[#allocation6 + $0xa0] sm:$0xff]
    %v402 = vld [vmem:[#allocation6 + $0xa8] sm:$0xff]
    %v403 = vld [vmem:[#allocation6 + $0xb0] sm:$0xff]
    %v404 = vld [vmem:[#allocation6 + $0xb8] sm:$0xff]
    %v405 = vld [vmem:[#allocation6 + $0xc0] sm:$0xff]
    %v406 = vld [vmem:[#allocation6 + $0xc8] sm:$0xff]
    %v407 = vld [vmem:[#allocation6 + $0xd0] sm:$0xff]
    %v408 = vld [vmem:[#allocation6 + $0xd8] sm:$0xff]
    %v409 = vld [vmem:[#allocation6 + $0xe0] sm:$0xff]
    %v410 = vld [vmem:[#allocation6 + $0xe8] sm:$0xff]
    %v411 = vld [vmem:[#allocation6 + $0xf0] sm:$0xff]
    %v412 = vld [vmem:[#allocation6 + $0xf8] sm:$0xff]
    %v413 = vld [vmem:[#allocation6 + $0x100] sm:$0xff]
    %v414 = vld [vmem:[#allocation6 + $0x108] sm:$0xff]
    %v415 = vld [vmem:[#allocation6 + $0x110] sm:$0xff]
    %v416 = vld [vmem:[#allocation6 + $0x118] sm:$0xff]
    %v417 = vld [vmem:[#allocation6 + $0x120] sm:$0xff]
    %v418 = vld [vmem:[#allocation6 + $0x128] sm:$0xff]
    %v419 = vld [vmem:[#allocation6 + $0x130] sm:$0xff]
    %v420 = vld [vmem:[#allocation6 + $0x138] sm:$0xff]
    %v421 = vld [vmem:[#allocation6 + $0x140] sm:$0xff]
    %v422 = vld [vmem:[#allocation6 + $0x148] sm:$0xff]
    %v423 = vld [vmem:[#allocation6 + $0x150] sm:$0xff]
    %v424 = vld [vmem:[#allocation6 + $0x158] sm:$0xff]
    %v425 = vld [vmem:[#allocation6 + $0x160] sm:$0xff]
    %v426 = vld [vmem:[#allocation6 + $0x168] sm:$0xff]
    %v427 = vld [vmem:[#allocation6 + $0x170] sm:$0xff]
    %v428 = vld [vmem:[#allocation6 + $0x178] sm:$0xff]
    %v429 = vld [vmem:[#allocation6 + $0x180] sm:$0xff]
    %v430 = vld [vmem:[#allocation6 + $0x188] sm:$0xff]
    %v431 = vld [vmem:[#allocation6 + $0x190] sm:$0xff]
    %v432 = vld [vmem:[#allocation6 + $0x198] sm:$0xff]
    %v433 = vld [vmem:[#allocation6 + $0x1a0] sm:$0xff]
    %v434 = vld [vmem:[#allocation6 + $0x1a8] sm:$0xff]
    %v435 = vld [vmem:[#allocation6 + $0x1b0] sm:$0xff]
    %v436 = vld [vmem:[#allocation6 + $0x1b8] sm:$0xff]
    %v437 = vld [vmem:[#allocation6 + $0x1c0] sm:$0xff]
    %v438 = vld [vmem:[#allocation6 + $0x1c8] sm:$0xff]
    %v439 = vld [vmem:[#allocation6 + $0x1d0] sm:$0xff]
    %v440 = vld [vmem:[#allocation6 + $0x1d8] sm:$0xff]
    %v441 = vld [vmem:[#allocation6 + $0x1e0] sm:$0xff]
    %v442 = vld [vmem:[#allocation6 + $0x1e8] sm:$0xff]
    %v443 = vld [vmem:[#allocation6 + $0x1f0] sm:$0xff]
    %v444 = vld [vmem:[#allocation6 + $0x1f8] sm:$0xff]
    %v445 = vld [vmem:[#allocation6 + $0x200] sm:$0xff]
    %v446 = vld [vmem:[#allocation6 + $0x208] sm:$0xff]
    %v447 = vld [vmem:[#allocation6 + $0x210] sm:$0xff]
    %v448 = vld [vmem:[#allocation6 + $0x218] sm:$0xff]
    %v449 = vld [vmem:[#allocation6 + $0x220] sm:$0xff]
    %v450 = vld [vmem:[#allocation6 + $0x228] sm:$0xff]
    %v451 = vld [vmem:[#allocation6 + $0x230] sm:$0xff]
    %v452 = vld [vmem:[#allocation6 + $0x238] sm:$0xff]
    %v453 = vld [vmem:[#allocation6 + $0x240] sm:$0xff]
    %v454 = vld [vmem:[#allocation6 + $0x248] sm:$0xff]
    %v455 = vld [vmem:[#allocation6 + $0x250] sm:$0xff]
    %v456 = vld [vmem:[#allocation6 + $0x258] sm:$0xff]
    %v457 = vld [vmem:[#allocation6 + $0x260] sm:$0xff]
    %v458 = vld [vmem:[#allocation6 + $0x268] sm:$0xff]
    %v459 = vld [vmem:[#allocation6 + $0x270] sm:$0xff]
    %v460 = vld [vmem:[#allocation6 + $0x278] sm:$0xff]
    %v461 = vld [vmem:[#allocation6 + $0x280] sm:$0xff]
    %v462 = vld [vmem:[#allocation6 + $0x288] sm:$0xff]
    %v463 = vld [vmem:[#allocation6 + $0x290] sm:$0xff]
    %v464 = vld [vmem:[#allocation6 + $0x298] sm:$0xff]
    %v465 = vld [vmem:[#allocation6 + $0x2a0] sm:$0xff]
    %v466 = vld [vmem:[#allocation6 + $0x2a8] sm:$0xff]
    %v467 = vld [vmem:[#allocation6 + $0x2b0] sm:$0xff]
    %v468 = vld [vmem:[#allocation6 + $0x2b8] sm:$0xff]
    %v469 = vld [vmem:[#allocation6 + $0x2c0] sm:$0xff]
    %v470 = vld [vmem:[#allocation6 + $0x2c8] sm:$0xff]
    %v471 = vld [vmem:[#allocation6 + $0x2d0] sm:$0xff]
    %v472 = vld [vmem:[#allocation6 + $0x2d8] sm:$0xff]
    %v473 = vld [vmem:[#allocation6 + $0x2e0] sm:$0xff]
    %v474 = vld [vmem:[#allocation6 + $0x2e8] sm:$0xff]
    %v475 = vld [vmem:[#allocation6 + $0x2f0] sm:$0xff]
    %v476 = vld [vmem:[#allocation6 + $0x2f8] sm:$0xff]
    %v477 = vld [vmem:[#allocation6 + $0x300] sm:$0xff]
    %v478 = vld [vmem:[#allocation6 + $0x308] sm:$0xff]
    %v479 = vld [vmem:[#allocation6 + $0x310] sm:$0xff]
    %v480 = vld [vmem:[#allocation6 + $0x318] sm:$0xff]
    %v481 = vld [vmem:[#allocation6 + $0x320] sm:$0xff]
    %v482 = vld [vmem:[#allocation6 + $0x328] sm:$0xff]
    %v483 = vld [vmem:[#allocation6 + $0x330] sm:$0xff]
    %v484 = vld [vmem:[#allocation6 + $0x338] sm:$0xff]
    %v485 = vld [vmem:[#allocation6 + $0x340] sm:$0xff]
    %v486 = vld [vmem:[#allocation6 + $0x348] sm:$0xff]
    %v487 = vld [vmem:[#allocation6 + $0x350] sm:$0xff]
    %v488 = vld [vmem:[#allocation6 + $0x358] sm:$0xff]
    %v489 = vld [vmem:[#allocation6 + $0x360] sm:$0xff]
    %v490 = vld [vmem:[#allocation6 + $0x368] sm:$0xff]
    %v491 = vld [vmem:[#allocation6 + $0x370] sm:$0xff]
    %v492 = vld [vmem:[#allocation6 + $0x378] sm:$0xff]
    %v493 = vld [vmem:[#allocation6 + $0x380] sm:$0xff]
    %v494 = vld [vmem:[#allocation6 + $0x388] sm:$0xff]
    %v495 = vld [vmem:[#allocation6 + $0x390] sm:$0xff]
    %v496 = vld [vmem:[#allocation6 + $0x398] sm:$0xff]
    %v497 = vld [vmem:[#allocation6 + $0x3a0] sm:$0xff]
    %v498 = vld [vmem:[#allocation6 + $0x3a8] sm:$0xff]
    %v499 = vld [vmem:[#allocation6 + $0x3b0] sm:$0xff]
    %v500 = vld [vmem:[#allocation6 + $0x3b8] sm:$0xff]
    %v501 = vld [vmem:[#allocation6 + $0x3c0] sm:$0xff]
    %v502 = vld [vmem:[#allocation6 + $0x3c8] sm:$0xff]
    %v503 = vld [vmem:[#allocation6 + $0x3d0] sm:$0xff]
    %v504 = vld [vmem:[#allocation6 + $0x3d8] sm:$0xff]
    %v505 = vld [vmem:[#allocation6 + $0x3e0] sm:$0xff]
    %v506 = vld [vmem:[#allocation6 + $0x3e8] sm:$0xff]
    %v507 = vld [vmem:[#allocation6 + $0x3f0] sm:$0xff]
    %v508 = vld [vmem:[#allocation6 + $0x3f8] sm:$0xff]
    %v637 = vunpack.c.l.b16 %v381
    %v638 = vunpack.c.h.b16 %v381
    %v639 = vunpack.c.l.b16 %v382
    %v640 = vunpack.c.h.b16 %v382
    %v641 = vunpack.c.l.b16 %v383
    %v642 = vunpack.c.h.b16 %v383
    %v643 = vunpack.c.l.b16 %v384
    %v644 = vunpack.c.h.b16 %v384
    %v645 = vunpack.c.l.b16 %v385
    %v646 = vunpack.c.h.b16 %v385
    %v647 = vunpack.c.l.b16 %v386
    %v648 = vunpack.c.h.b16 %v386
    %v649 = vunpack.c.l.b16 %v387
    %v650 = vunpack.c.h.b16 %v387
    %v651 = vunpack.c.l.b16 %v388
    %v652 = vunpack.c.h.b16 %v388
    %v653 = vunpack.c.l.b16 %v389
    %v654 = vunpack.c.h.b16 %v389
    %v655 = vunpack.c.l.b16 %v390
    %v656 = vunpack.c.h.b16 %v390
    %v657 = vunpack.c.l.b16 %v391
    %v658 = vunpack.c.h.b16 %v391
    %v659 = vunpack.c.l.b16 %v392
    %v660 = vunpack.c.h.b16 %v392
    %v661 = vunpack.c.l.b16 %v393
    %v662 = vunpack.c.h.b16 %v393
    %v663 = vunpack.c.l.b16 %v394
    %v664 = vunpack.c.h.b16 %v394
    %v665 = vunpack.c.l.b16 %v395
    %v666 = vunpack.c.h.b16 %v395
    %v667 = vunpack.c.l.b16 %v396
    %v668 = vunpack.c.h.b16 %v396
    %v669 = vunpack.c.l.b16 %v397
    %v670 = vunpack.c.h.b16 %v397
    %v671 = vunpack.c.l.b16 %v398
    %v672 = vunpack.c.h.b16 %v398
    %v673 = vunpack.c.l.b16 %v399
    %v674 = vunpack.c.h.b16 %v399
    %v675 = vunpack.c.l.b16 %v400
    %v676 = vunpack.c.h.b16 %v400
    %v677 = vunpack.c.l.b16 %v401
    %v678 = vunpack.c.h.b16 %v401
    %v679 = vunpack.c.l.b16 %v402
    %v680 = vunpack.c.h.b16 %v402
    %v681 = vunpack.c.l.b16 %v403
    %v682 = vunpack.c.h.b16 %v403
    %v683 = vunpack.c.l.b16 %v404
    %v684 = vunpack.c.h.b16 %v404
    %v685 = vunpack.c.l.b16 %v405
    %v686 = vunpack.c.h.b16 %v405
    %v687 = vunpack.c.l.b16 %v406
    %v688 = vunpack.c.h.b16 %v406
    %v689 = vunpack.c.l.b16 %v407
    %v690 = vunpack.c.h.b16 %v407
    %v691 = vunpack.c.l.b16 %v408
    %v692 = vunpack.c.h.b16 %v408
    %v693 = vunpack.c.l.b16 %v409
    %v694 = vunpack.c.h.b16 %v409
    %v695 = vunpack.c.l.b16 %v410
    %v696 = vunpack.c.h.b16 %v410
    %v697 = vunpack.c.l.b16 %v411
    %v698 = vunpack.c.h.b16 %v411
    %v699 = vunpack.c.l.b16 %v412
    %v700 = vunpack.c.h.b16 %v412
    %v701 = vunpack.c.l.b16 %v413
    %v702 = vunpack.c.h.b16 %v413
    %v703 = vunpack.c.l.b16 %v414
    %v704 = vunpack.c.h.b16 %v414
    %v705 = vunpack.c.l.b16 %v415
    %v706 = vunpack.c.h.b16 %v415
    %v707 = vunpack.c.l.b16 %v416
    %v708 = vunpack.c.h.b16 %v416
    %v709 = vunpack.c.l.b16 %v417
    %v710 = vunpack.c.h.b16 %v417
    %v711 = vunpack.c.l.b16 %v418
    %v712 = vunpack.c.h.b16 %v418
    %v713 = vunpack.c.l.b16 %v419
    %v714 = vunpack.c.h.b16 %v419
    %v715 = vunpack.c.l.b16 %v420
    %v716 = vunpack.c.h.b16 %v420
    %v717 = vunpack.c.l.b16 %v421
    %v718 = vunpack.c.h.b16 %v421
    %v719 = vunpack.c.l.b16 %v422
    %v720 = vunpack.c.h.b16 %v422
    %v721 = vunpack.c.l.b16 %v423
    %v722 = vunpack.c.h.b16 %v423
    %v723 = vunpack.c.l.b16 %v424
    %v724 = vunpack.c.h.b16 %v424
    %v725 = vunpack.c.l.b16 %v425
    %v726 = vunpack.c.h.b16 %v425
    %v727 = vunpack.c.l.b16 %v426
    %v728 = vunpack.c.h.b16 %v426
    %v729 = vunpack.c.l.b16 %v427
    %v730 = vunpack.c.h.b16 %v427
    %v731 = vunpack.c.l.b16 %v428
    %v732 = vunpack.c.h.b16 %v428
    %v733 = vunpack.c.l.b16 %v429
    %v734 = vunpack.c.h.b16 %v429
    %v735 = vunpack.c.l.b16 %v430
    %v736 = vunpack.c.h.b16 %v430
    %v737 = vunpack.c.l.b16 %v431
    %v738 = vunpack.c.h.b16 %v431
    %v739 = vunpack.c.l.b16 %v432
    %v740 = vunpack.c.h.b16 %v432
    %v741 = vunpack.c.l.b16 %v433
    %v742 = vunpack.c.h.b16 %v433
    %v743 = vunpack.c.l.b16 %v434
    %v744 = vunpack.c.h.b16 %v434
    %v745 = vunpack.c.l.b16 %v435
    %v746 = vunpack.c.h.b16 %v435
    %v747 = vunpack.c.l.b16 %v436
    %v748 = vunpack.c.h.b16 %v436
    %v749 = vunpack.c.l.b16 %v437
    %v750 = vunpack.c.h.b16 %v437
    %v751 = vunpack.c.l.b16 %v438
    %v752 = vunpack.c.h.b16 %v438
    %v753 = vunpack.c.l.b16 %v439
    %v754 = vunpack.c.h.b16 %v439
    %v755 = vunpack.c.l.b16 %v440
    %v756 = vunpack.c.h.b16 %v440
    %v757 = vunpack.c.l.b16 %v441
    %v758 = vunpack.c.h.b16 %v441
    %v759 = vunpack.c.l.b16 %v442
    %v760 = vunpack.c.h.b16 %v442
    %v761 = vunpack.c.l.b16 %v443
    %v762 = vunpack.c.h.b16 %v443
    %v763 = vunpack.c.l.b16 %v444
    %v764 = vunpack.c.h.b16 %v444
    %v765 = vunpack.c.l.b16 %v445
    %v766 = vunpack.c.h.b16 %v445
    %v767 = vunpack.c.l.b16 %v446
    %v768 = vunpack.c.h.b16 %v446
    %v769 = vunpack.c.l.b16 %v447
    %v770 = vunpack.c.h.b16 %v447
    %v771 = vunpack.c.l.b16 %v448
    %v772 = vunpack.c.h.b16 %v448
    %v773 = vunpack.c.l.b16 %v449
    %v774 = vunpack.c.h.b16 %v449
    %v775 = vunpack.c.l.b16 %v450
    %v776 = vunpack.c.h.b16 %v450
    %v777 = vunpack.c.l.b16 %v451
    %v778 = vunpack.c.h.b16 %v451
    %v779 = vunpack.c.l.b16 %v452
    %v780 = vunpack.c.h.b16 %v452
    %v781 = vunpack.c.l.b16 %v453
    %v782 = vunpack.c.h.b16 %v453
    %v783 = vunpack.c.l.b16 %v454
    %v784 = vunpack.c.h.b16 %v454
    %v785 = vunpack.c.l.b16 %v455
    %v786 = vunpack.c.h.b16 %v455
    %v787 = vunpack.c.l.b16 %v456
    %v788 = vunpack.c.h.b16 %v456
    %v789 = vunpack.c.l.b16 %v457
    %v790 = vunpack.c.h.b16 %v457
    %v791 = vunpack.c.l.b16 %v458
    %v792 = vunpack.c.h.b16 %v458
    %v793 = vunpack.c.l.b16 %v459
    %v794 = vunpack.c.h.b16 %v459
    %v795 = vunpack.c.l.b16 %v460
    %v796 = vunpack.c.h.b16 %v460
    %v797 = vunpack.c.l.b16 %v461
    %v798 = vunpack.c.h.b16 %v461
    %v799 = vunpack.c.l.b16 %v462
    %v800 = vunpack.c.h.b16 %v462
    %v801 = vunpack.c.l.b16 %v463
    %v802 = vunpack.c.h.b16 %v463
    %v803 = vunpack.c.l.b16 %v464
    %v804 = vunpack.c.h.b16 %v464
    %v805 = vunpack.c.l.b16 %v465
    %v806 = vunpack.c.h.b16 %v465
    %v807 = vunpack.c.l.b16 %v466
    %v808 = vunpack.c.h.b16 %v466
    %v809 = vunpack.c.l.b16 %v467
    %v810 = vunpack.c.h.b16 %v467
    %v811 = vunpack.c.l.b16 %v468
    %v812 = vunpack.c.h.b16 %v468
    %v813 = vunpack.c.l.b16 %v469
    %v814 = vunpack.c.h.b16 %v469
    %v815 = vunpack.c.l.b16 %v470
    %v816 = vunpack.c.h.b16 %v470
    %v817 = vunpack.c.l.b16 %v471
    %v818 = vunpack.c.h.b16 %v471
    %v819 = vunpack.c.l.b16 %v472
    %v820 = vunpack.c.h.b16 %v472
    %v821 = vunpack.c.l.b16 %v473
    %v822 = vunpack.c.h.b16 %v473
    %v823 = vunpack.c.l.b16 %v474
    %v824 = vunpack.c.h.b16 %v474
    %v825 = vunpack.c.l.b16 %v475
    %v826 = vunpack.c.h.b16 %v475
    %v827 = vunpack.c.l.b16 %v476
    %v828 = vunpack.c.h.b16 %v476
    %v829 = vunpack.c.l.b16 %v477
    %v830 = vunpack.c.h.b16 %v477
    %v831 = vunpack.c.l.b16 %v478
    %v832 = vunpack.c.h.b16 %v478
    %v833 = vunpack.c.l.b16 %v479
    %v834 = vunpack.c.h.b16 %v479
    %v835 = vunpack.c.l.b16 %v480
    %v836 = vunpack.c.h.b16 %v480
    %v837 = vunpack.c.l.b16 %v481
    %v838 = vunpack.c.h.b16 %v481
    %v839 = vunpack.c.l.b16 %v482
    %v840 = vunpack.c.h.b16 %v482
    %v841 = vunpack.c.l.b16 %v483
    %v842 = vunpack.c.h.b16 %v483
    %v843 = vunpack.c.l.b16 %v484
    %v844 = vunpack.c.h.b16 %v484
    %v845 = vunpack.c.l.b16 %v485
    %v846 = vunpack.c.h.b16 %v485
    %v847 = vunpack.c.l.b16 %v486
    %v848 = vunpack.c.h.b16 %v486
    %v849 = vunpack.c.l.b16 %v487
    %v850 = vunpack.c.h.b16 %v487
    %v851 = vunpack.c.l.b16 %v488
    %v852 = vunpack.c.h.b16 %v488
    %v853 = vunpack.c.l.b16 %v489
    %v854 = vunpack.c.h.b16 %v489
    %v855 = vunpack.c.l.b16 %v490
    %v856 = vunpack.c.h.b16 %v490
    %v857 = vunpack.c.l.b16 %v491
    %v858 = vunpack.c.h.b16 %v491
    %v859 = vunpack.c.l.b16 %v492
    %v860 = vunpack.c.h.b16 %v492
    %v861 = vunpack.c.l.b16 %v493
    %v862 = vunpack.c.h.b16 %v493
    %v863 = vunpack.c.l.b16 %v494
    %v864 = vunpack.c.h.b16 %v494
    %v865 = vunpack.c.l.b16 %v495
    %v866 = vunpack.c.h.b16 %v495
    %v867 = vunpack.c.l.b16 %v496
    %v868 = vunpack.c.h.b16 %v496
    %v869 = vunpack.c.l.b16 %v497
    %v870 = vunpack.c.h.b16 %v497
    %v871 = vunpack.c.l.b16 %v498
    %v872 = vunpack.c.h.b16 %v498
    %v873 = vunpack.c.l.b16 %v499
    %v874 = vunpack.c.h.b16 %v499
    %v875 = vunpack.c.l.b16 %v500
    %v876 = vunpack.c.h.b16 %v500
    %v877 = vunpack.c.l.b16 %v501
    %v878 = vunpack.c.h.b16 %v501
    %v879 = vunpack.c.l.b16 %v502
    %v880 = vunpack.c.h.b16 %v502
    %v881 = vunpack.c.l.b16 %v503
    %v882 = vunpack.c.h.b16 %v503
    %v883 = vunpack.c.l.b16 %v504
    %v884 = vunpack.c.h.b16 %v504
    %v885 = vunpack.c.l.b16 %v505
    %v886 = vunpack.c.h.b16 %v505
    %v887 = vunpack.c.l.b16 %v506
    %v888 = vunpack.c.h.b16 %v506
    %v889 = vunpack.c.l.b16 %v507
    %v890 = vunpack.c.h.b16 %v507
    %v891 = vunpack.c.l.b16 %v508
    %v892 = vunpack.c.h.b16 %v508
    %v893 = vpack.c.b16 %v645, %v637
    %v894 = vpack.c.b16 %v646, %v638
    %v895 = vpack.c.b16 %v647, %v639
    %v896 = vpack.c.b16 %v648, %v640
    %v897 = vpack.c.b16 %v649, %v641
    %v898 = vpack.c.b16 %v650, %v642
    %v899 = vpack.c.b16 %v651, %v643
    %v900 = vpack.c.b16 %v652, %v644
    %v901 = vpack.c.b16 %v661, %v653
    %v902 = vpack.c.b16 %v662, %v654
    %v903 = vpack.c.b16 %v663, %v655
    %v904 = vpack.c.b16 %v664, %v656
    %v905 = vpack.c.b16 %v665, %v657
    %v906 = vpack.c.b16 %v666, %v658
    %v907 = vpack.c.b16 %v667, %v659
    %v908 = vpack.c.b16 %v668, %v660
    %v909 = vpack.c.b16 %v677, %v669
    %v910 = vpack.c.b16 %v678, %v670
    %v911 = vpack.c.b16 %v679, %v671
    %v912 = vpack.c.b16 %v680, %v672
    %v913 = vpack.c.b16 %v681, %v673
    %v914 = vpack.c.b16 %v682, %v674
    %v915 = vpack.c.b16 %v683, %v675
    %v916 = vpack.c.b16 %v684, %v676
    %v917 = vpack.c.b16 %v693, %v685
    %v918 = vpack.c.b16 %v694, %v686
    %v919 = vpack.c.b16 %v695, %v687
    %v920 = vpack.c.b16 %v696, %v688
    %v921 = vpack.c.b16 %v697, %v689
    %v922 = vpack.c.b16 %v698, %v690
    %v923 = vpack.c.b16 %v699, %v691
    %v924 = vpack.c.b16 %v700, %v692
    %v925 = vpack.c.b16 %v709, %v701
    %v926 = vpack.c.b16 %v710, %v702
    %v927 = vpack.c.b16 %v711, %v703
    %v928 = vpack.c.b16 %v712, %v704
    %v929 = vpack.c.b16 %v713, %v705
    %v930 = vpack.c.b16 %v714, %v706
    %v931 = vpack.c.b16 %v715, %v707
    %v932 = vpack.c.b16 %v716, %v708
    %v933 = vpack.c.b16 %v725, %v717
    %v934 = vpack.c.b16 %v726, %v718
    %v935 = vpack.c.b16 %v727, %v719
    %v936 = vpack.c.b16 %v728, %v720
    %v937 = vpack.c.b16 %v729, %v721
    %v938 = vpack.c.b16 %v730, %v722
    %v939 = vpack.c.b16 %v731, %v723
    %v940 = vpack.c.b16 %v732, %v724
    %v941 = vpack.c.b16 %v741, %v733
    %v942 = vpack.c.b16 %v742, %v734
    %v943 = vpack.c.b16 %v743, %v735
    %v944 = vpack.c.b16 %v744, %v736
    %v945 = vpack.c.b16 %v745, %v737
    %v946 = vpack.c.b16 %v746, %v738
    %v947 = vpack.c.b16 %v747, %v739
    %v948 = vpack.c.b16 %v748, %v740
    %v949 = vpack.c.b16 %v757, %v749
    %v950 = vpack.c.b16 %v758, %v750
    %v951 = vpack.c.b16 %v759, %v751
    %v952 = vpack.c.b16 %v760, %v752
    %v953 = vpack.c.b16 %v761, %v753
    %v954 = vpack.c.b16 %v762, %v754
    %v955 = vpack.c.b16 %v763, %v755
    %v956 = vpack.c.b16 %v764, %v756
    %v957 = vpack.c.b16 %v773, %v765
    %v958 = vpack.c.b16 %v774, %v766
    %v959 = vpack.c.b16 %v775, %v767
    %v960 = vpack.c.b16 %v776, %v768
    %v961 = vpack.c.b16 %v777, %v769
    %v962 = vpack.c.b16 %v778, %v770
    %v963 = vpack.c.b16 %v779, %v771
    %v964 = vpack.c.b16 %v780, %v772
    %v965 = vpack.c.b16 %v789, %v781
    %v966 = vpack.c.b16 %v790, %v782
    %v967 = vpack.c.b16 %v791, %v783
    %v968 = vpack.c.b16 %v792, %v784
    %v969 = vpack.c.b16 %v793, %v785
    %v970 = vpack.c.b16 %v794, %v786
    %v971 = vpack.c.b16 %v795, %v787
    %v972 = vpack.c.b16 %v796, %v788
    %v973 = vpack.c.b16 %v805, %v797
    %v974 = vpack.c.b16 %v806, %v798
    %v975 = vpack.c.b16 %v807, %v799
    %v976 = vpack.c.b16 %v808, %v800
    %v977 = vpack.c.b16 %v809, %v801
    %v978 = vpack.c.b16 %v810, %v802
    %v979 = vpack.c.b16 %v811, %v803
    %v980 = vpack.c.b16 %v812, %v804
    %v981 = vpack.c.b16 %v821, %v813
    %v982 = vpack.c.b16 %v822, %v814
    %v983 = vpack.c.b16 %v823, %v815
    %v984 = vpack.c.b16 %v824, %v816
    %v985 = vpack.c.b16 %v825, %v817
    %v986 = vpack.c.b16 %v826, %v818
    %v987 = vpack.c.b16 %v827, %v819
    %v988 = vpack.c.b16 %v828, %v820
    %v989 = vpack.c.b16 %v837, %v829
    %v990 = vpack.c.b16 %v838, %v830
    %v991 = vpack.c.b16 %v839, %v831
    %v992 = vpack.c.b16 %v840, %v832
    %v993 = vpack.c.b16 %v841, %v833
    %v994 = vpack.c.b16 %v842, %v834
    %v995 = vpack.c.b16 %v843, %v835
    %v996 = vpack.c.b16 %v844, %v836
    %v997 = vpack.c.b16 %v853, %v845
    %v998 = vpack.c.b16 %v854, %v846
    %v999 = vpack.c.b16 %v855, %v847
    %v1000 = vpack.c.b16 %v856, %v848
    %v1001 = vpack.c.b16 %v857, %v849
    %v1002 = vpack.c.b16 %v858, %v850
    %v1003 = vpack.c.b16 %v859, %v851
    %v1004 = vpack.c.b16 %v860, %v852
    %v1005 = vpack.c.b16 %v869, %v861
    %v1006 = vpack.c.b16 %v870, %v862
    %v1007 = vpack.c.b16 %v871, %v863
    %v1008 = vpack.c.b16 %v872, %v864
    %v1009 = vpack.c.b16 %v873, %v865
    %v1010 = vpack.c.b16 %v874, %v866
    %v1011 = vpack.c.b16 %v875, %v867
    %v1012 = vpack.c.b16 %v876, %v868
    %v1013 = vpack.c.b16 %v885, %v877
    %v1014 = vpack.c.b16 %v886, %v878
    %v1015 = vpack.c.b16 %v887, %v879
    %v1016 = vpack.c.b16 %v888, %v880
    %v1017 = vpack.c.b16 %v889, %v881
    %v1018 = vpack.c.b16 %v890, %v882
    %v1019 = vpack.c.b16 %v891, %v883
    %v1020 = vpack.c.b16 %v892, %v884
    %1149 = vmatprep.subr.bf16.mxu0 %v894
    %1150 = vmatpush1.bf16.msra.mxu0 %v893
    %1151 = vmatprep.subr.bf16.mxu0 %v902
    %1152 = vmatpush1.bf16.msra.mxu0 %v901
    %1153 = vmatprep.subr.bf16.mxu0 %v910
    %1154 = vmatpush1.bf16.msra.mxu0 %v909
    %1155 = vmatprep.subr.bf16.mxu0 %v918
    %1156 = vmatpush1.bf16.msra.mxu0 %v917
    %1157 = vmatprep.subr.bf16.mxu0 %v926
    %1158 = vmatpush1.bf16.msra.mxu0 %v925
    %1159 = vmatprep.subr.bf16.mxu0 %v934
    %1160 = vmatpush1.bf16.msra.mxu0 %v933
    %1161 = vmatprep.subr.bf16.mxu0 %v942
    %1162 = vmatpush1.bf16.msra.mxu0 %v941
    %1163 = vmatprep.subr.bf16.mxu0 %v950
    %1164 = vmatpush1.bf16.msra.mxu0 %v949
    %1165 = vmatprep.subr.bf16.mxu0 %v958
    %1166 = vmatpush1.bf16.msra.mxu0 %v957
    %1167 = vmatprep.subr.bf16.mxu0 %v966
    %1168 = vmatpush1.bf16.msra.mxu0 %v965
    %1169 = vmatprep.subr.bf16.mxu0 %v974
    %1170 = vmatpush1.bf16.msra.mxu0 %v973
    %1171 = vmatprep.subr.bf16.mxu0 %v982
    %1172 = vmatpush1.bf16.msra.mxu0 %v981
    %1173 = vmatprep.subr.bf16.mxu0 %v990
    %1174 = vmatpush1.bf16.msra.mxu0 %v989
    %1175 = vmatprep.subr.bf16.mxu0 %v998
    %1176 = vmatpush1.bf16.msra.mxu0 %v997
    %1177 = vmatprep.subr.bf16.mxu0 %v1006
    %1178 = vmatpush1.bf16.msra.mxu0 %v1005
    %1179 = vmatprep.subr.bf16.mxu0 %v1014
    %1180 = vmatpush1.bf16.msra.mxu0 %v1013
    %1181 = vmatprep.mubr.bf16.mxu0 %v380
    %1182 = vmatmul.mubr.bf16.gmra.mrb[0].mxu0 %v379
    %v1183 = vpop.f32.mrb[0].mxu0
    %v1184 = vadd.f32 0.0, %v1183
    %v1185 = vpop.f32.mrb[0].mxu0
    %v1186 = vadd.f32 0.0, %v1185
    %v1187 = vpop.f32.mrb[0].mxu0
    %v1188 = vpop.f32.mrb[0].mxu0
    %1189 = vdwg.mxu0
    %1190 = vmatprep.subr.bf16.mxu0 %v896
    %1191 = vmatpush1.bf16.msra.mxu0 %v895
    %1192 = vmatprep.subr.bf16.mxu0 %v904
    %1193 = vmatpush1.bf16.msra.mxu0 %v903
    %1194 = vmatprep.subr.bf16.mxu0 %v912
    %1195 = vmatpush1.bf16.msra.mxu0 %v911
    %1196 = vmatprep.subr.bf16.mxu0 %v920
    %1197 = vmatpush1.bf16.msra.mxu0 %v919
    %1198 = vmatprep.subr.bf16.mxu0 %v928
    %1199 = vmatpush1.bf16.msra.mxu0 %v927
    %1200 = vmatprep.subr.bf16.mxu0 %v936
    %1201 = vmatpush1.bf16.msra.mxu0 %v935
    %1202 = vmatprep.subr.bf16.mxu0 %v944
    %1203 = vmatpush1.bf16.msra.mxu0 %v943
    %1204 = vmatprep.subr.bf16.mxu0 %v952
    %1205 = vmatpush1.bf16.msra.mxu0 %v951
    %1206 = vmatprep.subr.bf16.mxu0 %v960
    %1207 = vmatpush1.bf16.msra.mxu0 %v959
    %1208 = vmatprep.subr.bf16.mxu0 %v968
    %1209 = vmatpush1.bf16.msra.mxu0 %v967
    %1210 = vmatprep.subr.bf16.mxu0 %v976
    %1211 = vmatpush1.bf16.msra.mxu0 %v975
    %1212 = vmatprep.subr.bf16.mxu0 %v984
    %1213 = vmatpush1.bf16.msra.mxu0 %v983
    %1214 = vmatprep.subr.bf16.mxu0 %v992
    %1215 = vmatpush1.bf16.msra.mxu0 %v991
    %1216 = vmatprep.subr.bf16.mxu0 %v1000
    %1217 = vmatpush1.bf16.msra.mxu0 %v999
    %1218 = vmatprep.subr.bf16.mxu0 %v1008
    %1219 = vmatpush1.bf16.msra.mxu0 %v1007
    %1220 = vmatprep.subr.bf16.mxu0 %v1016
    %1221 = vmatpush1.bf16.msra.mxu0 %v1015
    %1222 = vmatprep.mubr.bf16.mxu0 %v380
    %1223 = vmatmul.mubr.bf16.gmra.mrb[0].mxu0 %v379
    %v1224 = vpop.f32.mrb[0].mxu0
    %v1225 = vadd.f32 0.0, %v1224
    %v1226 = vpop.f32.mrb[0].mxu0
    %v1227 = vadd.f32 0.0, %v1226
    %v1228 = vpop.f32.mrb[0].mxu0
    %v1229 = vpop.f32.mrb[0].mxu0
    %1230 = vdwg.mxu0
    %1231 = vmatprep.subr.bf16.mxu0 %v898
    %1232 = vmatpush1.bf16.msra.mxu0 %v897
    %1233 = vmatprep.subr.bf16.mxu0 %v906
    %1234 = vmatpush1.bf16.msra.mxu0 %v905
    %1235 = vmatprep.subr.bf16.mxu0 %v914
    %1236 = vmatpush1.bf16.msra.mxu0 %v913
    %1237 = vmatprep.subr.bf16.mxu0 %v922
    %1238 = vmatpush1.bf16.msra.mxu0 %v921
    %1239 = vmatprep.subr.bf16.mxu0 %v930
    %1240 = vmatpush1.bf16.msra.mxu0 %v929
    %1241 = vmatprep.subr.bf16.mxu0 %v938
    %1242 = vmatpush1.bf16.msra.mxu0 %v937
    %1243 = vmatprep.subr.bf16.mxu0 %v946
    %1244 = vmatpush1.bf16.msra.mxu0 %v945
    %1245 = vmatprep.subr.bf16.mxu0 %v954
    %1246 = vmatpush1.bf16.msra.mxu0 %v953
    %1247 = vmatprep.subr.bf16.mxu0 %v962
    %1248 = vmatpush1.bf16.msra.mxu0 %v961
    %1249 = vmatprep.subr.bf16.mxu0 %v970
    %1250 = vmatpush1.bf16.msra.mxu0 %v969
    %1251 = vmatprep.subr.bf16.mxu0 %v978
    %1252 = vmatpush1.bf16.msra.mxu0 %v977
    %1253 = vmatprep.subr.bf16.mxu0 %v986
    %1254 = vmatpush1.bf16.msra.mxu0 %v985
    %1255 = vmatprep.subr.bf16.mxu0 %v994
    %1256 = vmatpush1.bf16.msra.mxu0 %v993
    %1257 = vmatprep.subr.bf16.mxu0 %v1002
    %1258 = vmatpush1.bf16.msra.mxu0 %v1001
    %1259 = vmatprep.subr.bf16.mxu0 %v1010
    %1260 = vmatpush1.bf16.msra.mxu0 %v1009
    %1261 = vmatprep.subr.bf16.mxu0 %v1018
    %1262 = vmatpush1.bf16.msra.mxu0 %v1017
    %1263 = vmatprep.mubr.bf16.mxu0 %v380
    %1264 = vmatmul.mubr.bf16.gmra.mrb[0].mxu0 %v379
    %v1265 = vpop.f32.mrb[0].mxu0
    %v1266 = vadd.f32 0.0, %v1265
    %v1267 = vpop.f32.mrb[0].mxu0
    %v1268 = vadd.f32 0.0, %v1267
    %v1269 = vpop.f32.mrb[0].mxu0
    %v1270 = vpop.f32.mrb[0].mxu0
    %1271 = vdwg.mxu0
    %1272 = vmatprep.subr.bf16.mxu0 %v900
    %1273 = vmatpush1.bf16.msra.mxu0 %v899
    %1274 = vmatprep.subr.bf16.mxu0 %v908
    %1275 = vmatpush1.bf16.msra.mxu0 %v907
    %1276 = vmatprep.subr.bf16.mxu0 %v916
    %1277 = vmatpush1.bf16.msra.mxu0 %v915
    %1278 = vmatprep.subr.bf16.mxu0 %v924
    %1279 = vmatpush1.bf16.msra.mxu0 %v923
    %1280 = vmatprep.subr.bf16.mxu0 %v932
    %1281 = vmatpush1.bf16.msra.mxu0 %v931
    %1282 = vmatprep.subr.bf16.mxu0 %v940
    %1283 = vmatpush1.bf16.msra.mxu0 %v939
    %1284 = vmatprep.subr.bf16.mxu0 %v948
    %1285 = vmatpush1.bf16.msra.mxu0 %v947
    %1286 = vmatprep.subr.bf16.mxu0 %v956
    %1287 = vmatpush1.bf16.msra.mxu0 %v955
    %1288 = vmatprep.subr.bf16.mxu0 %v964
    %1289 = vmatpush1.bf16.msra.mxu0 %v963
    %1290 = vmatprep.subr.bf16.mxu0 %v972
    %1291 = vmatpush1.bf16.msra.mxu0 %v971
    %1292 = vmatprep.subr.bf16.mxu0 %v980
    %1293 = vmatpush1.bf16.msra.mxu0 %v979
    %1294 = vmatprep.subr.bf16.mxu0 %v988
    %1295 = vmatpush1.bf16.msra.mxu0 %v987
    %1296 = vmatprep.subr.bf16.mxu0 %v996
    %1297 = vmatpush1.bf16.msra.mxu0 %v995
    %1298 = vmatprep.subr.bf16.mxu0 %v1004
    %1299 = vmatpush1.bf16.msra.mxu0 %v1003
    %1300 = vmatprep.subr.bf16.mxu0 %v1012
    %1301 = vmatpush1.bf16.msra.mxu0 %v1011
    %1302 = vmatprep.subr.bf16.mxu0 %v1020
    %1303 = vmatpush1.bf16.msra.mxu0 %v1019
    %1304 = vmatprep.mubr.bf16.mxu0 %v380
    %1305 = vmatmul.mubr.bf16.gmra.mrb[0].mxu0 %v379
    %v1306 = vpop.f32.mrb[0].mxu0
    %v1307 = vadd.f32 0.0, %v1306
    %v1308 = vpop.f32.mrb[0].mxu0
    %v1309 = vadd.f32 0.0, %v1308
    %v1310 = vpop.f32.mrb[0].mxu0
    %v1311 = vpop.f32.mrb[0].mxu0
    %1312 = vdwg.mxu0
    %s1313 = scalar_lea.vmem [#allocation2], 1
    %v1314 = vld [vmem:[%s1313] ss:$8 sm:$0xf]
    %v1319 = vcombine.low %v1184, %v1186
    %v1320 = vcombine.low %v1225, %v1227
    %v1322 = vunpack.c.l.s4 1966171168
    %v1323 = vunpack.c.0.s8 %v1322
    %v1324 = vlaneseq
    %v1325 = vshrl.u32 %v1324, 7
    %v1326 = vsub.s32 %v1323, %v1325
    %v1327 = vrot.slane %v1319, %v1326
    %v1329 = vunpack.c.l.s4 1966171168
    %v1330 = vunpack.c.0.s8 %v1329
    %v1331 = vlaneseq
    %v1332 = vshrl.u32 %v1331, 7
    %v1333 = vsub.s32 %v1330, %v1332
    %v1334 = vrot.slane %v1320, %v1333
    %v1335 = vcombine.low %v1327, %v1334
    %v1337 = vunpack.c.l.s4 1966171168
    %v1338 = vunpack.c.0.s8 %v1337
    %v1339 = vlaneseq
    %v1340 = vshrl.u32 %v1339, 7
    %v1341 = vsub.s32 %v1338, %v1340
    %v1342 = vrot.slane %v1335, %v1341
    %v1344 = vadd.f32 %v1314, %v1342
    %v1345 = vld [vmem:[%s4] sm:$0xf]
    %v1347 = vlaneseq
    %v1348 = vshrl.u32 %v1347, 7
    %v1349 = vsub.s32 0, %v1348
    %v1350 = vrot.slane %v1345, %v1349
    %v1351 = vlaneseq
    %v1352 = vshrl.u32 %v1351, 7
    %v1353 = vsub.s32 1, %v1352
    %v1354 = vrot.slane %v1345, %v1353
    %v1355 = vlaneseq
    %v1356 = vshrl.u32 %v1355, 7
    %v1357 = vsub.s32 2, %v1356
    %v1358 = vrot.slane %v1345, %v1357
    %v1359 = vlaneseq
    %v1360 = vshrl.u32 %v1359, 7
    %v1361 = vsub.s32 3, %v1360
    %v1362 = vrot.slane %v1345, %v1361
    %v1367 = vadd.f32 %v1266, %v1350
    %v1368 = vadd.f32 %v1268, %v1354
    %v1369 = vadd.f32 %v1307, %v1358
    %v1370 = vadd.f32 %v1309, %v1362
    %v1371 = vxor.u32 %v1367, 2147483648
    %v1372 = vxor.u32 %v1368, 2147483648
    %v1373 = vxor.u32 %v1369, 2147483648
    %v1374 = vmul.f32 %v1371, 1.442695
    %v1375 = vpow.pop %v1374
    %v1376 = vmul.f32 %v1372, 1.442695
    %v1377 = vpow.pop %v1376
    %v1378 = vmul.f32 %v1373, 1.442695
    %v1379 = vpow.pop %v1378
    %v1380 = vadd.f32 %v1375, 1.0
    %v1381 = vadd.f32 %v1377, 1.0
    %v1382 = vadd.f32 %v1379, 1.0
    %v1383 = vrcp.pop %v1380
    %v1384 = vmul.f32 1.0, %v1383
    %v1385 = vrcp.pop %v1381
    %v1386 = vmul.f32 1.0, %v1385
    %v1387 = vrcp.pop %v1382
    %v1388 = vmul.f32 1.0, %v1387
    %v1389 = vtanh.pop %v1370
    %v1390 = vmul.f32 %v1386, 0.0
    %v1391 = vmul.f32 %v1384, %v1389
    %v1392 = vadd.f32 %v1390, %v1391
    %v1393 = vtanh.pop %v1392
    %v1394 = vmul.f32 %v1388, %v1393
    %v1395 = vxor.u32 %v1344, 2147483648
    %v1396 = vmul.f32 %v1395, 1.442695
    %v1397 = vpow.pop %v1396
    %v1398 = vadd.f32 %v1397, 1.0
    %v1399 = vrcp.pop %v1398
    %v1400 = vmul.f32 1.0, %v1399
    %v1402 = vrot.slane %v1344, 3
    %v1404 = vtanh.pop %v1402
    %v1406 = vrot.slane %v1400, 1
    %v1408 = vmul.f32 %v1406, %v374
    %v1409 = vmul.f32 %v1400, %v1404
    %v1410 = vadd.f32 %v1408, %v1409
    %v1411 = vtanh.pop %v1410
    %v1412 = vrot.slane %v1400, 2
    %v1414 = vmul.f32 %v1412, %v1411
    %v1415 = vpack.c.bf16 %v1414, %v1414
    %v1416 = vpack.c.bf16 %v1394, %v1394
    %1417 = vmatprep.subr.bf16.mxu0 %v894
    %1418 = vmatpush1.bf16.msra.mxu0 %v893
    %1419 = vmatprep.subr.bf16.mxu0 %v902
    %1420 = vmatpush1.bf16.msra.mxu0 %v901
    %1421 = vmatprep.subr.bf16.mxu0 %v910
    %1422 = vmatpush1.bf16.msra.mxu0 %v909
    %1423 = vmatprep.subr.bf16.mxu0 %v918
    %1424 = vmatpush1.bf16.msra.mxu0 %v917
    %1425 = vmatprep.subr.bf16.mxu0 %v926
    %1426 = vmatpush1.bf16.msra.mxu0 %v925
    %1427 = vmatprep.subr.bf16.mxu0 %v934
    %1428 = vmatpush1.bf16.msra.mxu0 %v933
    %1429 = vmatprep.subr.bf16.mxu0 %v942
    %1430 = vmatpush1.bf16.msra.mxu0 %v941
    %1431 = vmatprep.subr.bf16.mxu0 %v950
    %1432 = vmatpush1.bf16.msra.mxu0 %v949
    %1433 = vmatprep.subr.bf16.mxu0 %v958
    %1434 = vmatpush1.bf16.msra.mxu0 %v957
    %1435 = vmatprep.subr.bf16.mxu0 %v966
    %1436 = vmatpush1.bf16.msra.mxu0 %v965
    %1437 = vmatprep.subr.bf16.mxu0 %v974
    %1438 = vmatpush1.bf16.msra.mxu0 %v973
    %1439 = vmatprep.subr.bf16.mxu0 %v982
    %1440 = vmatpush1.bf16.msra.mxu0 %v981
    %1441 = vmatprep.subr.bf16.mxu0 %v990
    %1442 = vmatpush1.bf16.msra.mxu0 %v989
    %1443 = vmatprep.subr.bf16.mxu0 %v998
    %1444 = vmatpush1.bf16.msra.mxu0 %v997
    %1445 = vmatprep.subr.bf16.mxu0 %v1006
    %1446 = vmatpush1.bf16.msra.mxu0 %v1005
    %1447 = vmatprep.subr.bf16.mxu0 %v1014
    %1448 = vmatpush1.bf16.msra.mxu0 %v1013
    %1449 = vmatprep.mubr.bf16.mxu0 %v1416
    %1450 = vmatmul.mubr.bf16.gmra.mrb[0].mxu0 %v1415
    %v1451 = vpop.f32.mrb[0].mxu0
    %v1452 = vadd.f32 0.0, %v1451
    %v1453 = vpop.f32.mrb[0].mxu0
    %v1454 = vadd.f32 0.0, %v1453
    %v1455 = vpop.f32.mrb[0].mxu0
    %v1456 = vpop.f32.mrb[0].mxu0
    %1457 = vdwg.mxu0
    %1458 = vmatprep.subr.bf16.mxu0 %v896
    %1459 = vmatpush1.bf16.msra.mxu0 %v895
    %1460 = vmatprep.subr.bf16.mxu0 %v904
    %1461 = vmatpush1.bf16.msra.mxu0 %v903
    %1462 = vmatprep.subr.bf16.mxu0 %v912
    %1463 = vmatpush1.bf16.msra.mxu0 %v911
    %1464 = vmatprep.subr.bf16.mxu0 %v920
    %1465 = vmatpush1.bf16.msra.mxu0 %v919
    %1466 = vmatprep.subr.bf16.mxu0 %v928
    %1467 = vmatpush1.bf16.msra.mxu0 %v927
    %1468 = vmatprep.subr.bf16.mxu0 %v936
    %1469 = vmatpush1.bf16.msra.mxu0 %v935
    %1470 = vmatprep.subr.bf16.mxu0 %v944
    %1471 = vmatpush1.bf16.msra.mxu0 %v943
    %1472 = vmatprep.subr.bf16.mxu0 %v952
    %1473 = vmatpush1.bf16.msra.mxu0 %v951
    %1474 = vmatprep.subr.bf16.mxu0 %v960
    %1475 = vmatpush1.bf16.msra.mxu0 %v959
    %1476 = vmatprep.subr.bf16.mxu0 %v968
    %1477 = vmatpush1.bf16.msra.mxu0 %v967
    %1478 = vmatprep.subr.bf16.mxu0 %v976
    %1479 = vmatpush1.bf16.msra.mxu0 %v975
    %1480 = vmatprep.subr.bf16.mxu0 %v984
    %1481 = vmatpush1.bf16.msra.mxu0 %v983
    %1482 = vmatprep.subr.bf16.mxu0 %v992
    %1483 = vmatpush1.bf16.msra.mxu0 %v991
    %1484 = vmatprep.subr.bf16.mxu0 %v1000
    %1485 = vmatpush1.bf16.msra.mxu0 %v999
    %1486 = vmatprep.subr.bf16.mxu0 %v1008
    %1487 = vmatpush1.bf16.msra.mxu0 %v1007
    %1488 = vmatprep.subr.bf16.mxu0 %v1016
    %1489 = vmatpush1.bf16.msra.mxu0 %v1015
    %1490 = vmatprep.mubr.bf16.mxu0 %v1416
    %1491 = vmatmul.mubr.bf16.gmra.mrb[0].mxu0 %v1415
    %v1492 = vpop.f32.mrb[0].mxu0
    %v1493 = vadd.f32 0.0, %v1492
    %v1494 = vpop.f32.mrb[0].mxu0
    %v1495 = vadd.f32 0.0, %v1494
    %v1496 = vpop.f32.mrb[0].mxu0
    %v1497 = vpop.f32.mrb[0].mxu0
    %1498 = vdwg.mxu0
    %1499 = vmatprep.subr.bf16.mxu0 %v898
    %1500 = vmatpush1.bf16.msra.mxu0 %v897
    %1501 = vmatprep.subr.bf16.mxu0 %v906
    %1502 = vmatpush1.bf16.msra.mxu0 %v905
    %1503 = vmatprep.subr.bf16.mxu0 %v914
    %1504 = vmatpush1.bf16.msra.mxu0 %v913
    %1505 = vmatprep.subr.bf16.mxu0 %v922
    %1506 = vmatpush1.bf16.msra.mxu0 %v921
    %1507 = vmatprep.subr.bf16.mxu0 %v930
    %1508 = vmatpush1.bf16.msra.mxu0 %v929
    %1509 = vmatprep.subr.bf16.mxu0 %v938
    %1510 = vmatpush1.bf16.msra.mxu0 %v937
    %1511 = vmatprep.subr.bf16.mxu0 %v946
    %1512 = vmatpush1.bf16.msra.mxu0 %v945
    %1513 = vmatprep.subr.bf16.mxu0 %v954
    %1514 = vmatpush1.bf16.msra.mxu0 %v953
    %1515 = vmatprep.subr.bf16.mxu0 %v962
    %1516 = vmatpush1.bf16.msra.mxu0 %v961
    %1517 = vmatprep.subr.bf16.mxu0 %v970
    %1518 = vmatpush1.bf16.msra.mxu0 %v969
    %1519 = vmatprep.subr.bf16.mxu0 %v978
    %1520 = vmatpush1.bf16.msra.mxu0 %v977
    %1521 = vmatprep.subr.bf16.mxu0 %v986
    %1522 = vmatpush1.bf16.msra.mxu0 %v985
    %1523 = vmatprep.subr.bf16.mxu0 %v994
    %1524 = vmatpush1.bf16.msra.mxu0 %v993
    %1525 = vmatprep.subr.bf16.mxu0 %v1002
    %1526 = vmatpush1.bf16.msra.mxu0 %v1001
    %1527 = vmatprep.subr.bf16.mxu0 %v1010
    %1528 = vmatpush1.bf16.msra.mxu0 %v1009
    %1529 = vmatprep.subr.bf16.mxu0 %v1018
    %1530 = vmatpush1.bf16.msra.mxu0 %v1017
    %1531 = vmatprep.mubr.bf16.mxu0 %v1416
    %1532 = vmatmul.mubr.bf16.gmra.mrb[0].mxu0 %v1415
    %v1533 = vpop.f32.mrb[0].mxu0
    %v1534 = vadd.f32 0.0, %v1533
    %v1535 = vpop.f32.mrb[0].mxu0
    %v1536 = vadd.f32 0.0, %v1535
    %v1537 = vpop.f32.mrb[0].mxu0
    %v1538 = vpop.f32.mrb[0].mxu0
    %1539 = vdwg.mxu0
    %1540 = vmatprep.subr.bf16.mxu0 %v900
    %1541 = vmatpush1.bf16.msra.mxu0 %v899
    %1542 = vmatprep.subr.bf16.mxu0 %v908
    %1543 = vmatpush1.bf16.msra.mxu0 %v907
    %1544 = vmatprep.subr.bf16.mxu0 %v916
    %1545 = vmatpush1.bf16.msra.mxu0 %v915
    %1546 = vmatprep.subr.bf16.mxu0 %v924
    %1547 = vmatpush1.bf16.msra.mxu0 %v923
    %1548 = vmatprep.subr.bf16.mxu0 %v932
    %1549 = vmatpush1.bf16.msra.mxu0 %v931
    %1550 = vmatprep.subr.bf16.mxu0 %v940
    %1551 = vmatpush1.bf16.msra.mxu0 %v939
    %1552 = vmatprep.subr.bf16.mxu0 %v948
    %1553 = vmatpush1.bf16.msra.mxu0 %v947
    %1554 = vmatprep.subr.bf16.mxu0 %v956
    %1555 = vmatpush1.bf16.msra.mxu0 %v955
    %1556 = vmatprep.subr.bf16.mxu0 %v964
    %1557 = vmatpush1.bf16.msra.mxu0 %v963
    %1558 = vmatprep.subr.bf16.mxu0 %v972
    %1559 = vmatpush1.bf16.msra.mxu0 %v971
    %1560 = vmatprep.subr.bf16.mxu0 %v980
    %1561 = vmatpush1.bf16.msra.mxu0 %v979
    %1562 = vmatprep.subr.bf16.mxu0 %v988
    %1563 = vmatpush1.bf16.msra.mxu0 %v987
    %1564 = vmatprep.subr.bf16.mxu0 %v996
    %1565 = vmatpush1.bf16.msra.mxu0 %v995
    %1566 = vmatprep.subr.bf16.mxu0 %v1004
    %1567 = vmatpush1.bf16.msra.mxu0 %v1003
    %1568 = vmatprep.subr.bf16.mxu0 %v1012
    %1569 = vmatpush1.bf16.msra.mxu0 %v1011
    %1570 = vmatprep.subr.bf16.mxu0 %v1020
    %1571 = vmatpush1.bf16.msra.mxu0 %v1019
    %1572 = vmatprep.mubr.bf16.mxu0 %v1416
    %1573 = vmatmul.mubr.bf16.gmra.mrb[0].mxu0 %v1415
    %v1574 = vpop.f32.mrb[0].mxu0
    %v1575 = vadd.f32 0.0, %v1574
    %v1576 = vpop.f32.mrb[0].mxu0
    %v1577 = vadd.f32 0.0, %v1576
    %v1578 = vpop.f32.mrb[0].mxu0
    %v1579 = vpop.f32.mrb[0].mxu0
    %1580 = vdwg.mxu0
    %s1581 = scalar_lea.vmem [#allocation2], 2
    %v1582 = vld [vmem:[%s1581] ss:$8 sm:$0xf]
    %v1587 = vcombine.low %v1452, %v1454
    %v1588 = vcombine.low %v1493, %v1495
    %v1590 = vunpack.c.l.s4 1966171168
    %v1591 = vunpack.c.0.s8 %v1590
    %v1592 = vlaneseq
    %v1593 = vshrl.u32 %v1592, 7
    %v1594 = vsub.s32 %v1591, %v1593
    %v1595 = vrot.slane %v1587, %v1594
    %v1597 = vunpack.c.l.s4 1966171168
    %v1598 = vunpack.c.0.s8 %v1597
    %v1599 = vlaneseq
    %v1600 = vshrl.u32 %v1599, 7
    %v1601 = vsub.s32 %v1598, %v1600
    %v1602 = vrot.slane %v1588, %v1601
    %v1603 = vcombine.low %v1595, %v1602
    %v1605 = vunpack.c.l.s4 1966171168
    %v1606 = vunpack.c.0.s8 %v1605
    %v1607 = vlaneseq
    %v1608 = vshrl.u32 %v1607, 7
    %v1609 = vsub.s32 %v1606, %v1608
    %v1610 = vrot.slane %v1603, %v1609
    %v1612 = vadd.f32 %v1582, %v1610
    %v1613 = vadd.f32 %v1534, %v1350
    %v1614 = vadd.f32 %v1536, %v1354
    %v1615 = vadd.f32 %v1575, %v1358
    %v1616 = vadd.f32 %v1577, %v1362
    %v1617 = vxor.u32 %v1613, 2147483648
    %v1618 = vxor.u32 %v1614, 2147483648
    %v1619 = vxor.u32 %v1615, 2147483648
    %v1620 = vmul.f32 %v1617, 1.442695
    %v1621 = vpow.pop %v1620
    %v1622 = vmul.f32 %v1618, 1.442695
    %v1623 = vpow.pop %v1622
    %v1624 = vmul.f32 %v1619, 1.442695
    %v1625 = vpow.pop %v1624
    %v1626 = vadd.f32 %v1621, 1.0
    %v1627 = vadd.f32 %v1623, 1.0
    %v1628 = vadd.f32 %v1625, 1.0
    %v1629 = vrcp.pop %v1626
    %v1630 = vmul.f32 1.0, %v1629
    %v1631 = vrcp.pop %v1627
    %v1632 = vmul.f32 1.0, %v1631
    %v1633 = vrcp.pop %v1628
    %v1634 = vmul.f32 1.0, %v1633
    %v1635 = vtanh.pop %v1616
    %v1636 = vmul.f32 %v1632, %v1392
    %v1637 = vmul.f32 %v1630, %v1635
    %v1638 = vadd.f32 %v1636, %v1637
    %v1639 = vtanh.pop %v1638
    %v1640 = vmul.f32 %v1634, %v1639
    %v1641 = vxor.u32 %v1612, 2147483648
    %v1642 = vmul.f32 %v1641, 1.442695
    %v1643 = vpow.pop %v1642
    %v1644 = vadd.f32 %v1643, 1.0
    %v1645 = vrcp.pop %v1644
    %v1646 = vmul.f32 1.0, %v1645
    %v1648 = vrot.slane %v1612, 3
    %v1650 = vtanh.pop %v1648
    %v1652 = vrot.slane %v1646, 1
    %v1654 = vmul.f32 %v1652, %v1410
    %v1655 = vmul.f32 %v1646, %v1650
    %v1656 = vadd.f32 %v1654, %v1655
    %v1657 = vtanh.pop %v1656
    %v1658 = vrot.slane %v1646, 2
    %v1660 = vmul.f32 %v1658, %v1657
    %v1661 = vpack.c.bf16 %v1660, %v1660
    %v1662 = vpack.c.bf16 %v1640, %v1640
    %1663 = vmatprep.subr.bf16.mxu0 %v894
    %1664 = vmatpush1.bf16.msra.mxu0 %v893
    %1665 = vmatprep.subr.bf16.mxu0 %v902
    %1666 = vmatpush1.bf16.msra.mxu0 %v901
    %1667 = vmatprep.subr.bf16.mxu0 %v910
    %1668 = vmatpush1.bf16.msra.mxu0 %v909
    %1669 = vmatprep.subr.bf16.mxu0 %v918
    %1670 = vmatpush1.bf16.msra.mxu0 %v917
    %1671 = vmatprep.subr.bf16.mxu0 %v926
    %1672 = vmatpush1.bf16.msra.mxu0 %v925
    %1673 = vmatprep.subr.bf16.mxu0 %v934
    %1674 = vmatpush1.bf16.msra.mxu0 %v933
    %1675 = vmatprep.subr.bf16.mxu0 %v942
    %1676 = vmatpush1.bf16.msra.mxu0 %v941
    %1677 = vmatprep.subr.bf16.mxu0 %v950
    %1678 = vmatpush1.bf16.msra.mxu0 %v949
    %1679 = vmatprep.subr.bf16.mxu0 %v958
    %1680 = vmatpush1.bf16.msra.mxu0 %v957
    %1681 = vmatprep.subr.bf16.mxu0 %v966
    %1682 = vmatpush1.bf16.msra.mxu0 %v965
    %1683 = vmatprep.subr.bf16.mxu0 %v974
    %1684 = vmatpush1.bf16.msra.mxu0 %v973
    %1685 = vmatprep.subr.bf16.mxu0 %v982
    %1686 = vmatpush1.bf16.msra.mxu0 %v981
    %1687 = vmatprep.subr.bf16.mxu0 %v990
    %1688 = vmatpush1.bf16.msra.mxu0 %v989
    %1689 = vmatprep.subr.bf16.mxu0 %v998
    %1690 = vmatpush1.bf16.msra.mxu0 %v997
    %1691 = vmatprep.subr.bf16.mxu0 %v1006
    %1692 = vmatpush1.bf16.msra.mxu0 %v1005
    %1693 = vmatprep.subr.bf16.mxu0 %v1014
    %1694 = vmatpush1.bf16.msra.mxu0 %v1013
    %1695 = vmatprep.mubr.bf16.mxu0 %v1662
    %1696 = vmatmul.mubr.bf16.gmra.mrb[0].mxu0 %v1661
    %v1697 = vpop.f32.mrb[0].mxu0
    %v1698 = vadd.f32 0.0, %v1697
    %v1699 = vpop.f32.mrb[0].mxu0
    %v1700 = vadd.f32 0.0, %v1699
    %v1701 = vpop.f32.mrb[0].mxu0
    %v1702 = vpop.f32.mrb[0].mxu0
    %1703 = vdwg.mxu0
    %1704 = vmatprep.subr.bf16.mxu0 %v896
    %1705 = vmatpush1.bf16.msra.mxu0 %v895
    %1706 = vmatprep.subr.bf16.mxu0 %v904
    %1707 = vmatpush1.bf16.msra.mxu0 %v903
    %1708 = vmatprep.subr.bf16.mxu0 %v912
    %1709 = vmatpush1.bf16.msra.mxu0 %v911
    %1710 = vmatprep.subr.bf16.mxu0 %v920
    %1711 = vmatpush1.bf16.msra.mxu0 %v919
    %1712 = vmatprep.subr.bf16.mxu0 %v928
    %1713 = vmatpush1.bf16.msra.mxu0 %v927
    %1714 = vmatprep.subr.bf16.mxu0 %v936
    %1715 = vmatpush1.bf16.msra.mxu0 %v935
    %1716 = vmatprep.subr.bf16.mxu0 %v944
    %1717 = vmatpush1.bf16.msra.mxu0 %v943
    %1718 = vmatprep.subr.bf16.mxu0 %v952
    %1719 = vmatpush1.bf16.msra.mxu0 %v951
    %1720 = vmatprep.subr.bf16.mxu0 %v960
    %1721 = vmatpush1.bf16.msra.mxu0 %v959
    %1722 = vmatprep.subr.bf16.mxu0 %v968
    %1723 = vmatpush1.bf16.msra.mxu0 %v967
    %1724 = vmatprep.subr.bf16.mxu0 %v976
    %1725 = vmatpush1.bf16.msra.mxu0 %v975
    %1726 = vmatprep.subr.bf16.mxu0 %v984
    %1727 = vmatpush1.bf16.msra.mxu0 %v983
    %1728 = vmatprep.subr.bf16.mxu0 %v992
    %1729 = vmatpush1.bf16.msra.mxu0 %v991
    %1730 = vmatprep.subr.bf16.mxu0 %v1000
    %1731 = vmatpush1.bf16.msra.mxu0 %v999
    %1732 = vmatprep.subr.bf16.mxu0 %v1008
    %1733 = vmatpush1.bf16.msra.mxu0 %v1007
    %1734 = vmatprep.subr.bf16.mxu0 %v1016
    %1735 = vmatpush1.bf16.msra.mxu0 %v1015
    %1736 = vmatprep.mubr.bf16.mxu0 %v1662
    %1737 = vmatmul.mubr.bf16.gmra.mrb[0].mxu0 %v1661
    %v1738 = vpop.f32.mrb[0].mxu0
    %v1739 = vadd.f32 0.0, %v1738
    %v1740 = vpop.f32.mrb[0].mxu0
    %v1741 = vadd.f32 0.0, %v1740
    %v1742 = vpop.f32.mrb[0].mxu0
    %v1743 = vpop.f32.mrb[0].mxu0
    %1744 = vdwg.mxu0
    %1745 = vmatprep.subr.bf16.mxu0 %v898
    %1746 = vmatpush1.bf16.msra.mxu0 %v897
    %1747 = vmatprep.subr.bf16.mxu0 %v906
    %1748 = vmatpush1.bf16.msra.mxu0 %v905
    %1749 = vmatprep.subr.bf16.mxu0 %v914
    %1750 = vmatpush1.bf16.msra.mxu0 %v913
    %1751 = vmatprep.subr.bf16.mxu0 %v922
    %1752 = vmatpush1.bf16.msra.mxu0 %v921
    %1753 = vmatprep.subr.bf16.mxu0 %v930
    %1754 = vmatpush1.bf16.msra.mxu0 %v929
    %1755 = vmatprep.subr.bf16.mxu0 %v938
    %1756 = vmatpush1.bf16.msra.mxu0 %v937
    %1757 = vmatprep.subr.bf16.mxu0 %v946
    %1758 = vmatpush1.bf16.msra.mxu0 %v945
    %1759 = vmatprep.subr.bf16.mxu0 %v954
    %1760 = vmatpush1.bf16.msra.mxu0 %v953
    %1761 = vmatprep.subr.bf16.mxu0 %v962
    %1762 = vmatpush1.bf16.msra.mxu0 %v961
    %1763 = vmatprep.subr.bf16.mxu0 %v970
    %1764 = vmatpush1.bf16.msra.mxu0 %v969
    %1765 = vmatprep.subr.bf16.mxu0 %v978
    %1766 = vmatpush1.bf16.msra.mxu0 %v977
    %1767 = vmatprep.subr.bf16.mxu0 %v986
    %1768 = vmatpush1.bf16.msra.mxu0 %v985
    %1769 = vmatprep.subr.bf16.mxu0 %v994
    %1770 = vmatpush1.bf16.msra.mxu0 %v993
    %1771 = vmatprep.subr.bf16.mxu0 %v1002
    %1772 = vmatpush1.bf16.msra.mxu0 %v1001
    %1773 = vmatprep.subr.bf16.mxu0 %v1010
    %1774 = vmatpush1.bf16.msra.mxu0 %v1009
    %1775 = vmatprep.subr.bf16.mxu0 %v1018
    %1776 = vmatpush1.bf16.msra.mxu0 %v1017
    %1777 = vmatprep.mubr.bf16.mxu0 %v1662
    %1778 = vmatmul.mubr.bf16.gmra.mrb[0].mxu0 %v1661
    %v1779 = vpop.f32.mrb[0].mxu0
    %v1780 = vadd.f32 0.0, %v1779
    %v1781 = vpop.f32.mrb[0].mxu0
    %v1782 = vadd.f32 0.0, %v1781
    %v1783 = vpop.f32.mrb[0].mxu0
    %v1784 = vpop.f32.mrb[0].mxu0
    %1785 = vdwg.mxu0
    %1786 = vmatprep.subr.bf16.mxu0 %v900
    %1787 = vmatpush1.bf16.msra.mxu0 %v899
    %1788 = vmatprep.subr.bf16.mxu0 %v908
    %1789 = vmatpush1.bf16.msra.mxu0 %v907
    %1790 = vmatprep.subr.bf16.mxu0 %v916
    %1791 = vmatpush1.bf16.msra.mxu0 %v915
    %1792 = vmatprep.subr.bf16.mxu0 %v924
    %1793 = vmatpush1.bf16.msra.mxu0 %v923
    %1794 = vmatprep.subr.bf16.mxu0 %v932
    %1795 = vmatpush1.bf16.msra.mxu0 %v931
    %1796 = vmatprep.subr.bf16.mxu0 %v940
    %1797 = vmatpush1.bf16.msra.mxu0 %v939
    %1798 = vmatprep.subr.bf16.mxu0 %v948
    %1799 = vmatpush1.bf16.msra.mxu0 %v947
    %1800 = vmatprep.subr.bf16.mxu0 %v956
    %1801 = vmatpush1.bf16.msra.mxu0 %v955
    %1802 = vmatprep.subr.bf16.mxu0 %v964
    %1803 = vmatpush1.bf16.msra.mxu0 %v963
    %1804 = vmatprep.subr.bf16.mxu0 %v972
    %1805 = vmatpush1.bf16.msra.mxu0 %v971
    %1806 = vmatprep.subr.bf16.mxu0 %v980
    %1807 = vmatpush1.bf16.msra.mxu0 %v979
    %1808 = vmatprep.subr.bf16.mxu0 %v988
    %1809 = vmatpush1.bf16.msra.mxu0 %v987
    %1810 = vmatprep.subr.bf16.mxu0 %v996
    %1811 = vmatpush1.bf16.msra.mxu0 %v995
    %1812 = vmatprep.subr.bf16.mxu0 %v1004
    %1813 = vmatpush1.bf16.msra.mxu0 %v1003
    %1814 = vmatprep.subr.bf16.mxu0 %v1012
    %1815 = vmatpush1.bf16.msra.mxu0 %v1011
    %1816 = vmatprep.subr.bf16.mxu0 %v1020
    %1817 = vmatpush1.bf16.msra.mxu0 %v1019
    %1818 = vmatprep.mubr.bf16.mxu0 %v1662
    %1819 = vmatmul.mubr.bf16.gmra.mrb[0].mxu0 %v1661
    %v1820 = vpop.f32.mrb[0].mxu0
    %v1821 = vadd.f32 0.0, %v1820
    %v1822 = vpop.f32.mrb[0].mxu0
    %v1823 = vadd.f32 0.0, %v1822
    %v1824 = vpop.f32.mrb[0].mxu0
    %v1825 = vpop.f32.mrb[0].mxu0
    %1826 = vdwg.mxu0
    %s1827 = scalar_lea.vmem [#allocation2], 3
    %v1828 = vld [vmem:[%s1827] ss:$8 sm:$0xf]
    %v1833 = vcombine.low %v1698, %v1700
    %v1834 = vcombine.low %v1739, %v1741
    %v1836 = vunpack.c.l.s4 1966171168
    %v1837 = vunpack.c.0.s8 %v1836
    %v1838 = vlaneseq
    %v1839 = vshrl.u32 %v1838, 7
    %v1840 = vsub.s32 %v1837, %v1839
    %v1841 = vrot.slane %v1833, %v1840
    %v1843 = vunpack.c.l.s4 1966171168
    %v1844 = vunpack.c.0.s8 %v1843
    %v1845 = vlaneseq
    %v1846 = vshrl.u32 %v1845, 7
    %v1847 = vsub.s32 %v1844, %v1846
    %v1848 = vrot.slane %v1834, %v1847
    %v1849 = vcombine.low %v1841, %v1848
    %v1851 = vunpack.c.l.s4 1966171168
    %v1852 = vunpack.c.0.s8 %v1851
    %v1853 = vlaneseq
    %v1854 = vshrl.u32 %v1853, 7
    %v1855 = vsub.s32 %v1852, %v1854
    %v1856 = vrot.slane %v1849, %v1855
    %v1858 = vadd.f32 %v1828, %v1856
    %v1859 = vadd.f32 %v1780, %v1350
    %v1860 = vadd.f32 %v1782, %v1354
    %v1861 = vadd.f32 %v1821, %v1358
    %v1862 = vadd.f32 %v1823, %v1362
    %v1863 = vxor.u32 %v1859, 2147483648
    %v1864 = vxor.u32 %v1860, 2147483648
    %v1865 = vxor.u32 %v1861, 2147483648
    %v1866 = vmul.f32 %v1863, 1.442695
    %v1867 = vpow.pop %v1866
    %v1868 = vmul.f32 %v1864, 1.442695
    %v1869 = vpow.pop %v1868
    %v1870 = vmul.f32 %v1865, 1.442695
    %v1871 = vpow.pop %v1870
    %v1872 = vadd.f32 %v1867, 1.0
    %v1873 = vadd.f32 %v1869, 1.0
    %v1874 = vadd.f32 %v1871, 1.0
    %v1875 = vrcp.pop %v1872
    %v1876 = vmul.f32 1.0, %v1875
    %v1877 = vrcp.pop %v1873
    %v1878 = vmul.f32 1.0, %v1877
    %v1879 = vrcp.pop %v1874
    %v1880 = vmul.f32 1.0, %v1879
    %v1881 = vtanh.pop %v1862
    %v1882 = vmul.f32 %v1878, %v1638
    %v1883 = vmul.f32 %v1876, %v1881
    %v1884 = vadd.f32 %v1882, %v1883
    %v1885 = vtanh.pop %v1884
    %v1886 = vmul.f32 %v1880, %v1885
    %v1887 = vxor.u32 %v1858, 2147483648
    %v1888 = vmul.f32 %v1887, 1.442695
    %v1889 = vpow.pop %v1888
    %v1890 = vadd.f32 %v1889, 1.0
    %v1891 = vrcp.pop %v1890
    %v1892 = vmul.f32 1.0, %v1891
    %v1894 = vrot.slane %v1858, 3
    %v1896 = vtanh.pop %v1894
    %v1898 = vrot.slane %v1892, 1
    %v1900 = vmul.f32 %v1898, %v1656
    %v1901 = vmul.f32 %v1892, %v1896
    %v1902 = vadd.f32 %v1900, %v1901
    %v1903 = vtanh.pop %v1902
    %v1904 = vrot.slane %v1892, 2
    %v1906 = vmul.f32 %v1904, %v1903
    %v1907 = vpack.c.bf16 %v1906, %v1906
    %v1908 = vpack.c.bf16 %v1886, %v1886
    %1909 = vmatprep.subr.bf16.mxu0 %v894
    %1910 = vmatpush1.bf16.msra.mxu0 %v893
    %1911 = vmatprep.subr.bf16.mxu0 %v902
    %1912 = vmatpush1.bf16.msra.mxu0 %v901
    %1913 = vmatprep.subr.bf16.mxu0 %v910
    %1914 = vmatpush1.bf16.msra.mxu0 %v909
    %1915 = vmatprep.subr.bf16.mxu0 %v918
    %1916 = vmatpush1.bf16.msra.mxu0 %v917
    %1917 = vmatprep.subr.bf16.mxu0 %v926
    %1918 = vmatpush1.bf16.msra.mxu0 %v925
    %1919 = vmatprep.subr.bf16.mxu0 %v934
    %1920 = vmatpush1.bf16.msra.mxu0 %v933
    %1921 = vmatprep.subr.bf16.mxu0 %v942
    %1922 = vmatpush1.bf16.msra.mxu0 %v941
    %1923 = vmatprep.subr.bf16.mxu0 %v950
    %1924 = vmatpush1.bf16.msra.mxu0 %v949
    %1925 = vmatprep.subr.bf16.mxu0 %v958
    %1926 = vmatpush1.bf16.msra.mxu0 %v957
    %1927 = vmatprep.subr.bf16.mxu0 %v966
    %1928 = vmatpush1.bf16.msra.mxu0 %v965
    %1929 = vmatprep.subr.bf16.mxu0 %v974
    %1930 = vmatpush1.bf16.msra.mxu0 %v973
    %1931 = vmatprep.subr.bf16.mxu0 %v982
    %1932 = vmatpush1.bf16.msra.mxu0 %v981
    %1933 = vmatprep.subr.bf16.mxu0 %v990
    %1934 = vmatpush1.bf16.msra.mxu0 %v989
    %1935 = vmatprep.subr.bf16.mxu0 %v998
    %1936 = vmatpush1.bf16.msra.mxu0 %v997
    %1937 = vmatprep.subr.bf16.mxu0 %v1006
    %1938 = vmatpush1.bf16.msra.mxu0 %v1005
    %1939 = vmatprep.subr.bf16.mxu0 %v1014
    %1940 = vmatpush1.bf16.msra.mxu0 %v1013
    %1941 = vmatprep.mubr.bf16.mxu0 %v1908
    %1942 = vmatmul.mubr.bf16.gmra.mrb[0].mxu0 %v1907
    %v1943 = vpop.f32.mrb[0].mxu0
    %v1944 = vadd.f32 0.0, %v1943
    %v1945 = vpop.f32.mrb[0].mxu0
    %v1946 = vadd.f32 0.0, %v1945
    %v1947 = vpop.f32.mrb[0].mxu0
    %v1948 = vpop.f32.mrb[0].mxu0
    %1949 = vdwg.mxu0
    %1950 = vmatprep.subr.bf16.mxu0 %v896
    %1951 = vmatpush1.bf16.msra.mxu0 %v895
    %1952 = vmatprep.subr.bf16.mxu0 %v904
    %1953 = vmatpush1.bf16.msra.mxu0 %v903
    %1954 = vmatprep.subr.bf16.mxu0 %v912
    %1955 = vmatpush1.bf16.msra.mxu0 %v911
    %1956 = vmatprep.subr.bf16.mxu0 %v920
    %1957 = vmatpush1.bf16.msra.mxu0 %v919
    %1958 = vmatprep.subr.bf16.mxu0 %v928
    %1959 = vmatpush1.bf16.msra.mxu0 %v927
    %1960 = vmatprep.subr.bf16.mxu0 %v936
    %1961 = vmatpush1.bf16.msra.mxu0 %v935
    %1962 = vmatprep.subr.bf16.mxu0 %v944
    %1963 = vmatpush1.bf16.msra.mxu0 %v943
    %1964 = vmatprep.subr.bf16.mxu0 %v952
    %1965 = vmatpush1.bf16.msra.mxu0 %v951
    %1966 = vmatprep.subr.bf16.mxu0 %v960
    %1967 = vmatpush1.bf16.msra.mxu0 %v959
    %1968 = vmatprep.subr.bf16.mxu0 %v968
    %1969 = vmatpush1.bf16.msra.mxu0 %v967
    %1970 = vmatprep.subr.bf16.mxu0 %v976
    %1971 = vmatpush1.bf16.msra.mxu0 %v975
    %1972 = vmatprep.subr.bf16.mxu0 %v984
    %1973 = vmatpush1.bf16.msra.mxu0 %v983
    %1974 = vmatprep.subr.bf16.mxu0 %v992
    %1975 = vmatpush1.bf16.msra.mxu0 %v991
    %1976 = vmatprep.subr.bf16.mxu0 %v1000
    %1977 = vmatpush1.bf16.msra.mxu0 %v999
    %1978 = vmatprep.subr.bf16.mxu0 %v1008
    %1979 = vmatpush1.bf16.msra.mxu0 %v1007
    %1980 = vmatprep.subr.bf16.mxu0 %v1016
    %1981 = vmatpush1.bf16.msra.mxu0 %v1015
    %1982 = vmatprep.mubr.bf16.mxu0 %v1908
    %1983 = vmatmul.mubr.bf16.gmra.mrb[0].mxu0 %v1907
    %v1984 = vpop.f32.mrb[0].mxu0
    %v1985 = vadd.f32 0.0, %v1984
    %v1986 = vpop.f32.mrb[0].mxu0
    %v1987 = vadd.f32 0.0, %v1986
    %v1988 = vpop.f32.mrb[0].mxu0
    %v1989 = vpop.f32.mrb[0].mxu0
    %1990 = vdwg.mxu0
    %1991 = vmatprep.subr.bf16.mxu0 %v898
    %1992 = vmatpush1.bf16.msra.mxu0 %v897
    %1993 = vmatprep.subr.bf16.mxu0 %v906
    %1994 = vmatpush1.bf16.msra.mxu0 %v905
    %1995 = vmatprep.subr.bf16.mxu0 %v914
    %1996 = vmatpush1.bf16.msra.mxu0 %v913
    %1997 = vmatprep.subr.bf16.mxu0 %v922
    %1998 = vmatpush1.bf16.msra.mxu0 %v921
    %1999 = vmatprep.subr.bf16.mxu0 %v930
    %2000 = vmatpush1.bf16.msra.mxu0 %v929
    %2001 = vmatprep.subr.bf16.mxu0 %v938
    %2002 = vmatpush1.bf16.msra.mxu0 %v937
    %2003 = vmatprep.subr.bf16.mxu0 %v946
    %2004 = vmatpush1.bf16.msra.mxu0 %v945
    %2005 = vmatprep.subr.bf16.mxu0 %v954
    %2006 = vmatpush1.bf16.msra.mxu0 %v953
    %2007 = vmatprep.subr.bf16.mxu0 %v962
    %2008 = vmatpush1.bf16.msra.mxu0 %v961
    %2009 = vmatprep.subr.bf16.mxu0 %v970
    %2010 = vmatpush1.bf16.msra.mxu0 %v969
    %2011 = vmatprep.subr.bf16.mxu0 %v978
    %2012 = vmatpush1.bf16.msra.mxu0 %v977
    %2013 = vmatprep.subr.bf16.mxu0 %v986
    %2014 = vmatpush1.bf16.msra.mxu0 %v985
    %2015 = vmatprep.subr.bf16.mxu0 %v994
    %2016 = vmatpush1.bf16.msra.mxu0 %v993
    %2017 = vmatprep.subr.bf16.mxu0 %v1002
    %2018 = vmatpush1.bf16.msra.mxu0 %v1001
    %2019 = vmatprep.subr.bf16.mxu0 %v1010
    %2020 = vmatpush1.bf16.msra.mxu0 %v1009
    %2021 = vmatprep.subr.bf16.mxu0 %v1018
    %2022 = vmatpush1.bf16.msra.mxu0 %v1017
    %2023 = vmatprep.mubr.bf16.mxu0 %v1908
    %2024 = vmatmul.mubr.bf16.gmra.mrb[0].mxu0 %v1907
    %v2025 = vpop.f32.mrb[0].mxu0
    %v2026 = vadd.f32 0.0, %v2025
    %v2027 = vpop.f32.mrb[0].mxu0
    %v2028 = vadd.f32 0.0, %v2027
    %v2029 = vpop.f32.mrb[0].mxu0
    %v2030 = vpop.f32.mrb[0].mxu0
    %2031 = vdwg.mxu0
    %2032 = vmatprep.subr.bf16.mxu0 %v900
    %2033 = vmatpush1.bf16.msra.mxu0 %v899
    %2034 = vmatprep.subr.bf16.mxu0 %v908
    %2035 = vmatpush1.bf16.msra.mxu0 %v907
    %2036 = vmatprep.subr.bf16.mxu0 %v916
    %2037 = vmatpush1.bf16.msra.mxu0 %v915
    %2038 = vmatprep.subr.bf16.mxu0 %v924
    %2039 = vmatpush1.bf16.msra.mxu0 %v923
    %2040 = vmatprep.subr.bf16.mxu0 %v932
    %2041 = vmatpush1.bf16.msra.mxu0 %v931
    %2042 = vmatprep.subr.bf16.mxu0 %v940
    %2043 = vmatpush1.bf16.msra.mxu0 %v939
    %2044 = vmatprep.subr.bf16.mxu0 %v948
    %2045 = vmatpush1.bf16.msra.mxu0 %v947
    %2046 = vmatprep.subr.bf16.mxu0 %v956
    %2047 = vmatpush1.bf16.msra.mxu0 %v955
    %2048 = vmatprep.subr.bf16.mxu0 %v964
    %2049 = vmatpush1.bf16.msra.mxu0 %v963
    %2050 = vmatprep.subr.bf16.mxu0 %v972
    %2051 = vmatpush1.bf16.msra.mxu0 %v971
    %2052 = vmatprep.subr.bf16.mxu0 %v980
    %2053 = vmatpush1.bf16.msra.mxu0 %v979
    %2054 = vmatprep.subr.bf16.mxu0 %v988
    %2055 = vmatpush1.bf16.msra.mxu0 %v987
    %2056 = vmatprep.subr.bf16.mxu0 %v996
    %2057 = vmatpush1.bf16.msra.mxu0 %v995
    %2058 = vmatprep.subr.bf16.mxu0 %v1004
    %2059 = vmatpush1.bf16.msra.mxu0 %v1003
    %2060 = vmatprep.subr.bf16.mxu0 %v1012
    %2061 = vmatpush1.bf16.msra.mxu0 %v1011
    %2062 = vmatprep.subr.bf16.mxu0 %v1020
    %2063 = vmatpush1.bf16.msra.mxu0 %v1019
    %2064 = vmatprep.mubr.bf16.mxu0 %v1908
    %2065 = vmatmul.mubr.bf16.gmra.mrb[0].mxu0 %v1907
    %v2066 = vpop.f32.mrb[0].mxu0
    %v2067 = vadd.f32 0.0, %v2066
    %v2068 = vpop.f32.mrb[0].mxu0
    %v2069 = vadd.f32 0.0, %v2068
    %v2070 = vpop.f32.mrb[0].mxu0
    %v2071 = vpop.f32.mrb[0].mxu0
    %2072 = vdwg.mxu0
    %s2073 = scalar_lea.vmem [#allocation2], 4
    %v2074 = vld [vmem:[%s2073] ss:$8 sm:$0xf]
    %v2079 = vcombine.low %v1944, %v1946
    %v2080 = vcombine.low %v1985, %v1987
    %v2082 = vunpack.c.l.s4 1966171168
    %v2083 = vunpack.c.0.s8 %v2082
    %v2084 = vlaneseq
    %v2085 = vshrl.u32 %v2084, 7
    %v2086 = vsub.s32 %v2083, %v2085
    %v2087 = vrot.slane %v2079, %v2086
    %v2089 = vunpack.c.l.s4 1966171168
    %v2090 = vunpack.c.0.s8 %v2089
    %v2091 = vlaneseq
    %v2092 = vshrl.u32 %v2091, 7
    %v2093 = vsub.s32 %v2090, %v2092
    %v2094 = vrot.slane %v2080, %v2093
    %v2095 = vcombine.low %v2087, %v2094
    %v2097 = vunpack.c.l.s4 1966171168
    %v2098 = vunpack.c.0.s8 %v2097
    %v2099 = vlaneseq
    %v2100 = vshrl.u32 %v2099, 7
    %v2101 = vsub.s32 %v2098, %v2100
    %v2102 = vrot.slane %v2095, %v2101
    %v2104 = vadd.f32 %v2074, %v2102
    %v2105 = vadd.f32 %v2026, %v1350
    %v2106 = vadd.f32 %v2028, %v1354
    %v2107 = vadd.f32 %v2067, %v1358
    %v2108 = vadd.f32 %v2069, %v1362
    %v2109 = vxor.u32 %v2105, 2147483648
    %v2110 = vxor.u32 %v2106, 2147483648
    %v2111 = vxor.u32 %v2107, 2147483648
    %v2112 = vmul.f32 %v2109, 1.442695
    %v2113 = vpow.pop %v2112
    %v2114 = vmul.f32 %v2110, 1.442695
    %v2115 = vpow.pop %v2114
    %v2116 = vmul.f32 %v2111, 1.442695
    %v2117 = vpow.pop %v2116
    %v2118 = vadd.f32 %v2113, 1.0
    %v2119 = vadd.f32 %v2115, 1.0
    %v2120 = vadd.f32 %v2117, 1.0
    %v2121 = vrcp.pop %v2118
    %v2122 = vmul.f32 1.0, %v2121
    %v2123 = vrcp.pop %v2119
    %v2124 = vmul.f32 1.0, %v2123
    %v2125 = vrcp.pop %v2120
    %v2126 = vmul.f32 1.0, %v2125
    %v2127 = vtanh.pop %v2108
    %v2128 = vmul.f32 %v2124, %v1884
    %v2129 = vmul.f32 %v2122, %v2127
    %v2130 = vadd.f32 %v2128, %v2129
    %v2131 = vtanh.pop %v2130
    %v2132 = vmul.f32 %v2126, %v2131
    %v2133 = vxor.u32 %v2104, 2147483648
    %v2134 = vmul.f32 %v2133, 1.442695
    %v2135 = vpow.pop %v2134
    %v2136 = vadd.f32 %v2135, 1.0
    %v2137 = vrcp.pop %v2136
    %v2138 = vmul.f32 1.0, %v2137
    %v2140 = vrot.slane %v2104, 3
    %v2142 = vtanh.pop %v2140
    %v2144 = vrot.slane %v2138, 1
    %v2146 = vmul.f32 %v2144, %v1902
    %v2147 = vmul.f32 %v2138, %v2142
    %v2148 = vadd.f32 %v2146, %v2147
    %v2149 = vtanh.pop %v2148
    %v2150 = vrot.slane %v2138, 2
    %v2152 = vmul.f32 %v2150, %v2149
    %v2153 = vpack.c.bf16 %v2152, %v2152
    %v2154 = vpack.c.bf16 %v2132, %v2132
    %2155 = vmatprep.subr.bf16.mxu0 %v894
    %2156 = vmatpush1.bf16.msra.mxu0 %v893
    %2157 = vmatprep.subr.bf16.mxu0 %v902
    %2158 = vmatpush1.bf16.msra.mxu0 %v901
    %2159 = vmatprep.subr.bf16.mxu0 %v910
    %2160 = vmatpush1.bf16.msra.mxu0 %v909
    %2161 = vmatprep.subr.bf16.mxu0 %v918
    %2162 = vmatpush1.bf16.msra.mxu0 %v917
    %2163 = vmatprep.subr.bf16.mxu0 %v926
    %2164 = vmatpush1.bf16.msra.mxu0 %v925
    %2165 = vmatprep.subr.bf16.mxu0 %v934
    %2166 = vmatpush1.bf16.msra.mxu0 %v933
    %2167 = vmatprep.subr.bf16.mxu0 %v942
    %2168 = vmatpush1.bf16.msra.mxu0 %v941
    %2169 = vmatprep.subr.bf16.mxu0 %v950
    %2170 = vmatpush1.bf16.msra.mxu0 %v949
    %2171 = vmatprep.subr.bf16.mxu0 %v958
    %2172 = vmatpush1.bf16.msra.mxu0 %v957
    %2173 = vmatprep.subr.bf16.mxu0 %v966
    %2174 = vmatpush1.bf16.msra.mxu0 %v965
    %2175 = vmatprep.subr.bf16.mxu0 %v974
    %2176 = vmatpush1.bf16.msra.mxu0 %v973
    %2177 = vmatprep.subr.bf16.mxu0 %v982
    %2178 = vmatpush1.bf16.msra.mxu0 %v981
    %2179 = vmatprep.subr.bf16.mxu0 %v990
    %2180 = vmatpush1.bf16.msra.mxu0 %v989
    %2181 = vmatprep.subr.bf16.mxu0 %v998
    %2182 = vmatpush1.bf16.msra.mxu0 %v997
    %2183 = vmatprep.subr.bf16.mxu0 %v1006
    %2184 = vmatpush1.bf16.msra.mxu0 %v1005
    %2185 = vmatprep.subr.bf16.mxu0 %v1014
    %2186 = vmatpush1.bf16.msra.mxu0 %v1013
    %2187 = vmatprep.mubr.bf16.mxu0 %v2154
    %2188 = vmatmul.mubr.bf16.gmra.mrb[0].mxu0 %v2153
    %v2189 = vpop.f32.mrb[0].mxu0
    %v2190 = vadd.f32 0.0, %v2189
    %v2191 = vpop.f32.mrb[0].mxu0
    %v2192 = vadd.f32 0.0, %v2191
    %v2193 = vpop.f32.mrb[0].mxu0
    %v2194 = vpop.f32.mrb[0].mxu0
    %2195 = vdwg.mxu0
    %2196 = vmatprep.subr.bf16.mxu0 %v896
    %2197 = vmatpush1.bf16.msra.mxu0 %v895
    %2198 = vmatprep.subr.bf16.mxu0 %v904
    %2199 = vmatpush1.bf16.msra.mxu0 %v903
    %2200 = vmatprep.subr.bf16.mxu0 %v912
    %2201 = vmatpush1.bf16.msra.mxu0 %v911
    %2202 = vmatprep.subr.bf16.mxu0 %v920
    %2203 = vmatpush1.bf16.msra.mxu0 %v919
    %2204 = vmatprep.subr.bf16.mxu0 %v928
    %2205 = vmatpush1.bf16.msra.mxu0 %v927
    %2206 = vmatprep.subr.bf16.mxu0 %v936
    %2207 = vmatpush1.bf16.msra.mxu0 %v935
    %2208 = vmatprep.subr.bf16.mxu0 %v944
    %2209 = vmatpush1.bf16.msra.mxu0 %v943
    %2210 = vmatprep.subr.bf16.mxu0 %v952
    %2211 = vmatpush1.bf16.msra.mxu0 %v951
    %2212 = vmatprep.subr.bf16.mxu0 %v960
    %2213 = vmatpush1.bf16.msra.mxu0 %v959
    %2214 = vmatprep.subr.bf16.mxu0 %v968
    %2215 = vmatpush1.bf16.msra.mxu0 %v967
    %2216 = vmatprep.subr.bf16.mxu0 %v976
    %2217 = vmatpush1.bf16.msra.mxu0 %v975
    %2218 = vmatprep.subr.bf16.mxu0 %v984
    %2219 = vmatpush1.bf16.msra.mxu0 %v983
    %2220 = vmatprep.subr.bf16.mxu0 %v992
    %2221 = vmatpush1.bf16.msra.mxu0 %v991
    %2222 = vmatprep.subr.bf16.mxu0 %v1000
    %2223 = vmatpush1.bf16.msra.mxu0 %v999
    %2224 = vmatprep.subr.bf16.mxu0 %v1008
    %2225 = vmatpush1.bf16.msra.mxu0 %v1007
    %2226 = vmatprep.subr.bf16.mxu0 %v1016
    %2227 = vmatpush1.bf16.msra.mxu0 %v1015
    %2228 = vmatprep.mubr.bf16.mxu0 %v2154
    %2229 = vmatmul.mubr.bf16.gmra.mrb[0].mxu0 %v2153
    %v2230 = vpop.f32.mrb[0].mxu0
    %v2231 = vadd.f32 0.0, %v2230
    %v2232 = vpop.f32.mrb[0].mxu0
    %v2233 = vadd.f32 0.0, %v2232
    %v2234 = vpop.f32.mrb[0].mxu0
    %v2235 = vpop.f32.mrb[0].mxu0
    %2236 = vdwg.mxu0
    %2237 = vmatprep.subr.bf16.mxu0 %v898
    %2238 = vmatpush1.bf16.msra.mxu0 %v897
    %2239 = vmatprep.subr.bf16.mxu0 %v906
    %2240 = vmatpush1.bf16.msra.mxu0 %v905
    %2241 = vmatprep.subr.bf16.mxu0 %v914
    %2242 = vmatpush1.bf16.msra.mxu0 %v913
    %2243 = vmatprep.subr.bf16.mxu0 %v922
    %2244 = vmatpush1.bf16.msra.mxu0 %v921
    %2245 = vmatprep.subr.bf16.mxu0 %v930
    %2246 = vmatpush1.bf16.msra.mxu0 %v929
    %2247 = vmatprep.subr.bf16.mxu0 %v938
    %2248 = vmatpush1.bf16.msra.mxu0 %v937
    %2249 = vmatprep.subr.bf16.mxu0 %v946
    %2250 = vmatpush1.bf16.msra.mxu0 %v945
    %2251 = vmatprep.subr.bf16.mxu0 %v954
    %2252 = vmatpush1.bf16.msra.mxu0 %v953
    %2253 = vmatprep.subr.bf16.mxu0 %v962
    %2254 = vmatpush1.bf16.msra.mxu0 %v961
    %2255 = vmatprep.subr.bf16.mxu0 %v970
    %2256 = vmatpush1.bf16.msra.mxu0 %v969
    %2257 = vmatprep.subr.bf16.mxu0 %v978
    %2258 = vmatpush1.bf16.msra.mxu0 %v977
    %2259 = vmatprep.subr.bf16.mxu0 %v986
    %2260 = vmatpush1.bf16.msra.mxu0 %v985
    %2261 = vmatprep.subr.bf16.mxu0 %v994
    %2262 = vmatpush1.bf16.msra.mxu0 %v993
    %2263 = vmatprep.subr.bf16.mxu0 %v1002
    %2264 = vmatpush1.bf16.msra.mxu0 %v1001
    %2265 = vmatprep.subr.bf16.mxu0 %v1010
    %2266 = vmatpush1.bf16.msra.mxu0 %v1009
    %2267 = vmatprep.subr.bf16.mxu0 %v1018
    %2268 = vmatpush1.bf16.msra.mxu0 %v1017
    %2269 = vmatprep.mubr.bf16.mxu0 %v2154
    %2270 = vmatmul.mubr.bf16.gmra.mrb[0].mxu0 %v2153
    %v2271 = vpop.f32.mrb[0].mxu0
    %v2272 = vadd.f32 0.0, %v2271
    %v2273 = vpop.f32.mrb[0].mxu0
    %v2274 = vadd.f32 0.0, %v2273
    %v2275 = vpop.f32.mrb[0].mxu0
    %v2276 = vpop.f32.mrb[0].mxu0
    %2277 = vdwg.mxu0
    %2278 = vmatprep.subr.bf16.mxu0 %v900
    %2279 = vmatpush1.bf16.msra.mxu0 %v899
    %2280 = vmatprep.subr.bf16.mxu0 %v908
    %2281 = vmatpush1.bf16.msra.mxu0 %v907
    %2282 = vmatprep.subr.bf16.mxu0 %v916
    %2283 = vmatpush1.bf16.msra.mxu0 %v915
    %2284 = vmatprep.subr.bf16.mxu0 %v924
    %2285 = vmatpush1.bf16.msra.mxu0 %v923
    %2286 = vmatprep.subr.bf16.mxu0 %v932
    %2287 = vmatpush1.bf16.msra.mxu0 %v931
    %2288 = vmatprep.subr.bf16.mxu0 %v940
    %2289 = vmatpush1.bf16.msra.mxu0 %v939
    %2290 = vmatprep.subr.bf16.mxu0 %v948
    %2291 = vmatpush1.bf16.msra.mxu0 %v947
    %2292 = vmatprep.subr.bf16.mxu0 %v956
    %2293 = vmatpush1.bf16.msra.mxu0 %v955
    %2294 = vmatprep.subr.bf16.mxu0 %v964
    %2295 = vmatpush1.bf16.msra.mxu0 %v963
    %2296 = vmatprep.subr.bf16.mxu0 %v972
    %2297 = vmatpush1.bf16.msra.mxu0 %v971
    %2298 = vmatprep.subr.bf16.mxu0 %v980
    %2299 = vmatpush1.bf16.msra.mxu0 %v979
    %2300 = vmatprep.subr.bf16.mxu0 %v988
    %2301 = vmatpush1.bf16.msra.mxu0 %v987
    %2302 = vmatprep.subr.bf16.mxu0 %v996
    %2303 = vmatpush1.bf16.msra.mxu0 %v995
    %2304 = vmatprep.subr.bf16.mxu0 %v1004
    %2305 = vmatpush1.bf16.msra.mxu0 %v1003
    %2306 = vmatprep.subr.bf16.mxu0 %v1012
    %2307 = vmatpush1.bf16.msra.mxu0 %v1011
    %2308 = vmatprep.subr.bf16.mxu0 %v1020
    %2309 = vmatpush1.bf16.msra.mxu0 %v1019
    %2310 = vmatprep.mubr.bf16.mxu0 %v2154
    %2311 = vmatmul.mubr.bf16.gmra.mrb[0].mxu0 %v2153
    %v2312 = vpop.f32.mrb[0].mxu0
    %v2313 = vadd.f32 0.0, %v2312
    %v2314 = vpop.f32.mrb[0].mxu0
    %v2315 = vadd.f32 0.0, %v2314
    %v2316 = vpop.f32.mrb[0].mxu0
    %v2317 = vpop.f32.mrb[0].mxu0
    %2318 = vdwg.mxu0
    %s2319 = scalar_lea.vmem [#allocation2], 5
    %v2320 = vld [vmem:[%s2319] ss:$8 sm:$0xf]
    %v2325 = vcombine.low %v2190, %v2192
    %v2326 = vcombine.low %v2231, %v2233
    %v2328 = vunpack.c.l.s4 1966171168
    %v2329 = vunpack.c.0.s8 %v2328
    %v2330 = vlaneseq
    %v2331 = vshrl.u32 %v2330, 7
    %v2332 = vsub.s32 %v2329, %v2331
    %v2333 = vrot.slane %v2325, %v2332
    %v2335 = vunpack.c.l.s4 1966171168
    %v2336 = vunpack.c.0.s8 %v2335
    %v2337 = vlaneseq
    %v2338 = vshrl.u32 %v2337, 7
    %v2339 = vsub.s32 %v2336, %v2338
    %v2340 = vrot.slane %v2326, %v2339
    %v2341 = vcombine.low %v2333, %v2340
    %v2343 = vunpack.c.l.s4 1966171168
    %v2344 = vunpack.c.0.s8 %v2343
    %v2345 = vlaneseq
    %v2346 = vshrl.u32 %v2345, 7
    %v2347 = vsub.s32 %v2344, %v2346
    %v2348 = vrot.slane %v2341, %v2347
    %v2350 = vadd.f32 %v2320, %v2348
    %v2351 = vadd.f32 %v2272, %v1350
    %v2352 = vadd.f32 %v2274, %v1354
    %v2353 = vadd.f32 %v2313, %v1358
    %v2354 = vadd.f32 %v2315, %v1362
    %v2355 = vxor.u32 %v2351, 2147483648
    %v2356 = vxor.u32 %v2352, 2147483648
    %v2357 = vxor.u32 %v2353, 2147483648
    %v2358 = vmul.f32 %v2355, 1.442695
    %v2359 = vpow.pop %v2358
    %v2360 = vmul.f32 %v2356, 1.442695
    %v2361 = vpow.pop %v2360
    %v2362 = vmul.f32 %v2357, 1.442695
    %v2363 = vpow.pop %v2362
    %v2364 = vadd.f32 %v2359, 1.0
    %v2365 = vadd.f32 %v2361, 1.0
    %v2366 = vadd.f32 %v2363, 1.0
    %v2367 = vrcp.pop %v2364
    %v2368 = vmul.f32 1.0, %v2367
    %v2369 = vrcp.pop %v2365
    %v2370 = vmul.f32 1.0, %v2369
    %v2371 = vrcp.pop %v2366
    %v2372 = vmul.f32 1.0, %v2371
    %v2373 = vtanh.pop %v2354
    %v2374 = vmul.f32 %v2370, %v2130
    %v2375 = vmul.f32 %v2368, %v2373
    %v2376 = vadd.f32 %v2374, %v2375
    %v2377 = vtanh.pop %v2376
    %v2378 = vmul.f32 %v2372, %v2377
    %v2379 = vxor.u32 %v2350, 2147483648
    %v2380 = vmul.f32 %v2379, 1.442695
    %v2381 = vpow.pop %v2380
    %v2382 = vadd.f32 %v2381, 1.0
    %v2383 = vrcp.pop %v2382
    %v2384 = vmul.f32 1.0, %v2383
    %v2386 = vrot.slane %v2350, 3
    %v2388 = vtanh.pop %v2386
    %v2390 = vrot.slane %v2384, 1
    %v2392 = vmul.f32 %v2390, %v2148
    %v2393 = vmul.f32 %v2384, %v2388
    %v2394 = vadd.f32 %v2392, %v2393
    %v2395 = vtanh.pop %v2394
    %v2396 = vrot.slane %v2384, 2
    %v2398 = vmul.f32 %v2396, %v2395
    %v2399 = vpack.c.bf16 %v2398, %v2398
    %v2400 = vpack.c.bf16 %v2378, %v2378
    %2401 = vmatprep.subr.bf16.mxu0 %v894
    %2402 = vmatpush1.bf16.msra.mxu0 %v893
    %2403 = vmatprep.subr.bf16.mxu0 %v902
    %2404 = vmatpush1.bf16.msra.mxu0 %v901
    %2405 = vmatprep.subr.bf16.mxu0 %v910
    %2406 = vmatpush1.bf16.msra.mxu0 %v909
    %2407 = vmatprep.subr.bf16.mxu0 %v918
    %2408 = vmatpush1.bf16.msra.mxu0 %v917
    %2409 = vmatprep.subr.bf16.mxu0 %v926
    %2410 = vmatpush1.bf16.msra.mxu0 %v925
    %2411 = vmatprep.subr.bf16.mxu0 %v934
    %2412 = vmatpush1.bf16.msra.mxu0 %v933
    %2413 = vmatprep.subr.bf16.mxu0 %v942
    %2414 = vmatpush1.bf16.msra.mxu0 %v941
    %2415 = vmatprep.subr.bf16.mxu0 %v950
    %2416 = vmatpush1.bf16.msra.mxu0 %v949
    %2417 = vmatprep.subr.bf16.mxu0 %v958
    %2418 = vmatpush1.bf16.msra.mxu0 %v957
    %2419 = vmatprep.subr.bf16.mxu0 %v966
    %2420 = vmatpush1.bf16.msra.mxu0 %v965
    %2421 = vmatprep.subr.bf16.mxu0 %v974
    %2422 = vmatpush1.bf16.msra.mxu0 %v973
    %2423 = vmatprep.subr.bf16.mxu0 %v982
    %2424 = vmatpush1.bf16.msra.mxu0 %v981
    %2425 = vmatprep.subr.bf16.mxu0 %v990
    %2426 = vmatpush1.bf16.msra.mxu0 %v989
    %2427 = vmatprep.subr.bf16.mxu0 %v998
    %2428 = vmatpush1.bf16.msra.mxu0 %v997
    %2429 = vmatprep.subr.bf16.mxu0 %v1006
    %2430 = vmatpush1.bf16.msra.mxu0 %v1005
    %2431 = vmatprep.subr.bf16.mxu0 %v1014
    %2432 = vmatpush1.bf16.msra.mxu0 %v1013
    %2433 = vmatprep.mubr.bf16.mxu0 %v2400
    %2434 = vmatmul.mubr.bf16.gmra.mrb[0].mxu0 %v2399
    %v2435 = vpop.f32.mrb[0].mxu0
    %v2436 = vadd.f32 0.0, %v2435
    %v2437 = vpop.f32.mrb[0].mxu0
    %v2438 = vadd.f32 0.0, %v2437
    %v2439 = vpop.f32.mrb[0].mxu0
    %v2440 = vpop.f32.mrb[0].mxu0
    %2441 = vdwg.mxu0
    %2442 = vmatprep.subr.bf16.mxu0 %v896
    %2443 = vmatpush1.bf16.msra.mxu0 %v895
    %2444 = vmatprep.subr.bf16.mxu0 %v904
    %2445 = vmatpush1.bf16.msra.mxu0 %v903
    %2446 = vmatprep.subr.bf16.mxu0 %v912
    %2447 = vmatpush1.bf16.msra.mxu0 %v911
    %2448 = vmatprep.subr.bf16.mxu0 %v920
    %2449 = vmatpush1.bf16.msra.mxu0 %v919
    %2450 = vmatprep.subr.bf16.mxu0 %v928
    %2451 = vmatpush1.bf16.msra.mxu0 %v927
    %2452 = vmatprep.subr.bf16.mxu0 %v936
    %2453 = vmatpush1.bf16.msra.mxu0 %v935
    %2454 = vmatprep.subr.bf16.mxu0 %v944
    %2455 = vmatpush1.bf16.msra.mxu0 %v943
    %2456 = vmatprep.subr.bf16.mxu0 %v952
    %2457 = vmatpush1.bf16.msra.mxu0 %v951
    %2458 = vmatprep.subr.bf16.mxu0 %v960
    %2459 = vmatpush1.bf16.msra.mxu0 %v959
    %2460 = vmatprep.subr.bf16.mxu0 %v968
    %2461 = vmatpush1.bf16.msra.mxu0 %v967
    %2462 = vmatprep.subr.bf16.mxu0 %v976
    %2463 = vmatpush1.bf16.msra.mxu0 %v975
    %2464 = vmatprep.subr.bf16.mxu0 %v984
    %2465 = vmatpush1.bf16.msra.mxu0 %v983
    %2466 = vmatprep.subr.bf16.mxu0 %v992
    %2467 = vmatpush1.bf16.msra.mxu0 %v991
    %2468 = vmatprep.subr.bf16.mxu0 %v1000
    %2469 = vmatpush1.bf16.msra.mxu0 %v999
    %2470 = vmatprep.subr.bf16.mxu0 %v1008
    %2471 = vmatpush1.bf16.msra.mxu0 %v1007
    %2472 = vmatprep.subr.bf16.mxu0 %v1016
    %2473 = vmatpush1.bf16.msra.mxu0 %v1015
    %2474 = vmatprep.mubr.bf16.mxu0 %v2400
    %2475 = vmatmul.mubr.bf16.gmra.mrb[0].mxu0 %v2399
    %v2476 = vpop.f32.mrb[0].mxu0
    %v2477 = vadd.f32 0.0, %v2476
    %v2478 = vpop.f32.mrb[0].mxu0
    %v2479 = vadd.f32 0.0, %v2478
    %v2480 = vpop.f32.mrb[0].mxu0
    %v2481 = vpop.f32.mrb[0].mxu0
    %2482 = vdwg.mxu0
    %2483 = vmatprep.subr.bf16.mxu0 %v898
    %2484 = vmatpush1.bf16.msra.mxu0 %v897
    %2485 = vmatprep.subr.bf16.mxu0 %v906
    %2486 = vmatpush1.bf16.msra.mxu0 %v905
    %2487 = vmatprep.subr.bf16.mxu0 %v914
    %2488 = vmatpush1.bf16.msra.mxu0 %v913
    %2489 = vmatprep.subr.bf16.mxu0 %v922
    %2490 = vmatpush1.bf16.msra.mxu0 %v921
    %2491 = vmatprep.subr.bf16.mxu0 %v930
    %2492 = vmatpush1.bf16.msra.mxu0 %v929
    %2493 = vmatprep.subr.bf16.mxu0 %v938
    %2494 = vmatpush1.bf16.msra.mxu0 %v937
    %2495 = vmatprep.subr.bf16.mxu0 %v946
    %2496 = vmatpush1.bf16.msra.mxu0 %v945
    %2497 = vmatprep.subr.bf16.mxu0 %v954
    %2498 = vmatpush1.bf16.msra.mxu0 %v953
    %2499 = vmatprep.subr.bf16.mxu0 %v962
    %2500 = vmatpush1.bf16.msra.mxu0 %v961
    %2501 = vmatprep.subr.bf16.mxu0 %v970
    %2502 = vmatpush1.bf16.msra.mxu0 %v969
    %2503 = vmatprep.subr.bf16.mxu0 %v978
    %2504 = vmatpush1.bf16.msra.mxu0 %v977
    %2505 = vmatprep.subr.bf16.mxu0 %v986
    %2506 = vmatpush1.bf16.msra.mxu0 %v985
    %2507 = vmatprep.subr.bf16.mxu0 %v994
    %2508 = vmatpush1.bf16.msra.mxu0 %v993
    %2509 = vmatprep.subr.bf16.mxu0 %v1002
    %2510 = vmatpush1.bf16.msra.mxu0 %v1001
    %2511 = vmatprep.subr.bf16.mxu0 %v1010
    %2512 = vmatpush1.bf16.msra.mxu0 %v1009
    %2513 = vmatprep.subr.bf16.mxu0 %v1018
    %2514 = vmatpush1.bf16.msra.mxu0 %v1017
    %2515 = vmatprep.mubr.bf16.mxu0 %v2400
    %2516 = vmatmul.mubr.bf16.gmra.mrb[0].mxu0 %v2399
    %v2517 = vpop.f32.mrb[0].mxu0
    %v2518 = vadd.f32 0.0, %v2517
    %v2519 = vpop.f32.mrb[0].mxu0
    %v2520 = vadd.f32 0.0, %v2519
    %v2521 = vpop.f32.mrb[0].mxu0
    %v2522 = vpop.f32.mrb[0].mxu0
    %2523 = vdwg.mxu0
    %2524 = vmatprep.subr.bf16.mxu0 %v900
    %2525 = vmatpush1.bf16.msra.mxu0 %v899
    %2526 = vmatprep.subr.bf16.mxu0 %v908
    %2527 = vmatpush1.bf16.msra.mxu0 %v907
    %2528 = vmatprep.subr.bf16.mxu0 %v916
    %2529 = vmatpush1.bf16.msra.mxu0 %v915
    %2530 = vmatprep.subr.bf16.mxu0 %v924
    %2531 = vmatpush1.bf16.msra.mxu0 %v923
    %2532 = vmatprep.subr.bf16.mxu0 %v932
    %2533 = vmatpush1.bf16.msra.mxu0 %v931
    %2534 = vmatprep.subr.bf16.mxu0 %v940
    %2535 = vmatpush1.bf16.msra.mxu0 %v939
    %2536 = vmatprep.subr.bf16.mxu0 %v948
    %2537 = vmatpush1.bf16.msra.mxu0 %v947
    %2538 = vmatprep.subr.bf16.mxu0 %v956
    %2539 = vmatpush1.bf16.msra.mxu0 %v955
    %2540 = vmatprep.subr.bf16.mxu0 %v964
    %2541 = vmatpush1.bf16.msra.mxu0 %v963
    %2542 = vmatprep.subr.bf16.mxu0 %v972
    %2543 = vmatpush1.bf16.msra.mxu0 %v971
    %2544 = vmatprep.subr.bf16.mxu0 %v980
    %2545 = vmatpush1.bf16.msra.mxu0 %v979
    %2546 = vmatprep.subr.bf16.mxu0 %v988
    %2547 = vmatpush1.bf16.msra.mxu0 %v987
    %2548 = vmatprep.subr.bf16.mxu0 %v996
    %2549 = vmatpush1.bf16.msra.mxu0 %v995
    %2550 = vmatprep.subr.bf16.mxu0 %v1004
    %2551 = vmatpush1.bf16.msra.mxu0 %v1003
    %2552 = vmatprep.subr.bf16.mxu0 %v1012
    %2553 = vmatpush1.bf16.msra.mxu0 %v1011
    %2554 = vmatprep.subr.bf16.mxu0 %v1020
    %2555 = vmatpush1.bf16.msra.mxu0 %v1019
    %2556 = vmatprep.mubr.bf16.mxu0 %v2400
    %2557 = vmatmul.mubr.bf16.gmra.mrb[0].mxu0 %v2399
    %v2558 = vpop.f32.mrb[0].mxu0
    %v2559 = vadd.f32 0.0, %v2558
    %v2560 = vpop.f32.mrb[0].mxu0
    %v2561 = vadd.f32 0.0, %v2560
    %v2562 = vpop.f32.mrb[0].mxu0
    %v2563 = vpop.f32.mrb[0].mxu0
    %2564 = vdwg.mxu0
    %s2565 = scalar_lea.vmem [#allocation2], 6
    %v2566 = vld [vmem:[%s2565] ss:$8 sm:$0xf]
    %v2571 = vcombine.low %v2436, %v2438
    %v2572 = vcombine.low %v2477, %v2479
    %v2574 = vunpack.c.l.s4 1966171168
    %v2575 = vunpack.c.0.s8 %v2574
    %v2576 = vlaneseq
    %v2577 = vshrl.u32 %v2576, 7
    %v2578 = vsub.s32 %v2575, %v2577
    %v2579 = vrot.slane %v2571, %v2578
    %v2581 = vunpack.c.l.s4 1966171168
    %v2582 = vunpack.c.0.s8 %v2581
    %v2583 = vlaneseq
    %v2584 = vshrl.u32 %v2583, 7
    %v2585 = vsub.s32 %v2582, %v2584
    %v2586 = vrot.slane %v2572, %v2585
    %v2587 = vcombine.low %v2579, %v2586
    %v2589 = vunpack.c.l.s4 1966171168
    %v2590 = vunpack.c.0.s8 %v2589
    %v2591 = vlaneseq
    %v2592 = vshrl.u32 %v2591, 7
    %v2593 = vsub.s32 %v2590, %v2592
    %v2594 = vrot.slane %v2587, %v2593
    %v2596 = vadd.f32 %v2566, %v2594
    %v2597 = vadd.f32 %v2518, %v1350
    %v2598 = vadd.f32 %v2520, %v1354
    %v2599 = vadd.f32 %v2559, %v1358
    %v2600 = vadd.f32 %v2561, %v1362
    %v2601 = vxor.u32 %v2597, 2147483648
    %v2602 = vxor.u32 %v2598, 2147483648
    %v2603 = vxor.u32 %v2599, 2147483648
    %v2604 = vmul.f32 %v2601, 1.442695
    %v2605 = vpow.pop %v2604
    %v2606 = vmul.f32 %v2602, 1.442695
    %v2607 = vpow.pop %v2606
    %v2608 = vmul.f32 %v2603, 1.442695
    %v2609 = vpow.pop %v2608
    %v2610 = vadd.f32 %v2605, 1.0
    %v2611 = vadd.f32 %v2607, 1.0
    %v2612 = vadd.f32 %v2609, 1.0
    %v2613 = vrcp.pop %v2610
    %v2614 = vmul.f32 1.0, %v2613
    %v2615 = vrcp.pop %v2611
    %v2616 = vmul.f32 1.0, %v2615
    %v2617 = vrcp.pop %v2612
    %v2618 = vmul.f32 1.0, %v2617
    %v2619 = vtanh.pop %v2600
    %v2620 = vmul.f32 %v2616, %v2376
    %v2621 = vmul.f32 %v2614, %v2619
    %v2622 = vadd.f32 %v2620, %v2621
    %v2623 = vtanh.pop %v2622
    %v2624 = vmul.f32 %v2618, %v2623
    %v2625 = vxor.u32 %v2596, 2147483648
    %v2626 = vmul.f32 %v2625, 1.442695
    %v2627 = vpow.pop %v2626
    %v2628 = vadd.f32 %v2627, 1.0
    %v2629 = vrcp.pop %v2628
    %v2630 = vmul.f32 1.0, %v2629
    %v2632 = vrot.slane %v2596, 3
    %v2634 = vtanh.pop %v2632
    %v2636 = vrot.slane %v2630, 1
    %v2638 = vmul.f32 %v2636, %v2394
    %v2639 = vmul.f32 %v2630, %v2634
    %v2640 = vadd.f32 %v2638, %v2639
    %v2641 = vtanh.pop %v2640
    %v2642 = vrot.slane %v2630, 2
    %v2644 = vmul.f32 %v2642, %v2641
    %v2645 = vpack.c.bf16 %v2644, %v2644
    %v2646 = vpack.c.bf16 %v2624, %v2624
    %2647 = vmatprep.subr.bf16.mxu0 %v894
    %2648 = vmatpush1.bf16.msra.mxu0 %v893
    %2649 = vmatprep.subr.bf16.mxu0 %v902
    %2650 = vmatpush1.bf16.msra.mxu0 %v901
    %2651 = vmatprep.subr.bf16.mxu0 %v910
    %2652 = vmatpush1.bf16.msra.mxu0 %v909
    %2653 = vmatprep.subr.bf16.mxu0 %v918
    %2654 = vmatpush1.bf16.msra.mxu0 %v917
    %2655 = vmatprep.subr.bf16.mxu0 %v926
    %2656 = vmatpush1.bf16.msra.mxu0 %v925
    %2657 = vmatprep.subr.bf16.mxu0 %v934
    %2658 = vmatpush1.bf16.msra.mxu0 %v933
    %2659 = vmatprep.subr.bf16.mxu0 %v942
    %2660 = vmatpush1.bf16.msra.mxu0 %v941
    %2661 = vmatprep.subr.bf16.mxu0 %v950
    %2662 = vmatpush1.bf16.msra.mxu0 %v949
    %2663 = vmatprep.subr.bf16.mxu0 %v958
    %2664 = vmatpush1.bf16.msra.mxu0 %v957
    %2665 = vmatprep.subr.bf16.mxu0 %v966
    %2666 = vmatpush1.bf16.msra.mxu0 %v965
    %2667 = vmatprep.subr.bf16.mxu0 %v974
    %2668 = vmatpush1.bf16.msra.mxu0 %v973
    %2669 = vmatprep.subr.bf16.mxu0 %v982
    %2670 = vmatpush1.bf16.msra.mxu0 %v981
    %2671 = vmatprep.subr.bf16.mxu0 %v990
    %2672 = vmatpush1.bf16.msra.mxu0 %v989
    %2673 = vmatprep.subr.bf16.mxu0 %v998
    %2674 = vmatpush1.bf16.msra.mxu0 %v997
    %2675 = vmatprep.subr.bf16.mxu0 %v1006
    %2676 = vmatpush1.bf16.msra.mxu0 %v1005
    %2677 = vmatprep.subr.bf16.mxu0 %v1014
    %2678 = vmatpush1.bf16.msra.mxu0 %v1013
    %2679 = vmatprep.mubr.bf16.mxu0 %v2646
    %2680 = vmatmul.mubr.bf16.gmra.mrb[0].mxu0 %v2645
    %v2681 = vpop.f32.mrb[0].mxu0
    %v2682 = vadd.f32 0.0, %v2681
    %v2683 = vpop.f32.mrb[0].mxu0
    %v2684 = vadd.f32 0.0, %v2683
    %v2685 = vpop.f32.mrb[0].mxu0
    %v2686 = vpop.f32.mrb[0].mxu0
    %2687 = vdwg.mxu0
    %2688 = vmatprep.subr.bf16.mxu0 %v896
    %2689 = vmatpush1.bf16.msra.mxu0 %v895
    %2690 = vmatprep.subr.bf16.mxu0 %v904
    %2691 = vmatpush1.bf16.msra.mxu0 %v903
    %2692 = vmatprep.subr.bf16.mxu0 %v912
    %2693 = vmatpush1.bf16.msra.mxu0 %v911
    %2694 = vmatprep.subr.bf16.mxu0 %v920
    %2695 = vmatpush1.bf16.msra.mxu0 %v919
    %2696 = vmatprep.subr.bf16.mxu0 %v928
    %2697 = vmatpush1.bf16.msra.mxu0 %v927
    %2698 = vmatprep.subr.bf16.mxu0 %v936
    %2699 = vmatpush1.bf16.msra.mxu0 %v935
    %2700 = vmatprep.subr.bf16.mxu0 %v944
    %2701 = vmatpush1.bf16.msra.mxu0 %v943
    %2702 = vmatprep.subr.bf16.mxu0 %v952
    %2703 = vmatpush1.bf16.msra.mxu0 %v951
    %2704 = vmatprep.subr.bf16.mxu0 %v960
    %2705 = vmatpush1.bf16.msra.mxu0 %v959
    %2706 = vmatprep.subr.bf16.mxu0 %v968
    %2707 = vmatpush1.bf16.msra.mxu0 %v967
    %2708 = vmatprep.subr.bf16.mxu0 %v976
    %2709 = vmatpush1.bf16.msra.mxu0 %v975
    %2710 = vmatprep.subr.bf16.mxu0 %v984
    %2711 = vmatpush1.bf16.msra.mxu0 %v983
    %2712 = vmatprep.subr.bf16.mxu0 %v992
    %2713 = vmatpush1.bf16.msra.mxu0 %v991
    %2714 = vmatprep.subr.bf16.mxu0 %v1000
    %2715 = vmatpush1.bf16.msra.mxu0 %v999
    %2716 = vmatprep.subr.bf16.mxu0 %v1008
    %2717 = vmatpush1.bf16.msra.mxu0 %v1007
    %2718 = vmatprep.subr.bf16.mxu0 %v1016
    %2719 = vmatpush1.bf16.msra.mxu0 %v1015
    %2720 = vmatprep.mubr.bf16.mxu0 %v2646
    %2721 = vmatmul.mubr.bf16.gmra.mrb[0].mxu0 %v2645
    %v2722 = vpop.f32.mrb[0].mxu0
    %v2723 = vadd.f32 0.0, %v2722
    %v2724 = vpop.f32.mrb[0].mxu0
    %v2725 = vadd.f32 0.0, %v2724
    %v2726 = vpop.f32.mrb[0].mxu0
    %v2727 = vpop.f32.mrb[0].mxu0
    %2728 = vdwg.mxu0
    %2729 = vmatprep.subr.bf16.mxu0 %v898
    %2730 = vmatpush1.bf16.msra.mxu0 %v897
    %2731 = vmatprep.subr.bf16.mxu0 %v906
    %2732 = vmatpush1.bf16.msra.mxu0 %v905
    %2733 = vmatprep.subr.bf16.mxu0 %v914
    %2734 = vmatpush1.bf16.msra.mxu0 %v913
    %2735 = vmatprep.subr.bf16.mxu0 %v922
    %2736 = vmatpush1.bf16.msra.mxu0 %v921
    %2737 = vmatprep.subr.bf16.mxu0 %v930
    %2738 = vmatpush1.bf16.msra.mxu0 %v929
    %2739 = vmatprep.subr.bf16.mxu0 %v938
    %2740 = vmatpush1.bf16.msra.mxu0 %v937
    %2741 = vmatprep.subr.bf16.mxu0 %v946
    %2742 = vmatpush1.bf16.msra.mxu0 %v945
    %2743 = vmatprep.subr.bf16.mxu0 %v954
    %2744 = vmatpush1.bf16.msra.mxu0 %v953
    %2745 = vmatprep.subr.bf16.mxu0 %v962
    %2746 = vmatpush1.bf16.msra.mxu0 %v961
    %2747 = vmatprep.subr.bf16.mxu0 %v970
    %2748 = vmatpush1.bf16.msra.mxu0 %v969
    %2749 = vmatprep.subr.bf16.mxu0 %v978
    %2750 = vmatpush1.bf16.msra.mxu0 %v977
    %2751 = vmatprep.subr.bf16.mxu0 %v986
    %2752 = vmatpush1.bf16.msra.mxu0 %v985
    %2753 = vmatprep.subr.bf16.mxu0 %v994
    %2754 = vmatpush1.bf16.msra.mxu0 %v993
    %2755 = vmatprep.subr.bf16.mxu0 %v1002
    %2756 = vmatpush1.bf16.msra.mxu0 %v1001
    %2757 = vmatprep.subr.bf16.mxu0 %v1010
    %2758 = vmatpush1.bf16.msra.mxu0 %v1009
    %2759 = vmatprep.subr.bf16.mxu0 %v1018
    %2760 = vmatpush1.bf16.msra.mxu0 %v1017
    %2761 = vmatprep.mubr.bf16.mxu0 %v2646
    %2762 = vmatmul.mubr.bf16.gmra.mrb[0].mxu0 %v2645
    %v2763 = vpop.f32.mrb[0].mxu0
    %v2764 = vadd.f32 0.0, %v2763
    %v2765 = vpop.f32.mrb[0].mxu0
    %v2766 = vadd.f32 0.0, %v2765
    %v2767 = vpop.f32.mrb[0].mxu0
    %v2768 = vpop.f32.mrb[0].mxu0
    %2769 = vdwg.mxu0
    %2770 = vmatprep.subr.bf16.mxu0 %v900
    %2771 = vmatpush1.bf16.msra.mxu0 %v899
    %2772 = vmatprep.subr.bf16.mxu0 %v908
    %2773 = vmatpush1.bf16.msra.mxu0 %v907
    %2774 = vmatprep.subr.bf16.mxu0 %v916
    %2775 = vmatpush1.bf16.msra.mxu0 %v915
    %2776 = vmatprep.subr.bf16.mxu0 %v924
    %2777 = vmatpush1.bf16.msra.mxu0 %v923
    %2778 = vmatprep.subr.bf16.mxu0 %v932
    %2779 = vmatpush1.bf16.msra.mxu0 %v931
    %2780 = vmatprep.subr.bf16.mxu0 %v940
    %2781 = vmatpush1.bf16.msra.mxu0 %v939
    %2782 = vmatprep.subr.bf16.mxu0 %v948
    %2783 = vmatpush1.bf16.msra.mxu0 %v947
    %2784 = vmatprep.subr.bf16.mxu0 %v956
    %2785 = vmatpush1.bf16.msra.mxu0 %v955
    %2786 = vmatprep.subr.bf16.mxu0 %v964
    %2787 = vmatpush1.bf16.msra.mxu0 %v963
    %2788 = vmatprep.subr.bf16.mxu0 %v972
    %2789 = vmatpush1.bf16.msra.mxu0 %v971
    %2790 = vmatprep.subr.bf16.mxu0 %v980
    %2791 = vmatpush1.bf16.msra.mxu0 %v979
    %2792 = vmatprep.subr.bf16.mxu0 %v988
    %2793 = vmatpush1.bf16.msra.mxu0 %v987
    %2794 = vmatprep.subr.bf16.mxu0 %v996
    %2795 = vmatpush1.bf16.msra.mxu0 %v995
    %2796 = vmatprep.subr.bf16.mxu0 %v1004
    %2797 = vmatpush1.bf16.msra.mxu0 %v1003
    %2798 = vmatprep.subr.bf16.mxu0 %v1012
    %2799 = vmatpush1.bf16.msra.mxu0 %v1011
    %2800 = vmatprep.subr.bf16.mxu0 %v1020
    %2801 = vmatpush1.bf16.msra.mxu0 %v1019
    %2802 = vmatprep.mubr.bf16.mxu0 %v2646
    %2803 = vmatmul.mubr.bf16.gmra.mrb[0].mxu0 %v2645
    %v2804 = vpop.f32.mrb[0].mxu0
    %v2805 = vadd.f32 0.0, %v2804
    %v2806 = vpop.f32.mrb[0].mxu0
    %v2807 = vadd.f32 0.0, %v2806
    %v2808 = vpop.f32.mrb[0].mxu0
    %v2809 = vpop.f32.mrb[0].mxu0
    %2810 = vdwg.mxu0
    %s2811 = scalar_lea.vmem [#allocation2], 7
    %v2812 = vld [vmem:[%s2811] ss:$8 sm:$0xf]
    %v2817 = vcombine.low %v2682, %v2684
    %v2818 = vcombine.low %v2723, %v2725
    %v2820 = vunpack.c.l.s4 1966171168
    %v2821 = vunpack.c.0.s8 %v2820
    %v2822 = vlaneseq
    %v2823 = vshrl.u32 %v2822, 7
    %v2824 = vsub.s32 %v2821, %v2823
    %v2825 = vrot.slane %v2817, %v2824
    %v2827 = vunpack.c.l.s4 1966171168
    %v2828 = vunpack.c.0.s8 %v2827
    %v2829 = vlaneseq
    %v2830 = vshrl.u32 %v2829, 7
    %v2831 = vsub.s32 %v2828, %v2830
    %v2832 = vrot.slane %v2818, %v2831
    %v2833 = vcombine.low %v2825, %v2832
    %v2835 = vunpack.c.l.s4 1966171168
    %v2836 = vunpack.c.0.s8 %v2835
    %v2837 = vlaneseq
    %v2838 = vshrl.u32 %v2837, 7
    %v2839 = vsub.s32 %v2836, %v2838
    %v2840 = vrot.slane %v2833, %v2839
    %v2842 = vadd.f32 %v2812, %v2840
    %v2843 = vadd.f32 %v2764, %v1350
    %v2844 = vadd.f32 %v2766, %v1354
    %v2845 = vadd.f32 %v2805, %v1358
    %v2846 = vadd.f32 %v2807, %v1362
    %v2847 = vxor.u32 %v2843, 2147483648
    %v2848 = vxor.u32 %v2844, 2147483648
    %v2849 = vxor.u32 %v2845, 2147483648
    %v2850 = vmul.f32 %v2847, 1.442695
    %v2851 = vpow.pop %v2850
    %v2852 = vmul.f32 %v2848, 1.442695
    %v2853 = vpow.pop %v2852
    %v2854 = vmul.f32 %v2849, 1.442695
    %v2855 = vpow.pop %v2854
    %v2856 = vadd.f32 %v2851, 1.0
    %v2857 = vadd.f32 %v2853, 1.0
    %v2858 = vadd.f32 %v2855, 1.0
    %v2859 = vrcp.pop %v2856
    %v2860 = vmul.f32 1.0, %v2859
    %v2861 = vrcp.pop %v2857
    %v2862 = vmul.f32 1.0, %v2861
    %v2863 = vrcp.pop %v2858
    %v2864 = vmul.f32 1.0, %v2863
    %v2865 = vtanh.pop %v2846
    %v2866 = vmul.f32 %v2862, %v2622
    %v2867 = vmul.f32 %v2860, %v2865
    %v2868 = vadd.f32 %v2866, %v2867
    %v2869 = vtanh.pop %v2868
    %v2870 = vmul.f32 %v2864, %v2869
    %v2871 = vxor.u32 %v2842, 2147483648
    %v2872 = vmul.f32 %v2871, 1.442695
    %v2873 = vpow.pop %v2872
    %v2874 = vadd.f32 %v2873, 1.0
    %v2875 = vrcp.pop %v2874
    %v2876 = vmul.f32 1.0, %v2875
    %v2878 = vrot.slane %v2842, 3
    %v2880 = vtanh.pop %v2878
    %v2882 = vrot.slane %v2876, 1
    %v2884 = vmul.f32 %v2882, %v2640
    %v2885 = vmul.f32 %v2876, %v2880
    %v2886 = vadd.f32 %v2884, %v2885
    %v2887 = vtanh.pop %v2886
    %v2888 = vrot.slane %v2876, 2
    %v2890 = vmul.f32 %v2888, %v2887
    %v2891 = vpack.c.bf16 %v2890, %v2890
    %v2892 = vpack.c.bf16 %v2870, %v2870
    %v2893 = vld [vmem:[#allocation6 + $0x10] sm:$0xff]
    %v2894 = vld [vmem:[#allocation6 + $0x18] sm:$0xff]
    %v2895 = vld [vmem:[#allocation6 + $0x30] sm:$0xff]
    %v2896 = vld [vmem:[#allocation6 + $0x38] sm:$0xff]
    %v2897 = vld [vmem:[#allocation6 + $0x50] sm:$0xff]
    %v2898 = vld [vmem:[#allocation6 + $0x58] sm:$0xff]
    %v2899 = vld [vmem:[#allocation6 + $0x70] sm:$0xff]
    %v2900 = vld [vmem:[#allocation6 + $0x78] sm:$0xff]
    %v2901 = vld [vmem:[#allocation6 + $0x90] sm:$0xff]
    %v2902 = vld [vmem:[#allocation6 + $0x98] sm:$0xff]
    %v2903 = vld [vmem:[#allocation6 + $0xb0] sm:$0xff]
    %v2904 = vld [vmem:[#allocation6 + $0xb8] sm:$0xff]
    %v2905 = vld [vmem:[#allocation6 + $0xd0] sm:$0xff]
    %v2906 = vld [vmem:[#allocation6 + $0xd8] sm:$0xff]
    %v2907 = vld [vmem:[#allocation6 + $0xf0] sm:$0xff]
    %v2908 = vld [vmem:[#allocation6 + $0xf8] sm:$0xff]
    %v2909 = vld [vmem:[#allocation6 + $0x110] sm:$0xff]
    %v2910 = vld [vmem:[#allocation6 + $0x118] sm:$0xff]
    %v2911 = vld [vmem:[#allocation6 + $0x130] sm:$0xff]
    %v2912 = vld [vmem:[#allocation6 + $0x138] sm:$0xff]
    %v2913 = vld [vmem:[#allocation6 + $0x150] sm:$0xff]
    %v2914 = vld [vmem:[#allocation6 + $0x158] sm:$0xff]
    %v2915 = vld [vmem:[#allocation6 + $0x170] sm:$0xff]
    %v2916 = vld [vmem:[#allocation6 + $0x178] sm:$0xff]
    %v2917 = vld [vmem:[#allocation6 + $0x190] sm:$0xff]
    %v2918 = vld [vmem:[#allocation6 + $0x198] sm:$0xff]
    %v2919 = vld [vmem:[#allocation6 + $0x1b0] sm:$0xff]
    %v2920 = vld [vmem:[#allocation6 + $0x1b8] sm:$0xff]
    %v2921 = vld [vmem:[#allocation6 + $0x1d0] sm:$0xff]
    %v2922 = vld [vmem:[#allocation6 + $0x1d8] sm:$0xff]
    %v2923 = vld [vmem:[#allocation6 + $0x1f0] sm:$0xff]
    %v2924 = vld [vmem:[#allocation6 + $0x1f8] sm:$0xff]
    %v2925 = vld [vmem:[#allocation6 + $0x210] sm:$0xff]
    %v2926 = vld [vmem:[#allocation6 + $0x218] sm:$0xff]
    %v2927 = vld [vmem:[#allocation6 + $0x230] sm:$0xff]
    %v2928 = vld [vmem:[#allocation6 + $0x238] sm:$0xff]
    %v2929 = vld [vmem:[#allocation6 + $0x250] sm:$0xff]
    %v2930 = vld [vmem:[#allocation6 + $0x258] sm:$0xff]
    %v2931 = vld [vmem:[#allocation6 + $0x270] sm:$0xff]
    %v2932 = vld [vmem:[#allocation6 + $0x278] sm:$0xff]
    %v2933 = vld [vmem:[#allocation6 + $0x290] sm:$0xff]
    %v2934 = vld [vmem:[#allocation6 + $0x298] sm:$0xff]
    %v2935 = vld [vmem:[#allocation6 + $0x2b0] sm:$0xff]
    %v2936 = vld [vmem:[#allocation6 + $0x2b8] sm:$0xff]
    %v2937 = vld [vmem:[#allocation6 + $0x2d0] sm:$0xff]
    %v2938 = vld [vmem:[#allocation6 + $0x2d8] sm:$0xff]
    %v2939 = vld [vmem:[#allocation6 + $0x2f0] sm:$0xff]
    %v2940 = vld [vmem:[#allocation6 + $0x2f8] sm:$0xff]
    %v2941 = vld [vmem:[#allocation6 + $0x310] sm:$0xff]
    %v2942 = vld [vmem:[#allocation6 + $0x318] sm:$0xff]
    %v2943 = vld [vmem:[#allocation6 + $0x330] sm:$0xff]
    %v2944 = vld [vmem:[#allocation6 + $0x338] sm:$0xff]
    %v2945 = vld [vmem:[#allocation6 + $0x350] sm:$0xff]
    %v2946 = vld [vmem:[#allocation6 + $0x358] sm:$0xff]
    %v2947 = vld [vmem:[#allocation6 + $0x370] sm:$0xff]
    %v2948 = vld [vmem:[#allocation6 + $0x378] sm:$0xff]
    %v2949 = vld [vmem:[#allocation6 + $0x390] sm:$0xff]
    %v2950 = vld [vmem:[#allocation6 + $0x398] sm:$0xff]
    %v2951 = vld [vmem:[#allocation6 + $0x3b0] sm:$0xff]
    %v2952 = vld [vmem:[#allocation6 + $0x3b8] sm:$0xff]
    %v2953 = vld [vmem:[#allocation6 + $0x3d0] sm:$0xff]
    %v2954 = vld [vmem:[#allocation6 + $0x3d8] sm:$0xff]
    %v2955 = vld [vmem:[#allocation6 + $0x3f0] sm:$0xff]
    %v2956 = vld [vmem:[#allocation6 + $0x3f8] sm:$0xff]
    %v3021 = vunpack.c.l.b16 %v2893
    %v3022 = vunpack.c.h.b16 %v2893
    %v3023 = vunpack.c.l.b16 %v2894
    %v3024 = vunpack.c.h.b16 %v2894
    %v3025 = vunpack.c.l.b16 %v2895
    %v3026 = vunpack.c.h.b16 %v2895
    %v3027 = vunpack.c.l.b16 %v2896
    %v3028 = vunpack.c.h.b16 %v2896
    %v3029 = vunpack.c.l.b16 %v2897
    %v3030 = vunpack.c.h.b16 %v2897
    %v3031 = vunpack.c.l.b16 %v2898
    %v3032 = vunpack.c.h.b16 %v2898
    %v3033 = vunpack.c.l.b16 %v2899
    %v3034 = vunpack.c.h.b16 %v2899
    %v3035 = vunpack.c.l.b16 %v2900
    %v3036 = vunpack.c.h.b16 %v2900
    %v3037 = vunpack.c.l.b16 %v2901
    %v3038 = vunpack.c.h.b16 %v2901
    %v3039 = vunpack.c.l.b16 %v2902
    %v3040 = vunpack.c.h.b16 %v2902
    %v3041 = vunpack.c.l.b16 %v2903
    %v3042 = vunpack.c.h.b16 %v2903
    %v3043 = vunpack.c.l.b16 %v2904
    %v3044 = vunpack.c.h.b16 %v2904
    %v3045 = vunpack.c.l.b16 %v2905
    %v3046 = vunpack.c.h.b16 %v2905
    %v3047 = vunpack.c.l.b16 %v2906
    %v3048 = vunpack.c.h.b16 %v2906
    %v3049 = vunpack.c.l.b16 %v2907
    %v3050 = vunpack.c.h.b16 %v2907
    %v3051 = vunpack.c.l.b16 %v2908
    %v3052 = vunpack.c.h.b16 %v2908
    %v3053 = vunpack.c.l.b16 %v2909
    %v3054 = vunpack.c.h.b16 %v2909
    %v3055 = vunpack.c.l.b16 %v2910
    %v3056 = vunpack.c.h.b16 %v2910
    %v3057 = vunpack.c.l.b16 %v2911
    %v3058 = vunpack.c.h.b16 %v2911
    %v3059 = vunpack.c.l.b16 %v2912
    %v3060 = vunpack.c.h.b16 %v2912
    %v3061 = vunpack.c.l.b16 %v2913
    %v3062 = vunpack.c.h.b16 %v2913
    %v3063 = vunpack.c.l.b16 %v2914
    %v3064 = vunpack.c.h.b16 %v2914
    %v3065 = vunpack.c.l.b16 %v2915
    %v3066 = vunpack.c.h.b16 %v2915
    %v3067 = vunpack.c.l.b16 %v2916
    %v3068 = vunpack.c.h.b16 %v2916
    %v3069 = vunpack.c.l.b16 %v2917
    %v3070 = vunpack.c.h.b16 %v2917
    %v3071 = vunpack.c.l.b16 %v2918
    %v3072 = vunpack.c.h.b16 %v2918
    %v3073 = vunpack.c.l.b16 %v2919
    %v3074 = vunpack.c.h.b16 %v2919
    %v3075 = vunpack.c.l.b16 %v2920
    %v3076 = vunpack.c.h.b16 %v2920
    %v3077 = vunpack.c.l.b16 %v2921
    %v3078 = vunpack.c.h.b16 %v2921
    %v3079 = vunpack.c.l.b16 %v2922
    %v3080 = vunpack.c.h.b16 %v2922
    %v3081 = vunpack.c.l.b16 %v2923
    %v3082 = vunpack.c.h.b16 %v2923
    %v3083 = vunpack.c.l.b16 %v2924
    %v3084 = vunpack.c.h.b16 %v2924
    %v3085 = vunpack.c.l.b16 %v2925
    %v3086 = vunpack.c.h.b16 %v2925
    %v3087 = vunpack.c.l.b16 %v2926
    %v3088 = vunpack.c.h.b16 %v2926
    %v3089 = vunpack.c.l.b16 %v2927
    %v3090 = vunpack.c.h.b16 %v2927
    %v3091 = vunpack.c.l.b16 %v2928
    %v3092 = vunpack.c.h.b16 %v2928
    %v3093 = vunpack.c.l.b16 %v2929
    %v3094 = vunpack.c.h.b16 %v2929
    %v3095 = vunpack.c.l.b16 %v2930
    %v3096 = vunpack.c.h.b16 %v2930
    %v3097 = vunpack.c.l.b16 %v2931
    %v3098 = vunpack.c.h.b16 %v2931
    %v3099 = vunpack.c.l.b16 %v2932
    %v3100 = vunpack.c.h.b16 %v2932
    %v3101 = vunpack.c.l.b16 %v2933
    %v3102 = vunpack.c.h.b16 %v2933
    %v3103 = vunpack.c.l.b16 %v2934
    %v3104 = vunpack.c.h.b16 %v2934
    %v3105 = vunpack.c.l.b16 %v2935
    %v3106 = vunpack.c.h.b16 %v2935
    %v3107 = vunpack.c.l.b16 %v2936
    %v3108 = vunpack.c.h.b16 %v2936
    %v3109 = vunpack.c.l.b16 %v2937
    %v3110 = vunpack.c.h.b16 %v2937
    %v3111 = vunpack.c.l.b16 %v2938
    %v3112 = vunpack.c.h.b16 %v2938
    %v3113 = vunpack.c.l.b16 %v2939
    %v3114 = vunpack.c.h.b16 %v2939
    %v3115 = vunpack.c.l.b16 %v2940
    %v3116 = vunpack.c.h.b16 %v2940
    %v3117 = vunpack.c.l.b16 %v2941
    %v3118 = vunpack.c.h.b16 %v2941
    %v3119 = vunpack.c.l.b16 %v2942
    %v3120 = vunpack.c.h.b16 %v2942
    %v3121 = vunpack.c.l.b16 %v2943
    %v3122 = vunpack.c.h.b16 %v2943
    %v3123 = vunpack.c.l.b16 %v2944
    %v3124 = vunpack.c.h.b16 %v2944
    %v3125 = vunpack.c.l.b16 %v2945
    %v3126 = vunpack.c.h.b16 %v2945
    %v3127 = vunpack.c.l.b16 %v2946
    %v3128 = vunpack.c.h.b16 %v2946
    %v3129 = vunpack.c.l.b16 %v2947
    %v3130 = vunpack.c.h.b16 %v2947
    %v3131 = vunpack.c.l.b16 %v2948
    %v3132 = vunpack.c.h.b16 %v2948
    %v3133 = vunpack.c.l.b16 %v2949
    %v3134 = vunpack.c.h.b16 %v2949
    %v3135 = vunpack.c.l.b16 %v2950
    %v3136 = vunpack.c.h.b16 %v2950
    %v3137 = vunpack.c.l.b16 %v2951
    %v3138 = vunpack.c.h.b16 %v2951
    %v3139 = vunpack.c.l.b16 %v2952
    %v3140 = vunpack.c.h.b16 %v2952
    %v3141 = vunpack.c.l.b16 %v2953
    %v3142 = vunpack.c.h.b16 %v2953
    %v3143 = vunpack.c.l.b16 %v2954
    %v3144 = vunpack.c.h.b16 %v2954
    %v3145 = vunpack.c.l.b16 %v2955
    %v3146 = vunpack.c.h.b16 %v2955
    %v3147 = vunpack.c.l.b16 %v2956
    %v3148 = vunpack.c.h.b16 %v2956
    %v3149 = vpack.c.b16 %v3025, %v3021
    %v3150 = vpack.c.b16 %v3026, %v3022
    %v3151 = vpack.c.b16 %v3027, %v3023
    %v3152 = vpack.c.b16 %v3028, %v3024
    %v3153 = vpack.c.b16 %v3033, %v3029
    %v3154 = vpack.c.b16 %v3034, %v3030
    %v3155 = vpack.c.b16 %v3035, %v3031
    %v3156 = vpack.c.b16 %v3036, %v3032
    %v3157 = vpack.c.b16 %v3041, %v3037
    %v3158 = vpack.c.b16 %v3042, %v3038
    %v3159 = vpack.c.b16 %v3043, %v3039
    %v3160 = vpack.c.b16 %v3044, %v3040
    %v3161 = vpack.c.b16 %v3049, %v3045
    %v3162 = vpack.c.b16 %v3050, %v3046
    %v3163 = vpack.c.b16 %v3051, %v3047
    %v3164 = vpack.c.b16 %v3052, %v3048
    %v3165 = vpack.c.b16 %v3057, %v3053
    %v3166 = vpack.c.b16 %v3058, %v3054
    %v3167 = vpack.c.b16 %v3059, %v3055
    %v3168 = vpack.c.b16 %v3060, %v3056
    %v3169 = vpack.c.b16 %v3065, %v3061
    %v3170 = vpack.c.b16 %v3066, %v3062
    %v3171 = vpack.c.b16 %v3067, %v3063
    %v3172 = vpack.c.b16 %v3068, %v3064
    %v3173 = vpack.c.b16 %v3073, %v3069
    %v3174 = vpack.c.b16 %v3074, %v3070
    %v3175 = vpack.c.b16 %v3075, %v3071
    %v3176 = vpack.c.b16 %v3076, %v3072
    %v3177 = vpack.c.b16 %v3081, %v3077
    %v3178 = vpack.c.b16 %v3082, %v3078
    %v3179 = vpack.c.b16 %v3083, %v3079
    %v3180 = vpack.c.b16 %v3084, %v3080
    %v3181 = vpack.c.b16 %v3089, %v3085
    %v3182 = vpack.c.b16 %v3090, %v3086
    %v3183 = vpack.c.b16 %v3091, %v3087
    %v3184 = vpack.c.b16 %v3092, %v3088
    %v3185 = vpack.c.b16 %v3097, %v3093
    %v3186 = vpack.c.b16 %v3098, %v3094
    %v3187 = vpack.c.b16 %v3099, %v3095
    %v3188 = vpack.c.b16 %v3100, %v3096
    %v3189 = vpack.c.b16 %v3105, %v3101
    %v3190 = vpack.c.b16 %v3106, %v3102
    %v3191 = vpack.c.b16 %v3107, %v3103
    %v3192 = vpack.c.b16 %v3108, %v3104
    %v3193 = vpack.c.b16 %v3113, %v3109
    %v3194 = vpack.c.b16 %v3114, %v3110
    %v3195 = vpack.c.b16 %v3115, %v3111
    %v3196 = vpack.c.b16 %v3116, %v3112
    %v3197 = vpack.c.b16 %v3121, %v3117
    %v3198 = vpack.c.b16 %v3122, %v3118
    %v3199 = vpack.c.b16 %v3123, %v3119
    %v3200 = vpack.c.b16 %v3124, %v3120
    %v3201 = vpack.c.b16 %v3129, %v3125
    %v3202 = vpack.c.b16 %v3130, %v3126
    %v3203 = vpack.c.b16 %v3131, %v3127
    %v3204 = vpack.c.b16 %v3132, %v3128
    %v3205 = vpack.c.b16 %v3137, %v3133
    %v3206 = vpack.c.b16 %v3138, %v3134
    %v3207 = vpack.c.b16 %v3139, %v3135
    %v3208 = vpack.c.b16 %v3140, %v3136
    %v3209 = vpack.c.b16 %v3145, %v3141
    %v3210 = vpack.c.b16 %v3146, %v3142
    %v3211 = vpack.c.b16 %v3147, %v3143
    %v3212 = vpack.c.b16 %v3148, %v3144
    %3277 = vmatprep.subr.bf16.mxu0 %v3150
    %3278 = vmatpush1.bf16.msra.mxu0 %v3149
    %3279 = vmatprep.subr.bf16.mxu0 %v3154
    %3280 = vmatpush1.bf16.msra.mxu0 %v3153
    %3281 = vmatprep.subr.bf16.mxu0 %v3158
    %3282 = vmatpush1.bf16.msra.mxu0 %v3157
    %3283 = vmatprep.subr.bf16.mxu0 %v3162
    %3284 = vmatpush1.bf16.msra.mxu0 %v3161
    %3285 = vmatprep.subr.bf16.mxu0 %v3166
    %3286 = vmatpush1.bf16.msra.mxu0 %v3165
    %3287 = vmatprep.subr.bf16.mxu0 %v3170
    %3288 = vmatpush1.bf16.msra.mxu0 %v3169
    %3289 = vmatprep.subr.bf16.mxu0 %v3174
    %3290 = vmatpush1.bf16.msra.mxu0 %v3173
    %3291 = vmatprep.subr.bf16.mxu0 %v3178
    %3292 = vmatpush1.bf16.msra.mxu0 %v3177
    %3293 = vmatprep.subr.bf16.mxu0 %v3182
    %3294 = vmatpush1.bf16.msra.mxu0 %v3181
    %3295 = vmatprep.subr.bf16.mxu0 %v3186
    %3296 = vmatpush1.bf16.msra.mxu0 %v3185
    %3297 = vmatprep.subr.bf16.mxu0 %v3190
    %3298 = vmatpush1.bf16.msra.mxu0 %v3189
    %3299 = vmatprep.subr.bf16.mxu0 %v3194
    %3300 = vmatpush1.bf16.msra.mxu0 %v3193
    %3301 = vmatprep.subr.bf16.mxu0 %v3198
    %3302 = vmatpush1.bf16.msra.mxu0 %v3197
    %3303 = vmatprep.subr.bf16.mxu0 %v3202
    %3304 = vmatpush1.bf16.msra.mxu0 %v3201
    %3305 = vmatprep.subr.bf16.mxu0 %v3206
    %3306 = vmatpush1.bf16.msra.mxu0 %v3205
    %3307 = vmatprep.subr.bf16.mxu0 %v3210
    %3308 = vmatpush1.bf16.msra.mxu0 %v3209
    %3309 = vmatprep.mubr.bf16.mxu0 %v2892
    %3310 = vmatmul.mubr.bf16.gmra.mrb[0].mxu0 %v2891
    %v3311 = vpop.f32.mrb[0].mxu0
    %v3312 = vadd.f32 %v1350, %v3311
    %v3313 = vpop.f32.mrb[0].mxu0
    %v3314 = vadd.f32 %v1354, %v3313
    %v3315 = vpop.f32.mrb[0].mxu0
    %v3316 = vpop.f32.mrb[0].mxu0
    %3317 = vdwg.mxu0
    %3318 = vmatprep.subr.bf16.mxu0 %v3152
    %3319 = vmatpush1.bf16.msra.mxu0 %v3151
    %3320 = vmatprep.subr.bf16.mxu0 %v3156
    %3321 = vmatpush1.bf16.msra.mxu0 %v3155
    %3322 = vmatprep.subr.bf16.mxu0 %v3160
    %3323 = vmatpush1.bf16.msra.mxu0 %v3159
    %3324 = vmatprep.subr.bf16.mxu0 %v3164
    %3325 = vmatpush1.bf16.msra.mxu0 %v3163
    %3326 = vmatprep.subr.bf16.mxu0 %v3168
    %3327 = vmatpush1.bf16.msra.mxu0 %v3167
    %3328 = vmatprep.subr.bf16.mxu0 %v3172
    %3329 = vmatpush1.bf16.msra.mxu0 %v3171
    %3330 = vmatprep.subr.bf16.mxu0 %v3176
    %3331 = vmatpush1.bf16.msra.mxu0 %v3175
    %3332 = vmatprep.subr.bf16.mxu0 %v3180
    %3333 = vmatpush1.bf16.msra.mxu0 %v3179
    %3334 = vmatprep.subr.bf16.mxu0 %v3184
    %3335 = vmatpush1.bf16.msra.mxu0 %v3183
    %3336 = vmatprep.subr.bf16.mxu0 %v3188
    %3337 = vmatpush1.bf16.msra.mxu0 %v3187
    %3338 = vmatprep.subr.bf16.mxu0 %v3192
    %3339 = vmatpush1.bf16.msra.mxu0 %v3191
    %3340 = vmatprep.subr.bf16.mxu0 %v3196
    %3341 = vmatpush1.bf16.msra.mxu0 %v3195
    %3342 = vmatprep.subr.bf16.mxu0 %v3200
    %3343 = vmatpush1.bf16.msra.mxu0 %v3199
    %3344 = vmatprep.subr.bf16.mxu0 %v3204
    %3345 = vmatpush1.bf16.msra.mxu0 %v3203
    %3346 = vmatprep.subr.bf16.mxu0 %v3208
    %3347 = vmatpush1.bf16.msra.mxu0 %v3207
    %3348 = vmatprep.subr.bf16.mxu0 %v3212
    %3349 = vmatpush1.bf16.msra.mxu0 %v3211
    %3350 = vmatprep.mubr.bf16.mxu0 %v2892
    %3351 = vmatmul.mubr.bf16.gmra.mrb[0].mxu0 %v2891
    %v3352 = vpop.f32.mrb[0].mxu0
    %v3353 = vadd.f32 %v1358, %v3352
    %v3354 = vpop.f32.mrb[0].mxu0
    %v3355 = vadd.f32 %v1362, %v3354
    %v3356 = vpop.f32.mrb[0].mxu0
    %v3357 = vpop.f32.mrb[0].mxu0
    %3358 = vdwg.mxu0
    %v3359 = vxor.u32 %v3312, 2147483648
    %v3360 = vxor.u32 %v3314, 2147483648
    %v3361 = vxor.u32 %v3353, 2147483648
    %v3362 = vmul.f32 %v3359, 1.442695
    %v3363 = vpow.pop %v3362
    %v3364 = vmul.f32 %v3360, 1.442695
    %v3365 = vpow.pop %v3364
    %v3366 = vmul.f32 %v3361, 1.442695
    %v3367 = vpow.pop %v3366
    %v3368 = vadd.f32 %v3363, 1.0
    %v3369 = vadd.f32 %v3365, 1.0
    %v3370 = vadd.f32 %v3367, 1.0
    %v3371 = vrcp.pop %v3368
    %v3372 = vmul.f32 1.0, %v3371
    %v3373 = vrcp.pop %v3369
    %v3374 = vmul.f32 1.0, %v3373
    %v3375 = vrcp.pop %v3370
    %v3376 = vmul.f32 1.0, %v3375
    %v3377 = vtanh.pop %v3355
    %v3378 = vmul.f32 %v3374, %v2868
    %v3379 = vmul.f32 %v3372, %v3377
    %v3380 = vadd.f32 %v3378, %v3379
    %v3381 = vtanh.pop %v3380
    %v3382 = vmul.f32 %v3376, %v3381
    %v3383 = vld [vmem:[%s5] sm:$0xff]
    %v3384 = vld [vmem:[%s5 + $0x8] sm:$0xff]
    %v3385 = vld [vmem:[%s5 + $0x10] sm:$0xff]
    %v3386 = vld [vmem:[%s5 + $0x18] sm:$0xff]
    %v3387 = vld [vmem:[%s5 + $0x20] sm:$0xff]
    %v3388 = vld [vmem:[%s5 + $0x28] sm:$0xff]
    %v3389 = vld [vmem:[%s5 + $0x30] sm:$0xff]
    %v3390 = vld [vmem:[%s5 + $0x38] sm:$0xff]
    %v3391 = vld [vmem:[%s5 + $0x40] sm:$0xff]
    %v3392 = vld [vmem:[%s5 + $0x48] sm:$0xff]
    %v3393 = vld [vmem:[%s5 + $0x50] sm:$0xff]
    %v3394 = vld [vmem:[%s5 + $0x58] sm:$0xff]
    %v3395 = vld [vmem:[%s5 + $0x60] sm:$0xff]
    %v3396 = vld [vmem:[%s5 + $0x68] sm:$0xff]
    %v3397 = vld [vmem:[%s5 + $0x70] sm:$0xff]
    %v3398 = vld [vmem:[%s5 + $0x78] sm:$0xff]
    %v3399 = vld [vmem:[%s6] sm:$0x1]
    %3400 = vmatprep.subr.mxu0 0.0
    %3401 = vmatpush1.msra.mxu0 %v3383
    %3402 = vmatprep.subr.mxu0 0.0
    %3403 = vmatpush1.msra.mxu0 %v3384
    %3404 = vmatprep.subr.mxu0 0.0
    %3405 = vmatpush1.msra.mxu0 %v3385
    %3406 = vmatprep.subr.mxu0 0.0
    %3407 = vmatpush1.msra.mxu0 %v3386
    %3408 = vmatprep.subr.mxu0 0.0
    %3409 = vmatpush1.msra.mxu0 %v3387
    %3410 = vmatprep.subr.mxu0 0.0
    %3411 = vmatpush1.msra.mxu0 %v3388
    %3412 = vmatprep.subr.mxu0 0.0
    %3413 = vmatpush1.msra.mxu0 %v3389
    %3414 = vmatprep.subr.mxu0 0.0
    %3415 = vmatpush1.msra.mxu0 %v3390
    %3416 = vmatprep.subr.mxu0 0.0
    %3417 = vmatpush1.msra.mxu0 %v3391
    %3418 = vmatprep.subr.mxu0 0.0
    %3419 = vmatpush1.msra.mxu0 %v3392
    %3420 = vmatprep.subr.mxu0 0.0
    %3421 = vmatpush1.msra.mxu0 %v3393
    %3422 = vmatprep.subr.mxu0 0.0
    %3423 = vmatpush1.msra.mxu0 %v3394
    %3424 = vmatprep.subr.mxu0 0.0
    %3425 = vmatpush1.msra.mxu0 %v3395
    %3426 = vmatprep.subr.mxu0 0.0
    %3427 = vmatpush1.msra.mxu0 %v3396
    %3428 = vmatprep.subr.mxu0 0.0
    %3429 = vmatpush1.msra.mxu0 %v3397
    %3430 = vmatprep.subr.mxu0 0.0
    %3431 = vmatpush1.msra.mxu0 %v3398
    %3432 = vmatprep.subr.mxu0 0.0
    %3433 = vmatpush1.msra.mxu0 0.0
    %3434 = vmatprep.subr.mxu0 0.0
    %3435 = vmatpush1.msra.mxu0 0.0
    %3436 = vmatprep.subr.mxu0 0.0
    %3437 = vmatpush1.msra.mxu0 0.0
    %3438 = vmatprep.subr.mxu0 0.0
    %3439 = vmatpush1.msra.mxu0 0.0
    %3440 = vmatprep.subr.mxu0 0.0
    %3441 = vmatpush1.msra.mxu0 0.0
    %3442 = vmatprep.subr.mxu0 0.0
    %3443 = vmatpush1.msra.mxu0 0.0
    %3444 = vmatprep.subr.mxu0 0.0
    %3445 = vmatpush1.msra.mxu0 0.0
    %3446 = vmatprep.subr.mxu0 0.0
    %3447 = vmatpush1.msra.mxu0 0.0
    %3448 = vmatprep.subr.mxu0 0.0
    %3449 = vmatpush1.msra.mxu0 0.0
    %3450 = vmatprep.subr.mxu0 0.0
    %3451 = vmatpush1.msra.mxu0 0.0
    %3452 = vmatprep.subr.mxu0 0.0
    %3453 = vmatpush1.msra.mxu0 0.0
    %3454 = vmatprep.subr.mxu0 0.0
    %3455 = vmatpush1.msra.mxu0 0.0
    %3456 = vmatprep.subr.mxu0 0.0
    %3457 = vmatpush1.msra.mxu0 0.0
    %3458 = vmatprep.subr.mxu0 0.0
    %3459 = vmatpush1.msra.mxu0 0.0
    %3460 = vmatprep.subr.mxu0 0.0
    %3461 = vmatpush1.msra.mxu0 0.0
    %3462 = vmatprep.subr.mxu0 0.0
    %3463 = vmatpush1.msra.mxu0 0.0
    %3464 = vmatprep.mubr.f32.mxu0 0.0
    %3465 = vmatmul.mubr.f32.gmra.mrb[0].mxu0 %v3382
    %v3466 = vpop.f32.mrb[0].mxu0
    %v3467 = vadd.f32 %v3399, %v3466
    %v3468 = vpop.f32.mrb[0].mxu0
    %3469 = vdwg.mxu0
    %vm3470 = vcmask 122880
    %3471 = vst.msk [vmem:[#allocation8] sm:$0x1] %vm3470, %v3467
    // Predicated region
    $region38: #{lstm_forward.1} parent=1 // pred_check
      _
    $region39: #{lstm_forward.1} parent=1 // pred_check_branch
      %3473 = sbr.rel (0) target = $region41
    $region40: #{lstm_forward.1} parent=1 // pred_region
      %s3475 = ssub.s32 16, 16
      %3476 = vsyncadd [#allocation5], %s3475
      %s3478 = sshll.u32 [#allocation8], 4
      %s3479 = int_to_ptr.vmem [resolvable:$true] %s3478
      %3481 = dma.vmem_to_hbm [thread:$0]  %s3479, 16, %s7, [#allocation5]
    $region41: #{lstm_forward.1} parent=1 // pred_fallthru
      _
    // Predicated region
    $region42: #{lstm_forward.1} parent=1 // pred_check
      _
    $region43: #{lstm_forward.1} parent=1 // pred_check_branch
      %3483 = sbr.rel (0) target = $region45
    $region44: #{lstm_forward.1} parent=1 // pred_region
      %3484 = dma.done [#allocation5], 16
    $region45: #{lstm_forward.1} parent=1 // pred_fallthru
      _
    %3485 = vsyncpa [#allocation4], 1
    %3486 = vsyncpa [#allocation7], 1
    %3487 = vsyncpa [#allocation5], 1

</llo_original>
